<compile_context>
chip_gen: v6e
topology: v6e:2x2x1
jax: 0.10.0
libtpu: 0.0.40
codegen_flags: <defaults>
</compile_context>

<pallas_src>
import functools

import jax
import jax.numpy as jnp
from jax.experimental import pallas as pl
from jax.experimental.pallas import tpu as pltpu

_BN_EPS = 1e-5
_LANE = 128
_VMEM_LIMIT = 64 * 1024 * 1024          # explicit cap (safe on v7x's 64 MiB/TC)
_FUSED_BUDGET = 40 * 1024 * 1024        # gate for the all-layers-resident path
_PANEL_BUDGET = 36 * 1024 * 1024        # gate for adj row-panel width (streaming)


def _round_up(v, m):
    return ((v + m - 1) // m) * m


def _pick_tile(n):
    if n >= 4096:
        return 512
    if n >= 1024:
        return 256
    return 128


def _fused_fits(n_pad, c_pad, d_pad, g_pad, num_layers):
    """Conservative VMEM estimate (includes default double buffering)."""
    del num_layers
    cmax = max(c_pad, d_pad)
    b = 0
    b += 2 * 2 * n_pad * n_pad                       # adj bf16 (2 buffers)
    b += 2 * 2 * n_pad * cmax                        # x0 bf16
    b += 2 * n_pad * cmax                            # xcur scratch bf16
    b += 2 * 4 * g_pad * n_pad                       # pooling matrix f32
    b += 2 * 4 * (cmax * d_pad + d_pad * d_pad + 4 * d_pad)   # per-layer weights
    b += 2 * 4 * n_pad * d_pad                       # h_imp out block
    b += 2 * 4 * g_pad * d_pad                       # pooled out block
    b += 2 * 4 * 2 * n_pad                           # mask + imp
    return b <= _FUSED_BUDGET


def _pick_k_width(n_pad, tile, c_pad):
    """Widest adjacency row panel (multiple of tile, divides n_pad) in budget."""
    for kw in (n_pad, 16 * tile, 8 * tile, 4 * tile, 2 * tile, tile):
        if kw > n_pad or n_pad % kw:
            continue
        need = 2 * (2 * tile * kw) + 2 * (2 * kw * c_pad)    # adj panel + x, 2 bufs, bf16
        if need <= _PANEL_BUDGET:
            return kw
    return tile


# ----------------------------------------------------------------------------
# Path A: fully fused, all layers in one pallas_call (adj resident in VMEM)
# ----------------------------------------------------------------------------
def _fused_layers_kernel(adj_ref, x0_ref, mask_ref, imp_ref, pmat_ref,
                         w1_ref, b1_ref, w2_ref, b2_ref, gamma_ref, beta_ref,
                         himp_ref, pool_ref, xcur_ref, *, inv_n):
    l = pl.program_id(0)

    @pl.when(l == 0)
    def _init():
        xcur_ref[...] = x0_ref[...]

    mask = mask_ref[...]
    # GIN conv (eps=0), self loop folded into adj: agg = (A + I) @ x  (bf16 MXU,
    # f32 accumulation).
    agg = jnp.dot(adj_ref[...], xcur_ref[...], preferred_element_type=jnp.float32)
    # nn = Linear -> ReLU -> Linear, then the outer F.relu
    h = jnp.dot(agg, w1_ref[0], preferred_element_type=jnp.float32) + b1_ref[0]
    h = jnp.maximum(h, 0.0)
    h = jnp.dot(h, w2_ref[0], preferred_element_type=jnp.float32) + b2_ref[0]
    h = jnp.maximum(h, 0.0)
    h = h * mask                                   # padded rows -> 0

    # BatchNorm1d (training batch stats, biased variance, eps=1e-5), two-pass.
    mean = jnp.sum(h, axis=0, keepdims=True) * inv_n
    cent = (h - mean) * mask
    var = jnp.sum(cent * cent, axis=0, keepdims=True) * inv_n
    scale = gamma_ref[0] * jax.lax.rsqrt(var + _BN_EPS)
    hn = (cent * scale + beta_ref[0]) * mask

    h_imp = hn * imp_ref[...]                      # x_imp = x * node_imp
    himp_ref[0] = h_imp
    # Fused global_add_pool: (G_pad, N_pad) @ (N_pad, D_pad) on the MXU.
    pool_ref[0] = jnp.dot(pmat_ref[...], h_imp, preferred_element_type=jnp.float32)

    # Next-layer input stays resident in VMEM as bf16 (never written to HBM).
    d_pad = hn.shape[1]
    cmax = xcur_ref.shape[1]
    hn_b = hn.astype(xcur_ref.dtype)
    if cmax == d_pad:
        xcur_ref[...] = hn_b
    else:
        xcur_ref[:, :d_pad] = hn_b
        xcur_ref[:, d_pad:] = jnp.zeros((hn.shape[0], cmax - d_pad), xcur_ref.dtype)


def _fused_layers(adj, x0, mask, imp, pmat, w1s, b1s, w2s, b2s, gms, bts, *, n_real):
    num_layers, cmax_pad, d_pad = w1s.shape
    n_pad = adj.shape[0]
    g_pad = pmat.shape[0]

    flops = num_layers * (2 * n_pad * n_pad * cmax_pad
                          + 2 * n_pad * cmax_pad * d_pad
                          + 2 * n_pad * d_pad * d_pad
                          + 2 * g_pad * n_pad * d_pad)
    bytes_accessed = (2 * n_pad * n_pad + 2 * n_pad * cmax_pad + 4 * g_pad * n_pad
                      + 4 * num_layers * (cmax_pad * d_pad + d_pad * d_pad + 4 * d_pad)
                      + 4 * num_layers * (n_pad * d_pad + g_pad * d_pad))

    himp, pooled = pl.pallas_call(
        functools.partial(_fused_layers_kernel, inv_n=1.0 / float(n_real)),
        grid=(num_layers,),
        in_specs=[
            pl.BlockSpec((n_pad, n_pad), lambda l: (0, 0)),      # adj (DMA'd once)
            pl.BlockSpec((n_pad, cmax_pad), lambda l: (0, 0)),   # x0 (DMA'd once)
            pl.BlockSpec((n_pad, 1), lambda l: (0, 0)),          # node mask
            pl.BlockSpec((n_pad, 1), lambda l: (0, 0)),          # node_imp (masked)
            pl.BlockSpec((g_pad, n_pad), lambda l: (0, 0)),      # pooling matrix
            pl.BlockSpec((1, cmax_pad, d_pad), lambda l: (l, 0, 0)),  # w1 (stacked)
            pl.BlockSpec((1, 1, d_pad), lambda l: (l, 0, 0)),         # b1
            pl.BlockSpec((1, d_pad, d_pad), lambda l: (l, 0, 0)),     # w2
            pl.BlockSpec((1, 1, d_pad), lambda l: (l, 0, 0)),         # b2
            pl.BlockSpec((1, 1, d_pad), lambda l: (l, 0, 0)),         # gamma
            pl.BlockSpec((1, 1, d_pad), lambda l: (l, 0, 0)),         # beta
        ],
        out_specs=(
            pl.BlockSpec((1, n_pad, d_pad), lambda l: (l, 0, 0)),     # x_imp per layer
            pl.BlockSpec((1, g_pad, d_pad), lambda l: (l, 0, 0)),     # pooled per layer
        ),
        out_shape=(
            jax.ShapeDtypeStruct((num_layers, n_pad, d_pad), jnp.float32),
            jax.ShapeDtypeStruct((num_layers, g_pad, d_pad), jnp.float32),
        ),
        scratch_shapes=[pltpu.VMEM((n_pad, cmax_pad), jnp.bfloat16)],
        compiler_params=pltpu.CompilerParams(
            dimension_semantics=("arbitrary",),       # layer axis is sequential
            vmem_limit_bytes=_VMEM_LIMIT),
        cost_estimate=pl.CostEstimate(flops=flops, transcendentals=0,
                                      bytes_accessed=bytes_accessed),
    )(adj, x0, mask, imp, pmat, w1s, b1s, w2s, b2s, gms, bts)
    return himp, pooled


# ----------------------------------------------------------------------------
# Path B: per-layer streaming fallback (wide adjacency row panels)
# ----------------------------------------------------------------------------
def _gin_conv_kernel(adj_ref, xk_ref, mask_ref, w1_ref, b1_ref, w2_ref, b2_ref,
                     h_ref, stats_ref, acc_ref):
    k = pl.program_id(1)

    @pl.when(k == 0)
    def _init():
        acc_ref[...] = jnp.zeros_like(acc_ref)

    # Self loop already folded into adj: acc += (A + I) tile @ x tile.
    acc_ref[...] += jnp.dot(adj_ref[...], xk_ref[...],
                            preferred_element_type=jnp.float32)

    @pl.when(k == pl.num_programs(1) - 1)
    def _finalize():
        h = acc_ref[...]
        h = jnp.dot(h, w1_ref[...], preferred_element_type=jnp.float32) + b1_ref[...]
        h = jnp.maximum(h, 0.0)
        h = jnp.dot(h, w2_ref[...], preferred_element_type=jnp.float32) + b2_ref[...]
        h = jnp.maximum(h, 0.0)
        h = h * mask_ref[...]
        h_ref[...] = h
        # Per-row-tile partial BN statistics; direct sublane-slice writes
        # (no concatenate shuffle on the long finalize step).
        stats_ref[0, 0:1, :] = jnp.sum(h, axis=0, keepdims=True)
        stats_ref[0, 1:2, :] = jnp.sum(h * h, axis=0, keepdims=True)


def _bn_pool_kernel(h_ref, stats_ref, gamma_ref, beta_ref, mask_ref, imp_ref,
                    pmat_ref, hn_ref, himp_ref, pool_ref, *, inv_n):
    # BatchNorm1d, training batch stats (single-pass sum/sumsq across tiles).
    mean = stats_ref[0:1, :] * inv_n
    var = jnp.maximum(stats_ref[1:2, :] * inv_n - mean * mean, 0.0)
    scale = gamma_ref[...] * jax.lax.rsqrt(var + _BN_EPS)
    shift = beta_ref[...] - mean * scale
    hn = (h_ref[...] * scale + shift) * mask_ref[...]
    hn_ref[...] = hn.astype(hn_ref.dtype)          # bf16 next-layer input
    h_imp = hn * imp_ref[...]
    himp_ref[...] = h_imp
    pool_ref[0] = jnp.dot(pmat_ref[...], h_imp, preferred_element_type=jnp.float32)


def _gin_layer_streaming(adj, x_bf16, mask, imp, pmat, w1, b1, w2, b2, gamma, beta,
                         *, n_real, tile):
    n_pad, c_pad = x_bf16.shape
    d_pad = w1.shape[1]
    g_pad = pmat.shape[0]
    k_width = _pick_k_width(n_pad, tile, c_pad)
    ri = n_pad // tile
    ki = n_pad // k_width

    flops = (2 * n_pad * n_pad * c_pad + 2 * n_pad * c_pad * d_pad
             + 2 * n_pad * d_pad * d_pad)
    bytes_accessed = (2 * n_pad * n_pad
                      + 2 * n_pad * c_pad * (1 if ki == 1 else ri)
                      + 4 * n_pad * d_pad
                      + 4 * (c_pad * d_pad + d_pad * d_pad + 2 * d_pad)
                      + 4 * ri * 2 * d_pad)

    h, stats_p = pl.pallas_call(
        _gin_conv_kernel,
        grid=(ri, ki),
        in_specs=[
            pl.BlockSpec((tile, k_width), lambda i, k: (i, k)),    # adj row panel
            pl.BlockSpec((k_width, c_pad), lambda i, k: (k, 0)),   # x (resident if ki==1)
            pl.BlockSpec((tile, 1), lambda i, k: (i, 0)),          # node mask
            pl.BlockSpec((c_pad, d_pad), lambda i, k: (0, 0)),     # w1
            pl.BlockSpec((1, d_pad), lambda i, k: (0, 0)),         # b1
            pl.BlockSpec((d_pad, d_pad), lambda i, k: (0, 0)),     # w2
            pl.BlockSpec((1, d_pad), lambda i, k: (0, 0)),         # b2
        ],
        out_specs=(
            pl.BlockSpec((tile, d_pad), lambda i, k: (i, 0)),      # conv+MLP output
            pl.BlockSpec((1, 2, d_pad), lambda i, k: (i, 0, 0)),   # partial BN stats
        ),
        out_shape=(
            jax.ShapeDtypeStruct((n_pad, d_pad), jnp.float32),
            jax.ShapeDtypeStruct((ri, 2, d_pad), jnp.float32),
        ),
        scratch_shapes=[pltpu.VMEM((tile, c_pad), jnp.float32)],
        compiler_params=pltpu.CompilerParams(
            dimension_semantics=("parallel", "arbitrary"),
            vmem_limit_bytes=_VMEM_LIMIT),
        cost_estimate=pl.CostEstimate(flops=flops, transcendentals=0,
                                      bytes_accessed=bytes_accessed),
    )(adj, x_bf16, mask, w1, b1, w2, b2)

    stats = jnp.sum(stats_p, axis=0)               # tiny cross-tile reduce in glue

    bn_flops = 2 * g_pad * n_pad * d_pad + 8 * n_pad * d_pad
    bn_bytes = (4 * n_pad * d_pad + 2 * n_pad * d_pad + 4 * n_pad * d_pad
                + 4 * g_pad * n_pad + 4 * ri * g_pad * d_pad)

    hn, h_imp, pool_p = pl.pallas_call(
        functools.partial(_bn_pool_kernel, inv_n=1.0 / float(n_real)),
        grid=(ri,),
        in_specs=[
            pl.BlockSpec((tile, d_pad), lambda i: (i, 0)),         # h
            pl.BlockSpec((2, d_pad), lambda i: (0, 0)),            # BN stats
            pl.BlockSpec((1, d_pad), lambda i: (0, 0)),            # gamma
            pl.BlockSpec((1, d_pad), lambda i: (0, 0)),            # beta
            pl.BlockSpec((tile, 1), lambda i: (i, 0)),             # node mask
            pl.BlockSpec((tile, 1), lambda i: (i, 0)),             # node_imp
            pl.BlockSpec((g_pad, tile), lambda i: (0, i)),         # pooling matrix
        ],
        out_specs=(
            pl.BlockSpec((tile, d_pad), lambda i: (i, 0)),         # next-layer x (bf16)
            pl.BlockSpec((tile, d_pad), lambda i: (i, 0)),         # x_imp
            pl.BlockSpec((1, g_pad, d_pad), lambda i: (i, 0, 0)),  # pooled partials
        ),
        out_shape=(
            jax.ShapeDtypeStruct((n_pad, d_pad), jnp.bfloat16),
            jax.ShapeDtypeStruct((n_pad, d_pad), jnp.float32),
            jax.ShapeDtypeStruct((ri, g_pad, d_pad), jnp.float32),
        ),
        compiler_params=pltpu.CompilerParams(
            dimension_semantics=("parallel",),
            vmem_limit_bytes=_VMEM_LIMIT),
        cost_estimate=pl.CostEstimate(flops=bn_flops, transcendentals=0,
                                      bytes_accessed=bn_bytes),
    )(h, stats, gamma, beta, mask, imp, pmat)

    pooled = jnp.sum(pool_p, axis=0)               # tiny cross-tile reduce in glue
    return hn, h_imp, pooled


# ----------------------------------------------------------------------------
# HEncoder forward (glue in plain JAX, hot paths in Pallas)
# ----------------------------------------------------------------------------
def _pad2(a, rows, cols):
    a = a.astype(jnp.float32)
    return jnp.zeros((rows, cols), jnp.float32).at[:a.shape[0], :a.shape[1]].set(a)


def hencoder_forward(params, x, edge_index, batch, node_imp, num_graphs,
                     pooling="sum", force_streaming=False):
    n = batch.shape[0]
    if x is None:
        x = jnp.ones((n, 1), jnp.float32)
    x = x.astype(jnp.float32)

    dim = params[0][2].shape[1]                    # w2: (dim, dim)
    num_layers = len(params)
    c = x.shape[1]
    tile = _pick_tile(n)
    n_pad = _round_up(n, tile)
    c_pad = _round_up(c, _LANE)
    d_pad = _round_up(dim, _LANE)
    g_pad = _round_up(num_graphs, 8)

    # TODO(synk): sparse edge_index -> dense adjacency scatter-add stays in
    # plain JAX glue (dense adj is O(N^2) vs O(E)).  Built directly in bf16
    # (exact for edge multiplicities <= 256) with the GIN self term (eps=0)
    # folded in as an identity, so kernels need no separate self stream.
    src, dst = edge_index[0], edge_index[1]
    adj = jnp.zeros((n_pad, n_pad), jnp.bfloat16)
    adj = adj.at[dst, src].add(jnp.ones(src.shape, jnp.bfloat16))
    ids = jnp.arange(n, dtype=jnp.int32)
    adj = adj.at[ids, ids].add(jnp.ones((n,), jnp.bfloat16))

    mask = (jnp.arange(n_pad) < n).astype(jnp.float32)[:, None]      # (N_pad, 1)

    if node_imp is not None:
        imp_flat = node_imp.reshape(-1).astype(jnp.float32)
        per_graph_max = jax.ops.segment_max(imp_flat, batch,
                                            num_segments=num_graphs)
        den = per_graph_max[batch]
        # Guard degenerate graphs (max importance 0 or empty -> -inf).
        den = jnp.where(den > 0.0, den, 1.0)
        imp = imp_flat[:, None] / (den[:, None] * 10.0) + 0.9
    else:
        imp = jnp.ones((n, 1), jnp.float32)
    imp_pad = jnp.zeros((n_pad, 1), jnp.float32).at[:n].set(imp)     # padded rows 0

    # one-hot pooling matrix, (G_pad, N_pad)
    pmat = (batch[None, :] == jnp.arange(g_pad)[:, None]).astype(jnp.float32)
    pmat = jnp.pad(pmat, ((0, 0), (0, n_pad - n)))

    use_fused = (not force_streaming) and _fused_fits(n_pad, c_pad, d_pad, g_pad,
                                                      num_layers)

    if use_fused:
        cmax = max(c_pad, d_pad)
        x0 = _pad2(x, n_pad, cmax).astype(jnp.bfloat16)
        w1s = jnp.stack([_pad2(p[0], cmax, d_pad) for p in params])
        b1s = jnp.stack([_pad2(p[1], 1, d_pad) for p in params])
        w2s = jnp.stack([_pad2(p[2], d_pad, d_pad) for p in params])
        b2s = jnp.stack([_pad2(p[3], 1, d_pad) for p in params])
        gms = jnp.stack([_pad2(p[4], 1, d_pad) for p in params])
        bts = jnp.stack([_pad2(p[5], 1, d_pad) for p in params])
        himp, pooled_all = _fused_layers(adj, x0, mask, imp_pad, pmat,
                                         w1s, b1s, w2s, b2s, gms, bts, n_real=n)
        xs = [himp[l, :n, :dim] for l in range(num_layers)]
        pooled_list = [pooled_all[l, :num_graphs, :dim] for l in range(num_layers)]
    else:
        h = _pad2(x, n_pad, c_pad).astype(jnp.bfloat16)
        xs, pooled_list = [], []
        for (w1, b1, w2, b2, gamma, beta) in params:
            cin_pad = h.shape[1]
            w1p = _pad2(w1, cin_pad, d_pad)
            b1p = _pad2(b1, 1, d_pad)
            w2p = _pad2(w2, d_pad, d_pad)
            b2p = _pad2(b2, 1, d_pad)
            gp = _pad2(gamma, 1, d_pad)        # padded channels gamma=0 -> stay 0
            bp = _pad2(beta, 1, d_pad)
            h, h_imp, pooled = _gin_layer_streaming(adj, h, mask, imp_pad, pmat,
                                                    w1p, b1p, w2p, b2p, gp, bp,
                                                    n_real=n, tile=tile)
            xs.append(h_imp[:n, :dim])
            pooled_list.append(pooled[:num_graphs, :dim])

    if pooling == "last":
        out = pooled_list[-1]
    else:
        out = jnp.concatenate(pooled_list, axis=1)
    return out, jnp.concatenate(xs, axis=1)


# ----------------------------------------------------------------------------
# Pure-JAX reference (mirrors the kernel numerics: bf16 adj+self, bf16 hn)
# ----------------------------------------------------------------------------
def reference_forward(params, x, edge_index, batch, node_imp, num_graphs,
                      pooling="sum"):
    n = batch.shape[0]
    if x is None:
        x = jnp.ones((n, 1), jnp.float32)
    src, dst = edge_index[0], edge_index[1]
    ids = jnp.arange(n)
    adj = jnp.zeros((n, n), jnp.float32).at[dst, src].add(1.0)
    adj = adj.at[ids, ids].add(1.0)                # GIN self term folded in
    adj = adj.astype(jnp.bfloat16)

    if node_imp is not None:
        imp_flat = node_imp.reshape(-1).astype(jnp.float32)
        per_graph_max = jax.ops.segment_max(imp_flat, batch, num_segments=num_graphs)
        den = per_graph_max[batch]
        den = jnp.where(den > 0.0, den, 1.0)
        imp = imp_flat[:, None] / (den[:, None] * 10.0) + 0.9
    else:
        imp = jnp.ones((n, 1), jnp.float32)

    h = x.astype(jnp.float32)
    xs = []
    for (w1, b1, w2, b2, gamma, beta) in params:
        agg = jnp.dot(adj, h.astype(jnp.bfloat16),
                      preferred_element_type=jnp.float32)
        z = jnp.maximum(jnp.dot(agg, w1, precision=jax.lax.Precision.HIGHEST) + b1, 0.0)
        z = jnp.dot(z, w2, precision=jax.lax.Precision.HIGHEST) + b2
        z = jnp.maximum(z, 0.0)
        mean = jnp.mean(z, axis=0, keepdims=True)
        var = jnp.mean((z - mean) ** 2, axis=0, keepdims=True)
        hn = (z - mean) * jax.lax.rsqrt(var + _BN_EPS) * gamma + beta
        xs.append(hn * imp)
        h = hn
    pooled = [jax.ops.segment_sum(t, batch, num_segments=num_graphs) for t in xs]
    out = pooled[-1] if pooling == "last" else jnp.concatenate(pooled, axis=1)
    return out, jnp.concatenate(xs, axis=1)


def init_params(key, num_features, dim, num_gc_layers):
    params = []
    for i in range(num_gc_layers):
        din = num_features if i == 0 else dim
        key, k1, k2, k3, k4 = jax.random.split(key, 5)
        w1 = jax.random.normal(k1, (din, dim), jnp.float32) / jnp.sqrt(float(din))
        b1 = 0.01 * jax.random.normal(k2, (1, dim), jnp.float32)
        w2 = jax.random.normal(k3, (dim, dim), jnp.float32) / jnp.sqrt(float(dim))
        b2 = 0.01 * jax.random.normal(k4, (1, dim), jnp.float32)
        gamma = jnp.ones((1, dim), jnp.float32)    # BatchNorm1d default weight
        beta = jnp.zeros((1, dim), jnp.float32)    # BatchNorm1d default bias
        params.append((w1, b1, w2, b2, gamma, beta))
    return params


# ----------------------------------------------------------------------------
if __name__ == "__main__":
    key = jax.random.PRNGKey(0)

    num_features = 8
    dim = 32
    num_gc_layers = 3
    num_nodes = 300            # pads to 384
    num_graphs = 4
    num_edges = 1200

    k_x, k_e, k_imp, k_p = jax.random.split(key, 4)
    x = jax.random.normal(k_x, (num_nodes, num_features), jnp.float32)
    edge_index = jax.random.randint(k_e, (2, num_edges), 0, num_nodes,
                                    dtype=jnp.int32)
    batch = jnp.repeat(jnp.arange(num_graphs, dtype=jnp.int32),
                       num_nodes // num_graphs)
    node_imp = jax.random.uniform(k_imp, (num_nodes, 1), jnp.float32) + 0.1
    params = init_params(k_p, num_features, dim, num_gc_layers)

    fwd = jax.jit(hencoder_forward, static_argnums=(5,),
                  static_argnames=("pooling", "force_streaming"))

    # Fused (adjacency-resident) path — the default for small/medium graphs.
    pooled, xs_cat = fwd(params, x, edge_index, batch, node_imp, num_graphs)
    jax.block_until_ready((pooled, xs_cat))

    assert pooled.shape == (num_graphs, dim * num_gc_layers)
    assert xs_cat.shape == (num_nodes, dim * num_gc_layers)
    assert bool(jnp.all(jnp.isfinite(pooled))) and bool(jnp.all(jnp.isfinite(xs_cat)))

    ref_pooled, ref_xs = reference_forward(params, x, edge_index, batch,
                                           node_imp, num_graphs)
    assert jnp.allclose(xs_cat, ref_xs, rtol=3e-2, atol=3e-2), \
        float(jnp.max(jnp.abs(xs_cat - ref_xs)))
    assert jnp.allclose(pooled, ref_pooled, rtol=5e-2, atol=2e-1), \
        float(jnp.max(jnp.abs(pooled - ref_pooled)))

    # Also exercise the streaming fallback path (used when the graph is too
    # big for full VMEM residency) at the same small shapes.
    pooled_s, xs_s = fwd(params, x, edge_index, batch, node_imp, num_graphs,
                         force_streaming=True)
    jax.block_until_ready((pooled_s, xs_s))
    assert jnp.allclose(xs_s, ref_xs, rtol=3e-2, atol=3e-2), \
        float(jnp.max(jnp.abs(xs_s - ref_xs)))
    assert jnp.allclose(pooled_s, ref_pooled, rtol=5e-2, atol=2e-1), \
        float(jnp.max(jnp.abs(pooled_s - ref_pooled)))

    print("KERNEL_OK")
</pallas_src>

<mosaic_0001>
module attributes {stable_mosaic.version = 11 : i64} {
  func.func @_fused_layers_kernel(%arg0: i32, %arg1: memref<384x384xbf16, #tpu.memory_space<vmem>>, %arg2: memref<384x128xbf16, #tpu.memory_space<vmem>>, %arg3: memref<384x1xf32, #tpu.memory_space<vmem>>, %arg4: memref<384x1xf32, #tpu.memory_space<vmem>>, %arg5: memref<8x384xf32, #tpu.memory_space<vmem>>, %arg6: memref<1x128x128xf32, #tpu.memory_space<vmem>>, %arg7: memref<1x1x128xf32, #tpu.memory_space<vmem>>, %arg8: memref<1x128x128xf32, #tpu.memory_space<vmem>>, %arg9: memref<1x1x128xf32, #tpu.memory_space<vmem>>, %arg10: memref<1x1x128xf32, #tpu.memory_space<vmem>>, %arg11: memref<1x1x128xf32, #tpu.memory_space<vmem>>, %arg12: memref<1x384x128xf32, #tpu.memory_space<vmem>>, %arg13: memref<1x8x128xf32, #tpu.memory_space<vmem>>, %arg14: memref<384x128xbf16, #tpu.memory_space<vmem>>) attributes {dimension_semantics = [#tpu.dimension_semantics<arbitrary>], iteration_bounds = array<i64: 3>, scalar_prefetch = 0 : i64, scratch_operands = 1 : i64, tpu.core_type = #tpu.core_type<tc>, window_params = [{pipeline_mode = #tpu.pipeline_mode<synchronous>, transform_indices = @transform_0, window_bounds = array<i64: 384, 384>}, {pipeline_mode = #tpu.pipeline_mode<synchronous>, transform_indices = @transform_1, window_bounds = array<i64: 384, 128>}, {pipeline_mode = #tpu.pipeline_mode<synchronous>, transform_indices = @transform_2, window_bounds = array<i64: 384, 1>}, {pipeline_mode = #tpu.pipeline_mode<synchronous>, transform_indices = @transform_3, window_bounds = array<i64: 384, 1>}, {pipeline_mode = #tpu.pipeline_mode<synchronous>, transform_indices = @transform_4, window_bounds = array<i64: 8, 384>}, {transform_indices = @transform_5, window_bounds = array<i64: 1, 128, 128>}, {transform_indices = @transform_6, window_bounds = array<i64: 1, 1, 128>}, {transform_indices = @transform_7, window_bounds = array<i64: 1, 128, 128>}, {transform_indices = @transform_8, window_bounds = array<i64: 1, 1, 128>}, {transform_indices = @transform_9, window_bounds = array<i64: 1, 1, 128>}, {transform_indices = @transform_10, window_bounds = array<i64: 1, 1, 128>}, {transform_indices = @transform_11, window_bounds = array<i64: 1, 384, 128>}, {transform_indices = @transform_12, window_bounds = array<i64: 1, 8, 128>}]} {
    %c0_i32 = arith.constant 0 : i32
    %0 = arith.cmpi eq, %arg0, %c0_i32 : i32
    %1 = arith.extui %0 : i1 to i32
    %c0_i32_0 = arith.constant 0 : i32
    %2 = arith.cmpi ne, %1, %c0_i32_0 : i32
    scf.if %2 {
      %c0_46 = arith.constant 0 : index
      %c0_47 = arith.constant 0 : index
      %67 = vector.load %arg2[%c0_46, %c0_47] : memref<384x128xbf16, #tpu.memory_space<vmem>>, vector<384x128xbf16>
      %c0_48 = arith.constant 0 : index
      %c0_49 = arith.constant 0 : index
      %68 = vector.load %arg14[%c0_48, %c0_49] : memref<384x128xbf16, #tpu.memory_space<vmem>>, vector<384x128xbf16>
      tpu.vector_store %arg14[%c0_48, %c0_49], %67 {strides = array<i32>} : memref<384x128xbf16, #tpu.memory_space<vmem>>, vector<384x128xbf16>,
    } else {
    }
    %c0 = arith.constant 0 : index
    %c0_1 = arith.constant 0 : index
    %3 = vector.load %arg3[%c0, %c0_1] : memref<384x1xf32, #tpu.memory_space<vmem>>, vector<384x1xf32>
    %c0_2 = arith.constant 0 : index
    %c0_3 = arith.constant 0 : index
    %4 = vector.load %arg1[%c0_2, %c0_3] : memref<384x384xbf16, #tpu.memory_space<vmem>>, vector<384x384xbf16>
    %c0_4 = arith.constant 0 : index
    %c0_5 = arith.constant 0 : index
    %5 = vector.load %arg14[%c0_4, %c0_5] : memref<384x128xbf16, #tpu.memory_space<vmem>>, vector<384x128xbf16>
    %cst = arith.constant dense<0.000000e+00> : vector<384x128xf32>
    %6 = tpu.matmul %4, %5, %cst {dimension_numbers = #tpu.dot_dimension_numbers<[1], [0], [0], [1], [0, 0, 1, 1], [], []>} : vector<384x384xbf16>, vector<384x128xbf16>, vector<384x128xf32> -> vector<384x128xf32>
    %c0_6 = arith.constant 0 : index
    %c0_7 = arith.constant 0 : index
    %c0_8 = arith.constant 0 : index
    %7 = vector.load %arg6[%c0_6, %c0_7, %c0_8] : memref<1x128x128xf32, #tpu.memory_space<vmem>>, vector<1x128x128xf32>
    %8 = vector.shape_cast %7 : vector<1x128x128xf32> to vector<128x128xf32>
    %cst_9 = arith.constant dense<0.000000e+00> : vector<384x128xf32>
    %9 = tpu.matmul %6, %8, %cst_9 {dimension_numbers = #tpu.dot_dimension_numbers<[1], [0], [0], [1], [0, 0, 1, 1], [], []>} : vector<384x128xf32>, vector<128x128xf32>, vector<384x128xf32> -> vector<384x128xf32>
    %c0_10 = arith.constant 0 : index
    %c0_11 = arith.constant 0 : index
    %c0_12 = arith.constant 0 : index
    %10 = vector.load %arg7[%c0_10, %c0_11, %c0_12] : memref<1x1x128xf32, #tpu.memory_space<vmem>>, vector<1x1x128xf32>
    %11 = vector.shape_cast %10 : vector<1x1x128xf32> to vector<1x128xf32>
    %12 = vector.broadcast %11 : vector<1x128xf32> to vector<384x128xf32>
    %13 = arith.addf %9, %12 : vector<384x128xf32>
    %cst_13 = arith.constant 0.000000e+00 : f32
    %14 = vector.broadcast %cst_13 : f32 to vector<384x128xf32>
    %15 = arith.maximumf %13, %14 : vector<384x128xf32>
    %c0_14 = arith.constant 0 : index
    %c0_15 = arith.constant 0 : index
    %c0_16 = arith.constant 0 : index
    %16 = vector.load %arg8[%c0_14, %c0_15, %c0_16] : memref<1x128x128xf32, #tpu.memory_space<vmem>>, vector<1x128x128xf32>
    %17 = vector.shape_cast %16 : vector<1x128x128xf32> to vector<128x128xf32>
    %cst_17 = arith.constant dense<0.000000e+00> : vector<384x128xf32>
    %18 = tpu.matmul %15, %17, %cst_17 {dimension_numbers = #tpu.dot_dimension_numbers<[1], [0], [0], [1], [0, 0, 1, 1], [], []>} : vector<384x128xf32>, vector<128x128xf32>, vector<384x128xf32> -> vector<384x128xf32>
    %c0_18 = arith.constant 0 : index
    %c0_19 = arith.constant 0 : index
    %c0_20 = arith.constant 0 : index
    %19 = vector.load %arg9[%c0_18, %c0_19, %c0_20] : memref<1x1x128xf32, #tpu.memory_space<vmem>>, vector<1x1x128xf32>
    %20 = vector.shape_cast %19 : vector<1x1x128xf32> to vector<1x128xf32>
    %21 = vector.broadcast %20 : vector<1x128xf32> to vector<384x128xf32>
    %22 = arith.addf %18, %21 : vector<384x128xf32>
    %cst_21 = arith.constant 0.000000e+00 : f32
    %23 = vector.broadcast %cst_21 : f32 to vector<384x128xf32>
    %24 = arith.maximumf %22, %23 : vector<384x128xf32>
    %25 = vector.broadcast %3 : vector<384x1xf32> to vector<384x128xf32>
    %26 = arith.mulf %24, %25 : vector<384x128xf32>
    %cst_22 = arith.constant dense<0.000000e+00> : vector<128xf32>
    %27 = vector.multi_reduction <add>, %26, %cst_22 [0] : vector<384x128xf32> to vector<128xf32>
    %28 = vector.shape_cast %27 : vector<128xf32> to vector<1x128xf32>
    %cst_23 = arith.constant 0.00333333341 : f32
    %29 = vector.broadcast %cst_23 : f32 to vector<1x128xf32>
    %30 = arith.mulf %28, %29 : vector<1x128xf32>
    %31 = vector.broadcast %30 : vector<1x128xf32> to vector<384x128xf32>
    %32 = arith.subf %26, %31 : vector<384x128xf32>
    %33 = vector.broadcast %3 : vector<384x1xf32> to vector<384x128xf32>
    %34 = arith.mulf %32, %33 : vector<384x128xf32>
    %35 = arith.mulf %34, %34 : vector<384x128xf32>
    %cst_24 = arith.constant dense<0.000000e+00> : vector<128xf32>
    %36 = vector.multi_reduction <add>, %35, %cst_24 [0] : vector<384x128xf32> to vector<128xf32>
    %37 = vector.shape_cast %36 : vector<128xf32> to vector<1x128xf32>
    %cst_25 = arith.constant 0.00333333341 : f32
    %38 = vector.broadcast %cst_25 : f32 to vector<1x128xf32>
    %39 = arith.mulf %37, %38 : vector<1x128xf32>
    %c0_26 = arith.constant 0 : index
    %c0_27 = arith.constant 0 : index
    %c0_28 = arith.constant 0 : index
    %40 = vector.load %arg10[%c0_26, %c0_27, %c0_28] : memref<1x1x128xf32, #tpu.memory_space<vmem>>, vector<1x1x128xf32>
    %41 = vector.shape_cast %40 : vector<1x1x128xf32> to vector<1x128xf32>
    %cst_29 = arith.constant 9.99999974E-6 : f32
    %42 = vector.broadcast %cst_29 : f32 to vector<1x128xf32>
    %43 = arith.addf %39, %42 : vector<1x128xf32>
    %44 = math.rsqrt %43 : vector<1x128xf32>
    %45 = arith.mulf %41, %44 : vector<1x128xf32>
    %46 = vector.broadcast %45 : vector<1x128xf32> to vector<384x128xf32>
    %47 = arith.mulf %34, %46 : vector<384x128xf32>
    %c0_30 = arith.constant 0 : index
    %c0_31 = arith.constant 0 : index
    %c0_32 = arith.constant 0 : index
    %48 = vector.load %arg11[%c0_30, %c0_31, %c0_32] : memref<1x1x128xf32, #tpu.memory_space<vmem>>, vector<1x1x128xf32>
    %49 = vector.shape_cast %48 : vector<1x1x128xf32> to vector<1x128xf32>
    %50 = vector.broadcast %49 : vector<1x128xf32> to vector<384x128xf32>
    %51 = arith.addf %47, %50 : vector<384x128xf32>
    %52 = vector.broadcast %3 : vector<384x1xf32> to vector<384x128xf32>
    %53 = arith.mulf %51, %52 : vector<384x128xf32>
    %c0_33 = arith.constant 0 : index
    %c0_34 = arith.constant 0 : index
    %54 = vector.load %arg4[%c0_33, %c0_34] : memref<384x1xf32, #tpu.memory_space<vmem>>, vector<384x1xf32>
    %55 = vector.broadcast %54 : vector<384x1xf32> to vector<384x128xf32>
    %56 = arith.mulf %53, %55 : vector<384x128xf32>
    %c0_35 = arith.constant 0 : index
    %c0_36 = arith.constant 0 : index
    %c0_37 = arith.constant 0 : index
    %57 = vector.load %arg12[%c0_35, %c0_36, %c0_37] : memref<1x384x128xf32, #tpu.memory_space<vmem>>, vector<1x384x128xf32>
    %58 = vector.shape_cast %57 : vector<1x384x128xf32> to vector<384x128xf32>
    %59 = vector.shape_cast %56 : vector<384x128xf32> to vector<1x384x128xf32>
    tpu.vector_store %arg12[%c0_35, %c0_36, %c0_37], %59 {strides = array<i32>} : memref<1x384x128xf32, #tpu.memory_space<vmem>>, vector<1x384x128xf32>,
    %c0_38 = arith.constant 0 : index
    %c0_39 = arith.constant 0 : index
    %60 = vector.load %arg5[%c0_38, %c0_39] : memref<8x384xf32, #tpu.memory_space<vmem>>, vector<8x384xf32>
    %cst_40 = arith.constant dense<0.000000e+00> : vector<8x128xf32>
    %61 = tpu.matmul %60, %56, %cst_40 {dimension_numbers = #tpu.dot_dimension_numbers<[1], [0], [0], [1], [0, 0, 1, 1], [], []>} : vector<8x384xf32>, vector<384x128xf32>, vector<8x128xf32> -> vector<8x128xf32>
    %c0_41 = arith.constant 0 : index
    %c0_42 = arith.constant 0 : index
    %c0_43 = arith.constant 0 : index
    %62 = vector.load %arg13[%c0_41, %c0_42, %c0_43] : memref<1x8x128xf32, #tpu.memory_space<vmem>>, vector<1x8x128xf32>
    %63 = vector.shape_cast %62 : vector<1x8x128xf32> to vector<8x128xf32>
    %64 = vector.shape_cast %61 : vector<8x128xf32> to vector<1x8x128xf32>
    tpu.vector_store %arg13[%c0_41, %c0_42, %c0_43], %64 {strides = array<i32>} : memref<1x8x128xf32, #tpu.memory_space<vmem>>, vector<1x8x128xf32>,
    %65 = arith.truncf %53 : vector<384x128xf32> to vector<384x128xbf16>
    %c0_44 = arith.constant 0 : index
    %c0_45 = arith.constant 0 : index
    %66 = vector.load %arg14[%c0_44, %c0_45] : memref<384x128xbf16, #tpu.memory_space<vmem>>, vector<384x128xbf16>
    tpu.vector_store %arg14[%c0_44, %c0_45], %65 {strides = array<i32>} : memref<384x128xbf16, #tpu.memory_space<vmem>>, vector<384x128xbf16>,
    return
  }
  func.func @transform_0(%arg0: i32) -> (i32, i32) {
    %c0_i32 = arith.constant 0 : i32
    %c0_i32_0 = arith.constant 0 : i32
    %c0_i32_1 = arith.constant 0 : i32
    return %c0_i32, %c0_i32_0 : i32, i32
  }
  func.func @transform_1(%arg0: i32) -> (i32, i32) {
    %c0_i32 = arith.constant 0 : i32
    %c0_i32_0 = arith.constant 0 : i32
    %c0_i32_1 = arith.constant 0 : i32
    return %c0_i32, %c0_i32_0 : i32, i32
  }
  func.func @transform_2(%arg0: i32) -> (i32, i32) {
    %c0_i32 = arith.constant 0 : i32
    %c0_i32_0 = arith.constant 0 : i32
    %c0_i32_1 = arith.constant 0 : i32
    return %c0_i32, %c0_i32_0 : i32, i32
  }
  func.func @transform_3(%arg0: i32) -> (i32, i32) {
    %c0_i32 = arith.constant 0 : i32
    %c0_i32_0 = arith.constant 0 : i32
    %c0_i32_1 = arith.constant 0 : i32
    return %c0_i32, %c0_i32_0 : i32, i32
  }
  func.func @transform_4(%arg0: i32) -> (i32, i32) {
    %c0_i32 = arith.constant 0 : i32
    %c0_i32_0 = arith.constant 0 : i32
    %c0_i32_1 = arith.constant 0 : i32
    return %c0_i32, %c0_i32_0 : i32, i32
  }
  func.func @transform_5(%arg0: i32) -> (i32, i32, i32) {
    %c0_i32 = arith.constant 0 : i32
    %c0_i32_0 = arith.constant 0 : i32
    %c0_i32_1 = arith.constant 0 : i32
    return %arg0, %c0_i32, %c0_i32_0 : i32, i32, i32
  }
  func.func @transform_6(%arg0: i32) -> (i32, i32, i32) {
    %c0_i32 = arith.constant 0 : i32
    %c0_i32_0 = arith.constant 0 : i32
    %c0_i32_1 = arith.constant 0 : i32
    return %arg0, %c0_i32, %c0_i32_0 : i32, i32, i32
  }
  func.func @transform_7(%arg0: i32) -> (i32, i32, i32) {
    %c0_i32 = arith.constant 0 : i32
    %c0_i32_0 = arith.constant 0 : i32
    %c0_i32_1 = arith.constant 0 : i32
    return %arg0, %c0_i32, %c0_i32_0 : i32, i32, i32
  }
  func.func @transform_8(%arg0: i32) -> (i32, i32, i32) {
    %c0_i32 = arith.constant 0 : i32
    %c0_i32_0 = arith.constant 0 : i32
    %c0_i32_1 = arith.constant 0 : i32
    return %arg0, %c0_i32, %c0_i32_0 : i32, i32, i32
  }
  func.func @transform_9(%arg0: i32) -> (i32, i32, i32) {
    %c0_i32 = arith.constant 0 : i32
    %c0_i32_0 = arith.constant 0 : i32
    %c0_i32_1 = arith.constant 0 : i32
    return %arg0, %c0_i32, %c0_i32_0 : i32, i32, i32
  }
  func.func @transform_10(%arg0: i32) -> (i32, i32, i32) {
    %c0_i32 = arith.constant 0 : i32
    %c0_i32_0 = arith.constant 0 : i32
    %c0_i32_1 = arith.constant 0 : i32
    return %arg0, %c0_i32, %c0_i32_0 : i32, i32, i32
  }
  func.func @transform_11(%arg0: i32) -> (i32, i32, i32) {
    %c0_i32 = arith.constant 0 : i32
    %c0_i32_0 = arith.constant 0 : i32
    %c0_i32_1 = arith.constant 0 : i32
    return %arg0, %c0_i32, %c0_i32_0 : i32, i32, i32
  }
  func.func @transform_12(%arg0: i32) -> (i32, i32, i32) {
    %c0_i32 = arith.constant 0 : i32
    %c0_i32_0 = arith.constant 0 : i32
    %c0_i32_1 = arith.constant 0 : i32
    return %arg0, %c0_i32, %c0_i32_0 : i32, i32, i32
  }
}

</mosaic_0001>

<llo_original>
// kernel: div.1
$region0: #{div.1}
  #allocation0 [shape = 's32[1]{0}', space=sflag, size = 0x4, scoped, tag = 'scoped memory for div.1']
  %s0 = inlined_call_operand.vmem [shape: f32[300,1], index: 0, kind: input, shape index: {}]
  %s1 = inlined_call_operand.vmem [shape: f32[300,1], index: 1, kind: input, shape index: {}]
  %s2 = inlined_call_operand.vmem [shape: f32[300,1], index: 2, kind: output, shape index: {}]
  %v3 = vld [vmem:[%s0] sm:$0x1]
  %v4 = vld [vmem:[%s1] sm:$0x1]
  %5 = xla_tuple %v3, %v4
  %6 = xla_tuple %5
  %v7 = vrcp.pop %v4
  %v8 = vmul.f32 %v3, %v7
  %9 = xla_tuple %v8
  %10 = vst [vmem:[%s2] sm:$0x1] %v8
  %s11 = scalar_lea.vmem %s0, 1
  %v12 = vld [vmem:[%s11] sm:$0x1]
  %s13 = scalar_lea.vmem %s1, 1
  %v14 = vld [vmem:[%s13] sm:$0x1]
  %15 = xla_tuple %v12, %v14
  %16 = xla_tuple %15
  %v17 = vrcp.pop %v14
  %v18 = vmul.f32 %v12, %v17
  %19 = xla_tuple %v18
  %s20 = scalar_lea.vmem %s2, 1
  %21 = vst [vmem:[%s20] sm:$0x1] %v18
  %s22 = scalar_lea.vmem %s0, 2
  %v23 = vld [vmem:[%s22] sm:$0x1]
  %s24 = scalar_lea.vmem %s1, 2
  %v25 = vld [vmem:[%s24] sm:$0x1]
  %26 = xla_tuple %v23, %v25
  %27 = xla_tuple %26
  %v28 = vrcp.pop %v25
  %v29 = vmul.f32 %v23, %v28
  %30 = xla_tuple %v29
  %s31 = scalar_lea.vmem %s2, 2
  %32 = vst [vmem:[%s31] sm:$0x1] %v29

// kernel: hencoder_forward.1
$region0: #{hencoder_forward.1}
  #allocation0 [shape = 'u32[]', space=smem, size = 0x4, offset = 0x4, fixed_abs, tag = 'smem constant byte address 0x4 - core index']
  #allocation1 [shape = 'u32[144,128]{1,0:T(1,128)}', space=vmem, size = 0x12000, scoped, tag = 'internal scratch']
  #allocation2 [shape = 'bf16[384,128]{1,0:T(8,128)(2,1)}', space=vmem, size = 0x18000, scoped, tag = 'scratch operand']
  %s0 = inlined_call_operand.vmem [shape: bf16[384,384], index: 0, kind: input, shape index: {}]
  %s1 = inlined_call_operand.vmem [shape: bf16[384,128], index: 1, kind: input, shape index: {}]
  %s2 = inlined_call_operand.vmem [shape: f32[384,1], index: 2, kind: input, shape index: {}]
  %s3 = inlined_call_operand.vmem [shape: f32[384,1], index: 3, kind: input, shape index: {}]
  %s4 = inlined_call_operand.vmem [shape: f32[8,384], index: 4, kind: input, shape index: {}]
  %s5 = inlined_call_operand.vmem [shape: f32[3,128,128], index: 5, kind: input, shape index: {}]
  %s6 = inlined_call_operand.vmem [shape: f32[3,1,128], index: 6, kind: input, shape index: {}]
  %s7 = inlined_call_operand.vmem [shape: f32[3,128,128], index: 7, kind: input, shape index: {}]
  %s8 = inlined_call_operand.vmem [shape: f32[3,1,128], index: 8, kind: input, shape index: {}]
  %s9 = inlined_call_operand.vmem [shape: f32[3,1,128], index: 9, kind: input, shape index: {}]
  %s10 = inlined_call_operand.vmem [shape: f32[3,1,128], index: 10, kind: input, shape index: {}]
  %s11 = inlined_call_operand.vmem [shape: f32[3,384,128], index: 11, kind: output, shape index: {0}]
  %s12 = inlined_call_operand.vmem [shape: f32[3,8,128], index: 12, kind: output, shape index: {1}]
  %13 = xla_tuple %s11, %s12
  %s14 = sld [smem:[#allocation0]]
  $region89: #{hencoder_forward.1} parent=0
    _
  %s16 = ssub.s32 1, %s14
  %s17 = scalar_select 0, %s16, %s14
  loop: start=0, step=1, limit=5
  $region2: #{hencoder_forward.1} parent=0 // loop_pre_header
    _
  $region3: #{hencoder_forward.1} parent=0 // loop_header
    %s19 = sphi 0, %s23
    %p20 = scmp.ge.s32.totalorder %s19, 5
    %s27 = sphi 0, %s27
    %s29 = sphi 0, %s27
    %s30 = sphi 0, %s29
    %s44 = sphi 0, %s30
    %s48 = sphi 0, %s48
    %s50 = sphi 0, %s48
    %s51 = sphi 0, %s50
    %s65 = sphi 0, %s51
    %s69 = sphi 0, %s69
    %s71 = sphi 0, %s69
    %s72 = sphi 0, %s71
    %s86 = sphi 0, %s72
    %s90 = sphi 0, %s90
    %s92 = sphi 0, %s90
    %s93 = sphi 0, %s92
    %s107 = sphi 0, %s93
    %s111 = sphi 0, %s111
    %s113 = sphi 0, %s111
    %s114 = sphi 0, %s113
    %s128 = sphi 0, %s114
    %s134 = sphi 0, %s136
    %s137 = sphi 0, %s134
    %s138 = sphi 0, %s137
    %s154 = sphi 0, %s138
    %s160 = sphi 0, %s162
    %s163 = sphi 0, %s160
    %s164 = sphi 0, %s163
    %s180 = sphi 0, %s164
    %s186 = sphi 0, %s188
    %s189 = sphi 0, %s186
    %s190 = sphi 0, %s189
    %s206 = sphi 0, %s190
    %s212 = sphi 0, %s214
    %s215 = sphi 0, %s212
    %s216 = sphi 0, %s215
    %s232 = sphi 0, %s216
    %s238 = sphi 0, %s240
    %s241 = sphi 0, %s238
    %s242 = sphi 0, %s241
    %s258 = sphi 0, %s242
    %s264 = sphi 0, %s266
    %s267 = sphi 0, %s264
    %s268 = sphi 0, %s267
    %s284 = sphi 0, %s268
    %s290 = sphi 0, %s292
    %s293 = sphi 0, %s290
    %s294 = sphi 0, %s293
    %s310 = sphi 0, %s294
    %s316 = sphi 0, %s318
    %s319 = sphi 0, %s316
    %s320 = sphi 0, %s319
    %s336 = sphi 0, %s320
  $region4: #{hencoder_forward.1} parent=0 // loop_header_branch
    %22 = sbr.rel (%p20) target = $region8
  $region5: #{hencoder_forward.1} parent=0 // loop_body
    %s24 = ssub.s32 %s19, 1
    %s25 = ssub.s32 %s19, 2
    %s26 = sadd.s32 %s19, 1
    %s28 = sadd.s32 %s27, 1
    %p31 = scmp.eq.s32.totalorder %s19, 2
    %p32 = scmp.ne.s32.totalorder %s27, %s29
    %p33 = scmp.eq.s32.totalorder %s19, 0
    %p34 = por %p32, %p33
    %p35 = scmp.ne.s32.totalorder %s27, %s29
    %p36 = scmp.eq.s32.totalorder %s24, 2
    %p37 = por %p35, %p36
    %p38 = scmp.ne.s32.totalorder %s29, %s30
    %p39 = scmp.eq.s32.totalorder %s24, 0
    %p40 = por %p38, %p39
    %p41 = scmp.ne.s32.totalorder %s29, %s30
    %p42 = scmp.eq.s32.totalorder %s25, 2
    %p43 = por %p41, %p42
    %p45 = scmp.ne.s32.totalorder %s30, %s44
    %p46 = scmp.eq.s32.totalorder %s25, 0
    %p47 = por %p45, %p46
    %s49 = sadd.s32 %s48, 1
    %p52 = scmp.eq.s32.totalorder %s19, 2
    %p53 = scmp.ne.s32.totalorder %s48, %s50
    %p54 = scmp.eq.s32.totalorder %s19, 0
    %p55 = por %p53, %p54
    %p56 = scmp.ne.s32.totalorder %s48, %s50
    %p57 = scmp.eq.s32.totalorder %s24, 2
    %p58 = por %p56, %p57
    %p59 = scmp.ne.s32.totalorder %s50, %s51
    %p60 = scmp.eq.s32.totalorder %s24, 0
    %p61 = por %p59, %p60
    %p62 = scmp.ne.s32.totalorder %s50, %s51
    %p63 = scmp.eq.s32.totalorder %s25, 2
    %p64 = por %p62, %p63
    %p66 = scmp.ne.s32.totalorder %s51, %s65
    %p67 = scmp.eq.s32.totalorder %s25, 0
    %p68 = por %p66, %p67
    %s70 = sadd.s32 %s69, 1
    %p73 = scmp.eq.s32.totalorder %s19, 2
    %p74 = scmp.ne.s32.totalorder %s69, %s71
    %p75 = scmp.eq.s32.totalorder %s19, 0
    %p76 = por %p74, %p75
    %p77 = scmp.ne.s32.totalorder %s69, %s71
    %p78 = scmp.eq.s32.totalorder %s24, 2
    %p79 = por %p77, %p78
    %p80 = scmp.ne.s32.totalorder %s71, %s72
    %p81 = scmp.eq.s32.totalorder %s24, 0
    %p82 = por %p80, %p81
    %p83 = scmp.ne.s32.totalorder %s71, %s72
    %p84 = scmp.eq.s32.totalorder %s25, 2
    %p85 = por %p83, %p84
    %p87 = scmp.ne.s32.totalorder %s72, %s86
    %p88 = scmp.eq.s32.totalorder %s25, 0
    %p89 = por %p87, %p88
    %s91 = sadd.s32 %s90, 1
    %p94 = scmp.eq.s32.totalorder %s19, 2
    %p95 = scmp.ne.s32.totalorder %s90, %s92
    %p96 = scmp.eq.s32.totalorder %s19, 0
    %p97 = por %p95, %p96
    %p98 = scmp.ne.s32.totalorder %s90, %s92
    %p99 = scmp.eq.s32.totalorder %s24, 2
    %p100 = por %p98, %p99
    %p101 = scmp.ne.s32.totalorder %s92, %s93
    %p102 = scmp.eq.s32.totalorder %s24, 0
    %p103 = por %p101, %p102
    %p104 = scmp.ne.s32.totalorder %s92, %s93
    %p105 = scmp.eq.s32.totalorder %s25, 2
    %p106 = por %p104, %p105
    %p108 = scmp.ne.s32.totalorder %s93, %s107
    %p109 = scmp.eq.s32.totalorder %s25, 0
    %p110 = por %p108, %p109
    %s112 = sadd.s32 %s111, 1
    %p115 = scmp.eq.s32.totalorder %s19, 2
    %p116 = scmp.ne.s32.totalorder %s111, %s113
    %p117 = scmp.eq.s32.totalorder %s19, 0
    %p118 = por %p116, %p117
    %p119 = scmp.ne.s32.totalorder %s111, %s113
    %p120 = scmp.eq.s32.totalorder %s24, 2
    %p121 = por %p119, %p120
    %p122 = scmp.ne.s32.totalorder %s113, %s114
    %p123 = scmp.eq.s32.totalorder %s24, 0
    %p124 = por %p122, %p123
    %p125 = scmp.ne.s32.totalorder %s113, %s114
    %p126 = scmp.eq.s32.totalorder %s25, 2
    %p127 = por %p125, %p126
    %p129 = scmp.ne.s32.totalorder %s114, %s128
    %p130 = scmp.eq.s32.totalorder %s25, 0
    %p131 = por %p129, %p130
    %s132 = ssub.s32 %s19, %s26
    %p133 = scmp.eq.s32.totalorder %s132, 0
    %s135 = sadd.s32 %s134, 1
    %s136 = scalar_select %p133, %s134, %s135
    %p139 = pneg %p133
    %p140 = scmp.eq.s32.totalorder %s19, 2
    %p141 = por %p139, %p140
    %p142 = scmp.ne.s32.totalorder %s134, %s137
    %p143 = scmp.eq.s32.totalorder %s19, 0
    %p144 = por %p142, %p143
    %p145 = scmp.ne.s32.totalorder %s134, %s137
    %p146 = scmp.eq.s32.totalorder %s24, 2
    %p147 = por %p145, %p146
    %p148 = scmp.ne.s32.totalorder %s137, %s138
    %p149 = scmp.eq.s32.totalorder %s24, 0
    %p150 = por %p148, %p149
    %p151 = scmp.ne.s32.totalorder %s137, %s138
    %p152 = scmp.eq.s32.totalorder %s25, 2
    %p153 = por %p151, %p152
    %p155 = scmp.ne.s32.totalorder %s138, %s154
    %p156 = scmp.eq.s32.totalorder %s25, 0
    %p157 = por %p155, %p156
    %s158 = ssub.s32 %s19, %s26
    %p159 = scmp.eq.s32.totalorder %s158, 0
    %s161 = sadd.s32 %s160, 1
    %s162 = scalar_select %p159, %s160, %s161
    %p165 = pneg %p159
    %p166 = scmp.eq.s32.totalorder %s19, 2
    %p167 = por %p165, %p166
    %p168 = scmp.ne.s32.totalorder %s160, %s163
    %p169 = scmp.eq.s32.totalorder %s19, 0
    %p170 = por %p168, %p169
    %p171 = scmp.ne.s32.totalorder %s160, %s163
    %p172 = scmp.eq.s32.totalorder %s24, 2
    %p173 = por %p171, %p172
    %p174 = scmp.ne.s32.totalorder %s163, %s164
    %p175 = scmp.eq.s32.totalorder %s24, 0
    %p176 = por %p174, %p175
    %p177 = scmp.ne.s32.totalorder %s163, %s164
    %p178 = scmp.eq.s32.totalorder %s25, 2
    %p179 = por %p177, %p178
    %p181 = scmp.ne.s32.totalorder %s164, %s180
    %p182 = scmp.eq.s32.totalorder %s25, 0
    %p183 = por %p181, %p182
    %s184 = ssub.s32 %s19, %s26
    %p185 = scmp.eq.s32.totalorder %s184, 0
    %s187 = sadd.s32 %s186, 1
    %s188 = scalar_select %p185, %s186, %s187
    %p191 = pneg %p185
    %p192 = scmp.eq.s32.totalorder %s19, 2
    %p193 = por %p191, %p192
    %p194 = scmp.ne.s32.totalorder %s186, %s189
    %p195 = scmp.eq.s32.totalorder %s19, 0
    %p196 = por %p194, %p195
    %p197 = scmp.ne.s32.totalorder %s186, %s189
    %p198 = scmp.eq.s32.totalorder %s24, 2
    %p199 = por %p197, %p198
    %p200 = scmp.ne.s32.totalorder %s189, %s190
    %p201 = scmp.eq.s32.totalorder %s24, 0
    %p202 = por %p200, %p201
    %p203 = scmp.ne.s32.totalorder %s189, %s190
    %p204 = scmp.eq.s32.totalorder %s25, 2
    %p205 = por %p203, %p204
    %p207 = scmp.ne.s32.totalorder %s190, %s206
    %p208 = scmp.eq.s32.totalorder %s25, 0
    %p209 = por %p207, %p208
    %s210 = ssub.s32 %s19, %s26
    %p211 = scmp.eq.s32.totalorder %s210, 0
    %s213 = sadd.s32 %s212, 1
    %s214 = scalar_select %p211, %s212, %s213
    %p217 = pneg %p211
    %p218 = scmp.eq.s32.totalorder %s19, 2
    %p219 = por %p217, %p218
    %p220 = scmp.ne.s32.totalorder %s212, %s215
    %p221 = scmp.eq.s32.totalorder %s19, 0
    %p222 = por %p220, %p221
    %p223 = scmp.ne.s32.totalorder %s212, %s215
    %p224 = scmp.eq.s32.totalorder %s24, 2
    %p225 = por %p223, %p224
    %p226 = scmp.ne.s32.totalorder %s215, %s216
    %p227 = scmp.eq.s32.totalorder %s24, 0
    %p228 = por %p226, %p227
    %p229 = scmp.ne.s32.totalorder %s215, %s216
    %p230 = scmp.eq.s32.totalorder %s25, 2
    %p231 = por %p229, %p230
    %p233 = scmp.ne.s32.totalorder %s216, %s232
    %p234 = scmp.eq.s32.totalorder %s25, 0
    %p235 = por %p233, %p234
    %s236 = ssub.s32 %s19, %s26
    %p237 = scmp.eq.s32.totalorder %s236, 0
    %s239 = sadd.s32 %s238, 1
    %s240 = scalar_select %p237, %s238, %s239
    %p243 = pneg %p237
    %p244 = scmp.eq.s32.totalorder %s19, 2
    %p245 = por %p243, %p244
    %p246 = scmp.ne.s32.totalorder %s238, %s241
    %p247 = scmp.eq.s32.totalorder %s19, 0
    %p248 = por %p246, %p247
    %p249 = scmp.ne.s32.totalorder %s238, %s241
    %p250 = scmp.eq.s32.totalorder %s24, 2
    %p251 = por %p249, %p250
    %p252 = scmp.ne.s32.totalorder %s241, %s242
    %p253 = scmp.eq.s32.totalorder %s24, 0
    %p254 = por %p252, %p253
    %p255 = scmp.ne.s32.totalorder %s241, %s242
    %p256 = scmp.eq.s32.totalorder %s25, 2
    %p257 = por %p255, %p256
    %p259 = scmp.ne.s32.totalorder %s242, %s258
    %p260 = scmp.eq.s32.totalorder %s25, 0
    %p261 = por %p259, %p260
    %s262 = ssub.s32 %s19, %s26
    %p263 = scmp.eq.s32.totalorder %s262, 0
    %s265 = sadd.s32 %s264, 1
    %s266 = scalar_select %p263, %s264, %s265
    %p269 = pneg %p263
    %p270 = scmp.eq.s32.totalorder %s19, 2
    %p271 = por %p269, %p270
    %p272 = scmp.ne.s32.totalorder %s264, %s267
    %p273 = scmp.eq.s32.totalorder %s19, 0
    %p274 = por %p272, %p273
    %p275 = scmp.ne.s32.totalorder %s264, %s267
    %p276 = scmp.eq.s32.totalorder %s24, 2
    %p277 = por %p275, %p276
    %p278 = scmp.ne.s32.totalorder %s267, %s268
    %p279 = scmp.eq.s32.totalorder %s24, 0
    %p280 = por %p278, %p279
    %p281 = scmp.ne.s32.totalorder %s267, %s268
    %p282 = scmp.eq.s32.totalorder %s25, 2
    %p283 = por %p281, %p282
    %p285 = scmp.ne.s32.totalorder %s268, %s284
    %p286 = scmp.eq.s32.totalorder %s25, 0
    %p287 = por %p285, %p286
    %s288 = ssub.s32 %s19, %s26
    %p289 = scmp.eq.s32.totalorder %s288, 0
    %s291 = sadd.s32 %s290, 1
    %s292 = scalar_select %p289, %s290, %s291
    %p295 = pneg %p289
    %p296 = scmp.eq.s32.totalorder %s19, 2
    %p297 = por %p295, %p296
    %p298 = scmp.ne.s32.totalorder %s290, %s293
    %p299 = scmp.eq.s32.totalorder %s19, 0
    %p300 = por %p298, %p299
    %p301 = scmp.ne.s32.totalorder %s290, %s293
    %p302 = scmp.eq.s32.totalorder %s24, 2
    %p303 = por %p301, %p302
    %p304 = scmp.ne.s32.totalorder %s293, %s294
    %p305 = scmp.eq.s32.totalorder %s24, 0
    %p306 = por %p304, %p305
    %p307 = scmp.ne.s32.totalorder %s293, %s294
    %p308 = scmp.eq.s32.totalorder %s25, 2
    %p309 = por %p307, %p308
    %p311 = scmp.ne.s32.totalorder %s294, %s310
    %p312 = scmp.eq.s32.totalorder %s25, 0
    %p313 = por %p311, %p312
    %s314 = ssub.s32 %s19, %s26
    %p315 = scmp.eq.s32.totalorder %s314, 0
    %s317 = sadd.s32 %s316, 1
    %s318 = scalar_select %p315, %s316, %s317
    %p321 = pneg %p315
    %p322 = scmp.eq.s32.totalorder %s19, 2
    %p323 = por %p321, %p322
    %p324 = scmp.ne.s32.totalorder %s316, %s319
    %p325 = scmp.eq.s32.totalorder %s19, 0
    %p326 = por %p324, %p325
    %p327 = scmp.ne.s32.totalorder %s316, %s319
    %p328 = scmp.eq.s32.totalorder %s24, 2
    %p329 = por %p327, %p328
    %p330 = scmp.ne.s32.totalorder %s319, %s320
    %p331 = scmp.eq.s32.totalorder %s24, 0
    %p332 = por %p330, %p331
    %p333 = scmp.ne.s32.totalorder %s319, %s320
    %p334 = scmp.eq.s32.totalorder %s25, 2
    %p335 = por %p333, %p334
    %p337 = scmp.ne.s32.totalorder %s320, %s336
    %p338 = scmp.eq.s32.totalorder %s25, 0
    %p339 = por %p337, %p338
    %p340 = scmp.le.s32.totalorder 1, %s19
    %p341 = scmp.lt.s32.totalorder %s19, 4
    %p342 = pnand %p340, %p341
    %p343 = pneg %p342
    // Predicated region
    $region9: #{hencoder_forward.1} parent=5 // pred_check
      _
    $region10: #{hencoder_forward.1} parent=5 // pred_check_branch
      %345 = sbr.rel (%p342) target = $region12
    $region11: #{hencoder_forward.1} parent=5 // pred_region
      %s346 = ssub.s32 %s19, 1
      // Predicated region
      $region13: #{hencoder_forward.1} parent=11 // pred_check
        %p347 = pneg %p40
      $region14: #{hencoder_forward.1} parent=11 // pred_check_branch
        %349 = sbr.rel (%p347) target = $region16
      $region15: #{hencoder_forward.1} parent=11 // pred_region
        _
      $region16: #{hencoder_forward.1} parent=11 // pred_fallthru
        _
      // Predicated region
      $region17: #{hencoder_forward.1} parent=11 // pred_check
        %p350 = pneg %p61
      $region18: #{hencoder_forward.1} parent=11 // pred_check_branch
        %352 = sbr.rel (%p350) target = $region20
      $region19: #{hencoder_forward.1} parent=11 // pred_region
        _
      $region20: #{hencoder_forward.1} parent=11 // pred_fallthru
        _
      // Predicated region
      $region21: #{hencoder_forward.1} parent=11 // pred_check
        %p353 = pneg %p82
      $region22: #{hencoder_forward.1} parent=11 // pred_check_branch
        %355 = sbr.rel (%p353) target = $region24
      $region23: #{hencoder_forward.1} parent=11 // pred_region
        _
      $region24: #{hencoder_forward.1} parent=11 // pred_fallthru
        _
      // Predicated region
      $region25: #{hencoder_forward.1} parent=11 // pred_check
        %p356 = pneg %p103
      $region26: #{hencoder_forward.1} parent=11 // pred_check_branch
        %358 = sbr.rel (%p356) target = $region28
      $region27: #{hencoder_forward.1} parent=11 // pred_region
        _
      $region28: #{hencoder_forward.1} parent=11 // pred_fallthru
        _
      // Predicated region
      $region29: #{hencoder_forward.1} parent=11 // pred_check
        %p359 = pneg %p124
      $region30: #{hencoder_forward.1} parent=11 // pred_check_branch
        %361 = sbr.rel (%p359) target = $region32
      $region31: #{hencoder_forward.1} parent=11 // pred_region
        _
      $region32: #{hencoder_forward.1} parent=11 // pred_fallthru
        _
    $region12: #{hencoder_forward.1} parent=5 // pred_fallthru
      _
    %p362 = scmp.lt.s32.totalorder %s19, 3
    // Predicated region
    $region33: #{hencoder_forward.1} parent=5 // pred_check
      %p363 = pneg %p362
    $region34: #{hencoder_forward.1} parent=5 // pred_check_branch
      %365 = sbr.rel (%p363) target = $region36
    $region35: #{hencoder_forward.1} parent=5 // pred_region
      // Predicated region
      $region37: #{hencoder_forward.1} parent=35 // pred_check
        %p366 = pneg %p144
      $region38: #{hencoder_forward.1} parent=35 // pred_check_branch
        %368 = sbr.rel (%p366) target = $region40
      $region39: #{hencoder_forward.1} parent=35 // pred_region
        %p369 = scmp.lt.s32.totalorder %s19, 2
        %s370 = scalar_select %p369, %s19, 2
        %s371 = smul.addr %s370, 16
        %s372 = smul.addr %s371, 8
        %s373 = scalar_lea.vmem %s5, %s372
      $region40: #{hencoder_forward.1} parent=35 // pred_fallthru
        _
      // Predicated region
      $region41: #{hencoder_forward.1} parent=35 // pred_check
        %p374 = pneg %p170
      $region42: #{hencoder_forward.1} parent=35 // pred_check_branch
        %376 = sbr.rel (%p374) target = $region44
      $region43: #{hencoder_forward.1} parent=35 // pred_region
        %p377 = scmp.lt.s32.totalorder %s19, 2
        %s378 = scalar_select %p377, %s19, 2
        %s379 = scalar_lea.vmem %s6, %s378
      $region44: #{hencoder_forward.1} parent=35 // pred_fallthru
        _
      // Predicated region
      $region45: #{hencoder_forward.1} parent=35 // pred_check
        %p380 = pneg %p196
      $region46: #{hencoder_forward.1} parent=35 // pred_check_branch
        %382 = sbr.rel (%p380) target = $region48
      $region47: #{hencoder_forward.1} parent=35 // pred_region
        %p383 = scmp.lt.s32.totalorder %s19, 2
        %s384 = scalar_select %p383, %s19, 2
        %s385 = smul.addr %s384, 16
        %s386 = smul.addr %s385, 8
        %s387 = scalar_lea.vmem %s7, %s386
      $region48: #{hencoder_forward.1} parent=35 // pred_fallthru
        _
      // Predicated region
      $region49: #{hencoder_forward.1} parent=35 // pred_check
        %p388 = pneg %p222
      $region50: #{hencoder_forward.1} parent=35 // pred_check_branch
        %390 = sbr.rel (%p388) target = $region52
      $region51: #{hencoder_forward.1} parent=35 // pred_region
        %p391 = scmp.lt.s32.totalorder %s19, 2
        %s392 = scalar_select %p391, %s19, 2
        %s393 = scalar_lea.vmem %s8, %s392
      $region52: #{hencoder_forward.1} parent=35 // pred_fallthru
        _
      // Predicated region
      $region53: #{hencoder_forward.1} parent=35 // pred_check
        %p394 = pneg %p248
      $region54: #{hencoder_forward.1} parent=35 // pred_check_branch
        %396 = sbr.rel (%p394) target = $region56
      $region55: #{hencoder_forward.1} parent=35 // pred_region
        %p397 = scmp.lt.s32.totalorder %s19, 2
        %s398 = scalar_select %p397, %s19, 2
        %s399 = scalar_lea.vmem %s9, %s398
      $region56: #{hencoder_forward.1} parent=35 // pred_fallthru
        _
      // Predicated region
      $region57: #{hencoder_forward.1} parent=35 // pred_check
        %p400 = pneg %p274
      $region58: #{hencoder_forward.1} parent=35 // pred_check_branch
        %402 = sbr.rel (%p400) target = $region60
      $region59: #{hencoder_forward.1} parent=35 // pred_region
        %p403 = scmp.lt.s32.totalorder %s19, 2
        %s404 = scalar_select %p403, %s19, 2
        %s405 = scalar_lea.vmem %s10, %s404
      $region60: #{hencoder_forward.1} parent=35 // pred_fallthru
        _
    $region36: #{hencoder_forward.1} parent=5 // pred_fallthru
      _
    %p406 = scmp.le.s32.totalorder 1, %s19
    %p407 = scmp.lt.s32.totalorder %s19, 4
    %p408 = pnand %p406, %p407
    %p409 = pneg %p408
    // Predicated region
    $region61: #{hencoder_forward.1} parent=5 // pred_check
      _
    $region62: #{hencoder_forward.1} parent=5 // pred_check_branch
      %411 = sbr.rel (%p408) target = $region64
    $region63: #{hencoder_forward.1} parent=5 // pred_region
      %s412 = ssub.s32 %s19, 1
      %p413 = pneg %p40
      %p414 = pneg %p37
      %p415 = pneg %p61
      %p416 = pneg %p58
      %p417 = pneg %p82
      %p418 = pneg %p79
      %p419 = pneg %p103
      %p420 = pneg %p100
      %p421 = pneg %p124
      %p422 = pneg %p121
      %p423 = scmp.lt.s32.totalorder %s24, 2
      %s424 = scalar_select %p423, %s24, 2
      %s425 = smul.addr %s424, 16
      %s426 = smul.addr %s425, 8
      %s427 = scalar_lea.vmem %s5, %s426
      %p428 = pneg %p150
      %p429 = pneg %p147
      %p430 = scmp.lt.s32.totalorder %s24, 2
      %s431 = scalar_select %p430, %s24, 2
      %s432 = scalar_lea.vmem %s6, %s431
      %p433 = pneg %p176
      %p434 = pneg %p173
      %p435 = scmp.lt.s32.totalorder %s24, 2
      %s436 = scalar_select %p435, %s24, 2
      %s437 = smul.addr %s436, 16
      %s438 = smul.addr %s437, 8
      %s439 = scalar_lea.vmem %s7, %s438
      %p440 = pneg %p202
      %p441 = pneg %p199
      %p442 = scmp.lt.s32.totalorder %s24, 2
      %s443 = scalar_select %p442, %s24, 2
      %s444 = scalar_lea.vmem %s8, %s443
      %p445 = pneg %p228
      %p446 = pneg %p225
      %p447 = scmp.lt.s32.totalorder %s24, 2
      %s448 = scalar_select %p447, %s24, 2
      %s449 = scalar_lea.vmem %s9, %s448
      %p450 = pneg %p254
      %p451 = pneg %p251
      %p452 = scmp.lt.s32.totalorder %s24, 2
      %s453 = scalar_select %p452, %s24, 2
      %s454 = scalar_lea.vmem %s10, %s453
      %p455 = pneg %p280
      %p456 = pneg %p277
      %p457 = pneg %p306
      %p458 = pneg %p303
      %p459 = scmp.lt.s32.totalorder %s24, 2
      %s460 = scalar_select %p459, %s24, 2
      %s461 = smul.addr %s460, 48
      %s462 = smul.addr %s461, 8
      %s463 = scalar_lea.vmem %s11, %s462
      %p464 = pneg %p332
      %p465 = pneg %p329
      %p466 = scmp.lt.s32.totalorder %s24, 2
      %s467 = scalar_select %p466, %s24, 2
      %s468 = smul.addr %s467, 8
      %s469 = scalar_lea.vmem %s12, %s468
      %p470 = scmp.lt.s32.totalorder %s24, 2
      %s471 = scalar_select %p470, %s24, 2
      %s472 = smul.addr %s471, 16
      %s473 = smul.addr %s472, 8
      %s474 = scalar_lea.vmem %s5, %s473
      %p475 = scmp.lt.s32.totalorder %s24, 2
      %s476 = scalar_select %p475, %s24, 2
      %s477 = scalar_lea.vmem %s6, %s476
      %p478 = scmp.lt.s32.totalorder %s24, 2
      %s479 = scalar_select %p478, %s24, 2
      %s480 = smul.addr %s479, 16
      %s481 = smul.addr %s480, 8
      %s482 = scalar_lea.vmem %s7, %s481
      %p483 = scmp.lt.s32.totalorder %s24, 2
      %s484 = scalar_select %p483, %s24, 2
      %s485 = scalar_lea.vmem %s8, %s484
      %p486 = scmp.lt.s32.totalorder %s24, 2
      %s487 = scalar_select %p486, %s24, 2
      %s488 = scalar_lea.vmem %s9, %s487
      %p489 = scmp.lt.s32.totalorder %s24, 2
      %s490 = scalar_select %p489, %s24, 2
      %s491 = scalar_lea.vmem %s10, %s490
      %p492 = scmp.lt.s32.totalorder %s24, 2
      %s493 = scalar_select %p492, %s24, 2
      %s494 = smul.addr %s493, 48
      %s495 = smul.addr %s494, 8
      %s496 = scalar_lea.vmem %s11, %s495
      %p497 = scmp.lt.s32.totalorder %s24, 2
      %s498 = scalar_select %p497, %s24, 2
      %s499 = smul.addr %s498, 8
      %s500 = scalar_lea.vmem %s12, %s499
      %p502 = scmp.eq.s32.totalorder %s24, 0
      // Predicated region
      $region65: #{hencoder_forward.1} parent=63 // pred_check
        %p503 = pneg %p502
      $region66: #{hencoder_forward.1} parent=63 // pred_check_branch
        %505 = sbr.rel (%p503) target = $region68
      $region67: #{hencoder_forward.1} parent=63 // pred_region
        %v506 = vld [vmem:[%s1] sm:$0xf]
        %v507 = vld [vmem:[%s1 + $0x4] sm:$0xf]
        %v508 = vld [vmem:[%s1 + $0x8] sm:$0xf]
        %v509 = vld [vmem:[%s1 + $0xc] sm:$0xf]
        %v510 = vld [vmem:[%s1 + $0x10] sm:$0xf]
        %v511 = vld [vmem:[%s1 + $0x14] sm:$0xf]
        %v512 = vld [vmem:[%s1 + $0x18] sm:$0xf]
        %v513 = vld [vmem:[%s1 + $0x1c] sm:$0xf]
        %v514 = vld [vmem:[%s1 + $0x20] sm:$0xf]
        %v515 = vld [vmem:[%s1 + $0x24] sm:$0xf]
        %v516 = vld [vmem:[%s1 + $0x28] sm:$0xf]
        %v517 = vld [vmem:[%s1 + $0x2c] sm:$0xf]
        %v518 = vld [vmem:[%s1 + $0x30] sm:$0xf]
        %v519 = vld [vmem:[%s1 + $0x34] sm:$0xf]
        %v520 = vld [vmem:[%s1 + $0x38] sm:$0xf]
        %v521 = vld [vmem:[%s1 + $0x3c] sm:$0xf]
        %v522 = vld [vmem:[%s1 + $0x40] sm:$0xf]
        %v523 = vld [vmem:[%s1 + $0x44] sm:$0xf]
        %v524 = vld [vmem:[%s1 + $0x48] sm:$0xf]
        %v525 = vld [vmem:[%s1 + $0x4c] sm:$0xf]
        %v526 = vld [vmem:[%s1 + $0x50] sm:$0xf]
        %v527 = vld [vmem:[%s1 + $0x54] sm:$0xf]
        %v528 = vld [vmem:[%s1 + $0x58] sm:$0xf]
        %v529 = vld [vmem:[%s1 + $0x5c] sm:$0xf]
        %v530 = vld [vmem:[%s1 + $0x60] sm:$0xf]
        %v531 = vld [vmem:[%s1 + $0x64] sm:$0xf]
        %v532 = vld [vmem:[%s1 + $0x68] sm:$0xf]
        %v533 = vld [vmem:[%s1 + $0x6c] sm:$0xf]
        %v534 = vld [vmem:[%s1 + $0x70] sm:$0xf]
        %v535 = vld [vmem:[%s1 + $0x74] sm:$0xf]
        %v536 = vld [vmem:[%s1 + $0x78] sm:$0xf]
        %v537 = vld [vmem:[%s1 + $0x7c] sm:$0xf]
        %v538 = vld [vmem:[%s1 + $0x80] sm:$0xf]
        %v539 = vld [vmem:[%s1 + $0x84] sm:$0xf]
        %v540 = vld [vmem:[%s1 + $0x88] sm:$0xf]
        %v541 = vld [vmem:[%s1 + $0x8c] sm:$0xf]
        %v542 = vld [vmem:[%s1 + $0x90] sm:$0xf]
        %v543 = vld [vmem:[%s1 + $0x94] sm:$0xf]
        %v544 = vld [vmem:[%s1 + $0x98] sm:$0xf]
        %v545 = vld [vmem:[%s1 + $0x9c] sm:$0xf]
        %v546 = vld [vmem:[%s1 + $0xa0] sm:$0xf]
        %v547 = vld [vmem:[%s1 + $0xa4] sm:$0xf]
        %v548 = vld [vmem:[%s1 + $0xa8] sm:$0xf]
        %v549 = vld [vmem:[%s1 + $0xac] sm:$0xf]
        %v550 = vld [vmem:[%s1 + $0xb0] sm:$0xf]
        %v551 = vld [vmem:[%s1 + $0xb4] sm:$0xf]
        %v552 = vld [vmem:[%s1 + $0xb8] sm:$0xf]
        %v553 = vld [vmem:[%s1 + $0xbc] sm:$0xf]
        %554 = vst [vmem:[#allocation2] sm:$0xf] %v506
        %555 = vst [vmem:[#allocation2 + $0x4] sm:$0xf] %v507
        %556 = vst [vmem:[#allocation2 + $0x8] sm:$0xf] %v508
        %557 = vst [vmem:[#allocation2 + $0xc] sm:$0xf] %v509
        %558 = vst [vmem:[#allocation2 + $0x10] sm:$0xf] %v510
        %559 = vst [vmem:[#allocation2 + $0x14] sm:$0xf] %v511
        %560 = vst [vmem:[#allocation2 + $0x18] sm:$0xf] %v512
        %561 = vst [vmem:[#allocation2 + $0x1c] sm:$0xf] %v513
        %562 = vst [vmem:[#allocation2 + $0x20] sm:$0xf] %v514
        %563 = vst [vmem:[#allocation2 + $0x24] sm:$0xf] %v515
        %564 = vst [vmem:[#allocation2 + $0x28] sm:$0xf] %v516
        %565 = vst [vmem:[#allocation2 + $0x2c] sm:$0xf] %v517
        %566 = vst [vmem:[#allocation2 + $0x30] sm:$0xf] %v518
        %567 = vst [vmem:[#allocation2 + $0x34] sm:$0xf] %v519
        %568 = vst [vmem:[#allocation2 + $0x38] sm:$0xf] %v520
        %569 = vst [vmem:[#allocation2 + $0x3c] sm:$0xf] %v521
        %570 = vst [vmem:[#allocation2 + $0x40] sm:$0xf] %v522
        %571 = vst [vmem:[#allocation2 + $0x44] sm:$0xf] %v523
        %572 = vst [vmem:[#allocation2 + $0x48] sm:$0xf] %v524
        %573 = vst [vmem:[#allocation2 + $0x4c] sm:$0xf] %v525
        %574 = vst [vmem:[#allocation2 + $0x50] sm:$0xf] %v526
        %575 = vst [vmem:[#allocation2 + $0x54] sm:$0xf] %v527
        %576 = vst [vmem:[#allocation2 + $0x58] sm:$0xf] %v528
        %577 = vst [vmem:[#allocation2 + $0x5c] sm:$0xf] %v529
        %578 = vst [vmem:[#allocation2 + $0x60] sm:$0xf] %v530
        %579 = vst [vmem:[#allocation2 + $0x64] sm:$0xf] %v531
        %580 = vst [vmem:[#allocation2 + $0x68] sm:$0xf] %v532
        %581 = vst [vmem:[#allocation2 + $0x6c] sm:$0xf] %v533
        %582 = vst [vmem:[#allocation2 + $0x70] sm:$0xf] %v534
        %583 = vst [vmem:[#allocation2 + $0x74] sm:$0xf] %v535
        %584 = vst [vmem:[#allocation2 + $0x78] sm:$0xf] %v536
        %585 = vst [vmem:[#allocation2 + $0x7c] sm:$0xf] %v537
        %586 = vst [vmem:[#allocation2 + $0x80] sm:$0xf] %v538
        %587 = vst [vmem:[#allocation2 + $0x84] sm:$0xf] %v539
        %588 = vst [vmem:[#allocation2 + $0x88] sm:$0xf] %v540
        %589 = vst [vmem:[#allocation2 + $0x8c] sm:$0xf] %v541
        %590 = vst [vmem:[#allocation2 + $0x90] sm:$0xf] %v542
        %591 = vst [vmem:[#allocation2 + $0x94] sm:$0xf] %v543
        %592 = vst [vmem:[#allocation2 + $0x98] sm:$0xf] %v544
        %593 = vst [vmem:[#allocation2 + $0x9c] sm:$0xf] %v545
        %594 = vst [vmem:[#allocation2 + $0xa0] sm:$0xf] %v546
        %595 = vst [vmem:[#allocation2 + $0xa4] sm:$0xf] %v547
        %596 = vst [vmem:[#allocation2 + $0xa8] sm:$0xf] %v548
        %597 = vst [vmem:[#allocation2 + $0xac] sm:$0xf] %v549
        %598 = vst [vmem:[#allocation2 + $0xb0] sm:$0xf] %v550
        %599 = vst [vmem:[#allocation2 + $0xb4] sm:$0xf] %v551
        %600 = vst [vmem:[#allocation2 + $0xb8] sm:$0xf] %v552
        %601 = vst [vmem:[#allocation2 + $0xbc] sm:$0xf] %v553
      $region68: #{hencoder_forward.1} parent=63 // pred_fallthru
        _
      %v602 = vld [vmem:[%s2] sm:$0xff]
      %v603 = vld [vmem:[%s2 + $0x8] sm:$0xff]
      %v604 = vld [vmem:[%s2 + $0x10] sm:$0xff]
      %v605 = vld [vmem:[%s2 + $0x18] sm:$0xff]
      %v606 = vld [vmem:[%s2 + $0x20] sm:$0xff]
      %v607 = vld [vmem:[%s2 + $0x28] sm:$0xff]
      %v608 = vld [vmem:[%s2 + $0x30] sm:$0xff]
      %v609 = vld [vmem:[%s2 + $0x38] sm:$0xff]
      %v610 = vld [vmem:[%s2 + $0x40] sm:$0xff]
      %v611 = vld [vmem:[%s2 + $0x48] sm:$0xff]
      %v612 = vld [vmem:[%s2 + $0x50] sm:$0xff]
      %v613 = vld [vmem:[%s2 + $0x58] sm:$0xff]
      %v614 = vld [vmem:[%s2 + $0x60] sm:$0xff]
      %v615 = vld [vmem:[%s2 + $0x68] sm:$0xff]
      %v616 = vld [vmem:[%s2 + $0x70] sm:$0xff]
      %v617 = vld [vmem:[%s2 + $0x78] sm:$0xff]
      %v618 = vld [vmem:[%s2 + $0x80] sm:$0xff]
      %v619 = vld [vmem:[%s2 + $0x88] sm:$0xff]
      %v620 = vld [vmem:[%s2 + $0x90] sm:$0xff]
      %v621 = vld [vmem:[%s2 + $0x98] sm:$0xff]
      %v622 = vld [vmem:[%s2 + $0xa0] sm:$0xff]
      %v623 = vld [vmem:[%s2 + $0xa8] sm:$0xff]
      %v624 = vld [vmem:[%s2 + $0xb0] sm:$0xff]
      %v625 = vld [vmem:[%s2 + $0xb8] sm:$0xff]
      %v626 = vld [vmem:[%s2 + $0xc0] sm:$0xff]
      %v627 = vld [vmem:[%s2 + $0xc8] sm:$0xff]
      %v628 = vld [vmem:[%s2 + $0xd0] sm:$0xff]
      %v629 = vld [vmem:[%s2 + $0xd8] sm:$0xff]
      %v630 = vld [vmem:[%s2 + $0xe0] sm:$0xff]
      %v631 = vld [vmem:[%s2 + $0xe8] sm:$0xff]
      %v632 = vld [vmem:[%s2 + $0xf0] sm:$0xff]
      %v633 = vld [vmem:[%s2 + $0xf8] sm:$0xff]
      %v634 = vld [vmem:[%s2 + $0x100] sm:$0xff]
      %v635 = vld [vmem:[%s2 + $0x108] sm:$0xff]
      %v636 = vld [vmem:[%s2 + $0x110] sm:$0xff]
      %v637 = vld [vmem:[%s2 + $0x118] sm:$0xff]
      %v638 = vld [vmem:[%s2 + $0x120] sm:$0xff]
      %v639 = vld [vmem:[%s2 + $0x128] sm:$0xff]
      %v640 = vld [vmem:[%s2 + $0x130] sm:$0xff]
      %v641 = vld [vmem:[%s2 + $0x138] sm:$0xff]
      %v642 = vld [vmem:[%s2 + $0x140] sm:$0xff]
      %v643 = vld [vmem:[%s2 + $0x148] sm:$0xff]
      %v644 = vld [vmem:[%s2 + $0x150] sm:$0xff]
      %v645 = vld [vmem:[%s2 + $0x158] sm:$0xff]
      %v646 = vld [vmem:[%s2 + $0x160] sm:$0xff]
      %v647 = vld [vmem:[%s2 + $0x168] sm:$0xff]
      %v648 = vld [vmem:[%s2 + $0x170] sm:$0xff]
      %v649 = vld [vmem:[%s2 + $0x178] sm:$0xff]
      %v650 = vld [vmem:[%s0] sm:$0xff]
      %v651 = vld [vmem:[%s0 + $0x8] sm:$0xf]
      %v652 = vld [vmem:[%s0 + $0xc] sm:$0xff]
      %v653 = vld [vmem:[%s0 + $0x14] sm:$0xf]
      %v654 = vld [vmem:[%s0 + $0x18] sm:$0xff]
      %v655 = vld [vmem:[%s0 + $0x20] sm:$0xf]
      %v656 = vld [vmem:[%s0 + $0x24] sm:$0xff]
      %v657 = vld [vmem:[%s0 + $0x2c] sm:$0xf]
      %v658 = vld [vmem:[%s0 + $0x30] sm:$0xff]
      %v659 = vld [vmem:[%s0 + $0x38] sm:$0xf]
      %v660 = vld [vmem:[%s0 + $0x3c] sm:$0xff]
      %v661 = vld [vmem:[%s0 + $0x44] sm:$0xf]
      %v662 = vld [vmem:[%s0 + $0x48] sm:$0xff]
      %v663 = vld [vmem:[%s0 + $0x50] sm:$0xf]
      %v664 = vld [vmem:[%s0 + $0x54] sm:$0xff]
      %v665 = vld [vmem:[%s0 + $0x5c] sm:$0xf]
      %v666 = vld [vmem:[%s0 + $0x60] sm:$0xff]
      %v667 = vld [vmem:[%s0 + $0x68] sm:$0xf]
      %v668 = vld [vmem:[%s0 + $0x6c] sm:$0xff]
      %v669 = vld [vmem:[%s0 + $0x74] sm:$0xf]
      %v670 = vld [vmem:[%s0 + $0x78] sm:$0xff]
      %v671 = vld [vmem:[%s0 + $0x80] sm:$0xf]
      %v672 = vld [vmem:[%s0 + $0x84] sm:$0xff]
      %v673 = vld [vmem:[%s0 + $0x8c] sm:$0xf]
      %v674 = vld [vmem:[%s0 + $0x90] sm:$0xff]
      %v675 = vld [vmem:[%s0 + $0x98] sm:$0xf]
      %v676 = vld [vmem:[%s0 + $0x9c] sm:$0xff]
      %v677 = vld [vmem:[%s0 + $0xa4] sm:$0xf]
      %v678 = vld [vmem:[%s0 + $0xa8] sm:$0xff]
      %v679 = vld [vmem:[%s0 + $0xb0] sm:$0xf]
      %v680 = vld [vmem:[%s0 + $0xb4] sm:$0xff]
      %v681 = vld [vmem:[%s0 + $0xbc] sm:$0xf]
      %v682 = vld [vmem:[%s0 + $0xc0] sm:$0xff]
      %v683 = vld [vmem:[%s0 + $0xc8] sm:$0xf]
      %v684 = vld [vmem:[%s0 + $0xcc] sm:$0xff]
      %v685 = vld [vmem:[%s0 + $0xd4] sm:$0xf]
      %v686 = vld [vmem:[%s0 + $0xd8] sm:$0xff]
      %v687 = vld [vmem:[%s0 + $0xe0] sm:$0xf]
      %v688 = vld [vmem:[%s0 + $0xe4] sm:$0xff]
      %v689 = vld [vmem:[%s0 + $0xec] sm:$0xf]
      %v690 = vld [vmem:[%s0 + $0xf0] sm:$0xff]
      %v691 = vld [vmem:[%s0 + $0xf8] sm:$0xf]
      %v692 = vld [vmem:[%s0 + $0xfc] sm:$0xff]
      %v693 = vld [vmem:[%s0 + $0x104] sm:$0xf]
      %v694 = vld [vmem:[%s0 + $0x108] sm:$0xff]
      %v695 = vld [vmem:[%s0 + $0x110] sm:$0xf]
      %v696 = vld [vmem:[%s0 + $0x114] sm:$0xff]
      %v697 = vld [vmem:[%s0 + $0x11c] sm:$0xf]
      %v698 = vld [vmem:[%s0 + $0x120] sm:$0xff]
      %v699 = vld [vmem:[%s0 + $0x128] sm:$0xf]
      %v700 = vld [vmem:[%s0 + $0x12c] sm:$0xff]
      %v701 = vld [vmem:[%s0 + $0x134] sm:$0xf]
      %v702 = vld [vmem:[%s0 + $0x138] sm:$0xff]
      %v703 = vld [vmem:[%s0 + $0x140] sm:$0xf]
      %v704 = vld [vmem:[%s0 + $0x144] sm:$0xff]
      %v705 = vld [vmem:[%s0 + $0x14c] sm:$0xf]
      %v706 = vld [vmem:[%s0 + $0x150] sm:$0xff]
      %v707 = vld [vmem:[%s0 + $0x158] sm:$0xf]
      %v708 = vld [vmem:[%s0 + $0x15c] sm:$0xff]
      %v709 = vld [vmem:[%s0 + $0x164] sm:$0xf]
      %v710 = vld [vmem:[%s0 + $0x168] sm:$0xff]
      %v711 = vld [vmem:[%s0 + $0x170] sm:$0xf]
      %v712 = vld [vmem:[%s0 + $0x174] sm:$0xff]
      %v713 = vld [vmem:[%s0 + $0x17c] sm:$0xf]
      %v714 = vld [vmem:[%s0 + $0x180] sm:$0xff]
      %v715 = vld [vmem:[%s0 + $0x188] sm:$0xf]
      %v716 = vld [vmem:[%s0 + $0x18c] sm:$0xff]
      %v717 = vld [vmem:[%s0 + $0x194] sm:$0xf]
      %v718 = vld [vmem:[%s0 + $0x198] sm:$0xff]
      %v719 = vld [vmem:[%s0 + $0x1a0] sm:$0xf]
      %v720 = vld [vmem:[%s0 + $0x1a4] sm:$0xff]
      %v721 = vld [vmem:[%s0 + $0x1ac] sm:$0xf]
      %v722 = vld [vmem:[%s0 + $0x1b0] sm:$0xff]
      %v723 = vld [vmem:[%s0 + $0x1b8] sm:$0xf]
      %v724 = vld [vmem:[%s0 + $0x1bc] sm:$0xff]
      %v725 = vld [vmem:[%s0 + $0x1c4] sm:$0xf]
      %v726 = vld [vmem:[%s0 + $0x1c8] sm:$0xff]
      %v727 = vld [vmem:[%s0 + $0x1d0] sm:$0xf]
      %v728 = vld [vmem:[%s0 + $0x1d4] sm:$0xff]
      %v729 = vld [vmem:[%s0 + $0x1dc] sm:$0xf]
      %v730 = vld [vmem:[%s0 + $0x1e0] sm:$0xff]
      %v731 = vld [vmem:[%s0 + $0x1e8] sm:$0xf]
      %v732 = vld [vmem:[%s0 + $0x1ec] sm:$0xff]
      %v733 = vld [vmem:[%s0 + $0x1f4] sm:$0xf]
      %v734 = vld [vmem:[%s0 + $0x1f8] sm:$0xff]
      %v735 = vld [vmem:[%s0 + $0x200] sm:$0xf]
      %v736 = vld [vmem:[%s0 + $0x204] sm:$0xff]
      %v737 = vld [vmem:[%s0 + $0x20c] sm:$0xf]
      %v738 = vld [vmem:[%s0 + $0x210] sm:$0xff]
      %v739 = vld [vmem:[%s0 + $0x218] sm:$0xf]
      %v740 = vld [vmem:[%s0 + $0x21c] sm:$0xff]
      %v741 = vld [vmem:[%s0 + $0x224] sm:$0xf]
      %v742 = vld [vmem:[%s0 + $0x228] sm:$0xff]
      %v743 = vld [vmem:[%s0 + $0x230] sm:$0xf]
      %v744 = vld [vmem:[%s0 + $0x234] sm:$0xff]
      %v745 = vld [vmem:[%s0 + $0x23c] sm:$0xf]
      %v746 = vld [vmem:[#allocation2] sm:$0xf]
      %v747 = vld [vmem:[#allocation2 + $0x4] sm:$0xf]
      %v748 = vld [vmem:[#allocation2 + $0x8] sm:$0xf]
      %v749 = vld [vmem:[#allocation2 + $0xc] sm:$0xf]
      %v750 = vld [vmem:[#allocation2 + $0x10] sm:$0xf]
      %v751 = vld [vmem:[#allocation2 + $0x14] sm:$0xf]
      %v752 = vld [vmem:[#allocation2 + $0x18] sm:$0xf]
      %v753 = vld [vmem:[#allocation2 + $0x1c] sm:$0xf]
      %v754 = vld [vmem:[#allocation2 + $0x20] sm:$0xf]
      %v755 = vld [vmem:[#allocation2 + $0x24] sm:$0xf]
      %v756 = vld [vmem:[#allocation2 + $0x28] sm:$0xf]
      %v757 = vld [vmem:[#allocation2 + $0x2c] sm:$0xf]
      %v758 = vld [vmem:[#allocation2 + $0x30] sm:$0xf]
      %v759 = vld [vmem:[#allocation2 + $0x34] sm:$0xf]
      %v760 = vld [vmem:[#allocation2 + $0x38] sm:$0xf]
      %v761 = vld [vmem:[#allocation2 + $0x3c] sm:$0xf]
      %v762 = vld [vmem:[#allocation2 + $0x40] sm:$0xf]
      %v763 = vld [vmem:[#allocation2 + $0x44] sm:$0xf]
      %v764 = vld [vmem:[#allocation2 + $0x48] sm:$0xf]
      %v765 = vld [vmem:[#allocation2 + $0x4c] sm:$0xf]
      %v766 = vld [vmem:[#allocation2 + $0x50] sm:$0xf]
      %v767 = vld [vmem:[#allocation2 + $0x54] sm:$0xf]
      %v768 = vld [vmem:[#allocation2 + $0x58] sm:$0xf]
      %v769 = vld [vmem:[#allocation2 + $0x5c] sm:$0xf]
      %v770 = vld [vmem:[#allocation2 + $0x60] sm:$0xf]
      %v771 = vld [vmem:[#allocation2 + $0x64] sm:$0xf]
      %v772 = vld [vmem:[#allocation2 + $0x68] sm:$0xf]
      %v773 = vld [vmem:[#allocation2 + $0x6c] sm:$0xf]
      %v774 = vld [vmem:[#allocation2 + $0x70] sm:$0xf]
      %v775 = vld [vmem:[#allocation2 + $0x74] sm:$0xf]
      %v776 = vld [vmem:[#allocation2 + $0x78] sm:$0xf]
      %v777 = vld [vmem:[#allocation2 + $0x7c] sm:$0xf]
      %v778 = vld [vmem:[#allocation2 + $0x80] sm:$0xf]
      %v779 = vld [vmem:[#allocation2 + $0x84] sm:$0xf]
      %v780 = vld [vmem:[#allocation2 + $0x88] sm:$0xf]
      %v781 = vld [vmem:[#allocation2 + $0x8c] sm:$0xf]
      %v782 = vld [vmem:[#allocation2 + $0x90] sm:$0xf]
      %v783 = vld [vmem:[#allocation2 + $0x94] sm:$0xf]
      %v784 = vld [vmem:[#allocation2 + $0x98] sm:$0xf]
      %v785 = vld [vmem:[#allocation2 + $0x9c] sm:$0xf]
      %v786 = vld [vmem:[#allocation2 + $0xa0] sm:$0xf]
      %v787 = vld [vmem:[#allocation2 + $0xa4] sm:$0xf]
      %v788 = vld [vmem:[#allocation2 + $0xa8] sm:$0xf]
      %v789 = vld [vmem:[#allocation2 + $0xac] sm:$0xf]
      %v790 = vld [vmem:[#allocation2 + $0xb0] sm:$0xf]
      %v791 = vld [vmem:[#allocation2 + $0xb4] sm:$0xf]
      %v792 = vld [vmem:[#allocation2 + $0xb8] sm:$0xf]
      %v793 = vld [vmem:[#allocation2 + $0xbc] sm:$0xf]
      %v890 = vunpack.c.l.b16 %v650
      %v891 = vunpack.c.h.b16 %v650
      %v892 = vunpack.c.l.b16 %v651
      %v893 = vunpack.c.l.b16 %v652
      %v894 = vunpack.c.h.b16 %v652
      %v895 = vunpack.c.l.b16 %v653
      %v896 = vunpack.c.l.b16 %v654
      %v897 = vunpack.c.h.b16 %v654
      %v898 = vunpack.c.l.b16 %v655
      %v899 = vunpack.c.l.b16 %v656
      %v900 = vunpack.c.h.b16 %v656
      %v901 = vunpack.c.l.b16 %v657
      %v902 = vunpack.c.l.b16 %v658
      %v903 = vunpack.c.h.b16 %v658
      %v904 = vunpack.c.l.b16 %v659
      %v905 = vunpack.c.l.b16 %v660
      %v906 = vunpack.c.h.b16 %v660
      %v907 = vunpack.c.l.b16 %v661
      %v908 = vunpack.c.l.b16 %v662
      %v909 = vunpack.c.h.b16 %v662
      %v910 = vunpack.c.l.b16 %v663
      %v911 = vunpack.c.l.b16 %v664
      %v912 = vunpack.c.h.b16 %v664
      %v913 = vunpack.c.l.b16 %v665
      %v914 = vunpack.c.l.b16 %v666
      %v915 = vunpack.c.h.b16 %v666
      %v916 = vunpack.c.l.b16 %v667
      %v917 = vunpack.c.l.b16 %v668
      %v918 = vunpack.c.h.b16 %v668
      %v919 = vunpack.c.l.b16 %v669
      %v920 = vunpack.c.l.b16 %v670
      %v921 = vunpack.c.h.b16 %v670
      %v922 = vunpack.c.l.b16 %v671
      %v923 = vunpack.c.l.b16 %v672
      %v924 = vunpack.c.h.b16 %v672
      %v925 = vunpack.c.l.b16 %v673
      %v926 = vunpack.c.l.b16 %v674
      %v927 = vunpack.c.h.b16 %v674
      %v928 = vunpack.c.l.b16 %v675
      %v929 = vunpack.c.l.b16 %v676
      %v930 = vunpack.c.h.b16 %v676
      %v931 = vunpack.c.l.b16 %v677
      %v932 = vunpack.c.l.b16 %v678
      %v933 = vunpack.c.h.b16 %v678
      %v934 = vunpack.c.l.b16 %v679
      %v935 = vunpack.c.l.b16 %v680
      %v936 = vunpack.c.h.b16 %v680
      %v937 = vunpack.c.l.b16 %v681
      %v938 = vunpack.c.l.b16 %v682
      %v939 = vunpack.c.h.b16 %v682
      %v940 = vunpack.c.l.b16 %v683
      %v941 = vunpack.c.l.b16 %v684
      %v942 = vunpack.c.h.b16 %v684
      %v943 = vunpack.c.l.b16 %v685
      %v944 = vunpack.c.l.b16 %v686
      %v945 = vunpack.c.h.b16 %v686
      %v946 = vunpack.c.l.b16 %v687
      %v947 = vunpack.c.l.b16 %v688
      %v948 = vunpack.c.h.b16 %v688
      %v949 = vunpack.c.l.b16 %v689
      %v950 = vunpack.c.l.b16 %v690
      %v951 = vunpack.c.h.b16 %v690
      %v952 = vunpack.c.l.b16 %v691
      %v953 = vunpack.c.l.b16 %v692
      %v954 = vunpack.c.h.b16 %v692
      %v955 = vunpack.c.l.b16 %v693
      %v956 = vunpack.c.l.b16 %v694
      %v957 = vunpack.c.h.b16 %v694
      %v958 = vunpack.c.l.b16 %v695
      %v959 = vunpack.c.l.b16 %v696
      %v960 = vunpack.c.h.b16 %v696
      %v961 = vunpack.c.l.b16 %v697
      %v962 = vunpack.c.l.b16 %v698
      %v963 = vunpack.c.h.b16 %v698
      %v964 = vunpack.c.l.b16 %v699
      %v965 = vunpack.c.l.b16 %v700
      %v966 = vunpack.c.h.b16 %v700
      %v967 = vunpack.c.l.b16 %v701
      %v968 = vunpack.c.l.b16 %v702
      %v969 = vunpack.c.h.b16 %v702
      %v970 = vunpack.c.l.b16 %v703
      %v971 = vunpack.c.l.b16 %v704
      %v972 = vunpack.c.h.b16 %v704
      %v973 = vunpack.c.l.b16 %v705
      %v974 = vunpack.c.l.b16 %v706
      %v975 = vunpack.c.h.b16 %v706
      %v976 = vunpack.c.l.b16 %v707
      %v977 = vunpack.c.l.b16 %v708
      %v978 = vunpack.c.h.b16 %v708
      %v979 = vunpack.c.l.b16 %v709
      %v980 = vunpack.c.l.b16 %v710
      %v981 = vunpack.c.h.b16 %v710
      %v982 = vunpack.c.l.b16 %v711
      %v983 = vunpack.c.l.b16 %v712
      %v984 = vunpack.c.h.b16 %v712
      %v985 = vunpack.c.l.b16 %v713
      %v986 = vunpack.c.l.b16 %v714
      %v987 = vunpack.c.h.b16 %v714
      %v988 = vunpack.c.l.b16 %v715
      %v989 = vunpack.c.l.b16 %v716
      %v990 = vunpack.c.h.b16 %v716
      %v991 = vunpack.c.l.b16 %v717
      %v992 = vunpack.c.l.b16 %v718
      %v993 = vunpack.c.h.b16 %v718
      %v994 = vunpack.c.l.b16 %v719
      %v995 = vunpack.c.l.b16 %v720
      %v996 = vunpack.c.h.b16 %v720
      %v997 = vunpack.c.l.b16 %v721
      %v998 = vunpack.c.l.b16 %v722
      %v999 = vunpack.c.h.b16 %v722
      %v1000 = vunpack.c.l.b16 %v723
      %v1001 = vunpack.c.l.b16 %v724
      %v1002 = vunpack.c.h.b16 %v724
      %v1003 = vunpack.c.l.b16 %v725
      %v1004 = vunpack.c.l.b16 %v726
      %v1005 = vunpack.c.h.b16 %v726
      %v1006 = vunpack.c.l.b16 %v727
      %v1007 = vunpack.c.l.b16 %v728
      %v1008 = vunpack.c.h.b16 %v728
      %v1009 = vunpack.c.l.b16 %v729
      %v1010 = vunpack.c.l.b16 %v730
      %v1011 = vunpack.c.h.b16 %v730
      %v1012 = vunpack.c.l.b16 %v731
      %v1013 = vunpack.c.l.b16 %v732
      %v1014 = vunpack.c.h.b16 %v732
      %v1015 = vunpack.c.l.b16 %v733
      %v1016 = vunpack.c.l.b16 %v734
      %v1017 = vunpack.c.h.b16 %v734
      %v1018 = vunpack.c.l.b16 %v735
      %v1019 = vunpack.c.l.b16 %v736
      %v1020 = vunpack.c.h.b16 %v736
      %v1021 = vunpack.c.l.b16 %v737
      %v1022 = vunpack.c.l.b16 %v738
      %v1023 = vunpack.c.h.b16 %v738
      %v1024 = vunpack.c.l.b16 %v739
      %v1025 = vunpack.c.l.b16 %v740
      %v1026 = vunpack.c.h.b16 %v740
      %v1027 = vunpack.c.l.b16 %v741
      %v1028 = vunpack.c.l.b16 %v742
      %v1029 = vunpack.c.h.b16 %v742
      %v1030 = vunpack.c.l.b16 %v743
      %v1031 = vunpack.c.l.b16 %v744
      %v1032 = vunpack.c.h.b16 %v744
      %v1033 = vunpack.c.l.b16 %v745
      %v1034 = vpack.c.b16 %v893, %v890
      %v1035 = vpack.c.b16 %v894, %v891
      %v1036 = vpack.c.b16 %v895, %v892
      %v1037 = vpack.c.b16 %v899, %v896
      %v1038 = vpack.c.b16 %v900, %v897
      %v1039 = vpack.c.b16 %v901, %v898
      %v1040 = vpack.c.b16 %v905, %v902
      %v1041 = vpack.c.b16 %v906, %v903
      %v1042 = vpack.c.b16 %v907, %v904
      %v1043 = vpack.c.b16 %v911, %v908
      %v1044 = vpack.c.b16 %v912, %v909
      %v1045 = vpack.c.b16 %v913, %v910
      %v1046 = vpack.c.b16 %v917, %v914
      %v1047 = vpack.c.b16 %v918, %v915
      %v1048 = vpack.c.b16 %v919, %v916
      %v1049 = vpack.c.b16 %v923, %v920
      %v1050 = vpack.c.b16 %v924, %v921
      %v1051 = vpack.c.b16 %v925, %v922
      %v1052 = vpack.c.b16 %v929, %v926
      %v1053 = vpack.c.b16 %v930, %v927
      %v1054 = vpack.c.b16 %v931, %v928
      %v1055 = vpack.c.b16 %v935, %v932
      %v1056 = vpack.c.b16 %v936, %v933
      %v1057 = vpack.c.b16 %v937, %v934
      %v1058 = vpack.c.b16 %v941, %v938
      %v1059 = vpack.c.b16 %v942, %v939
      %v1060 = vpack.c.b16 %v943, %v940
      %v1061 = vpack.c.b16 %v947, %v944
      %v1062 = vpack.c.b16 %v948, %v945
      %v1063 = vpack.c.b16 %v949, %v946
      %v1064 = vpack.c.b16 %v953, %v950
      %v1065 = vpack.c.b16 %v954, %v951
      %v1066 = vpack.c.b16 %v955, %v952
      %v1067 = vpack.c.b16 %v959, %v956
      %v1068 = vpack.c.b16 %v960, %v957
      %v1069 = vpack.c.b16 %v961, %v958
      %v1070 = vpack.c.b16 %v965, %v962
      %v1071 = vpack.c.b16 %v966, %v963
      %v1072 = vpack.c.b16 %v967, %v964
      %v1073 = vpack.c.b16 %v971, %v968
      %v1074 = vpack.c.b16 %v972, %v969
      %v1075 = vpack.c.b16 %v973, %v970
      %v1076 = vpack.c.b16 %v977, %v974
      %v1077 = vpack.c.b16 %v978, %v975
      %v1078 = vpack.c.b16 %v979, %v976
      %v1079 = vpack.c.b16 %v983, %v980
      %v1080 = vpack.c.b16 %v984, %v981
      %v1081 = vpack.c.b16 %v985, %v982
      %v1082 = vpack.c.b16 %v989, %v986
      %v1083 = vpack.c.b16 %v990, %v987
      %v1084 = vpack.c.b16 %v991, %v988
      %v1085 = vpack.c.b16 %v995, %v992
      %v1086 = vpack.c.b16 %v996, %v993
      %v1087 = vpack.c.b16 %v997, %v994
      %v1088 = vpack.c.b16 %v1001, %v998
      %v1089 = vpack.c.b16 %v1002, %v999
      %v1090 = vpack.c.b16 %v1003, %v1000
      %v1091 = vpack.c.b16 %v1007, %v1004
      %v1092 = vpack.c.b16 %v1008, %v1005
      %v1093 = vpack.c.b16 %v1009, %v1006
      %v1094 = vpack.c.b16 %v1013, %v1010
      %v1095 = vpack.c.b16 %v1014, %v1011
      %v1096 = vpack.c.b16 %v1015, %v1012
      %v1097 = vpack.c.b16 %v1019, %v1016
      %v1098 = vpack.c.b16 %v1020, %v1017
      %v1099 = vpack.c.b16 %v1021, %v1018
      %v1100 = vpack.c.b16 %v1025, %v1022
      %v1101 = vpack.c.b16 %v1026, %v1023
      %v1102 = vpack.c.b16 %v1027, %v1024
      %v1103 = vpack.c.b16 %v1031, %v1028
      %v1104 = vpack.c.b16 %v1032, %v1029
      %v1105 = vpack.c.b16 %v1033, %v1030
      %v1226 = vunpack.c.l.b16 %v746
      %v1227 = vunpack.c.l.b16 %v747
      %v1228 = vunpack.c.l.b16 %v748
      %v1229 = vunpack.c.l.b16 %v749
      %v1230 = vunpack.c.l.b16 %v750
      %v1231 = vunpack.c.l.b16 %v751
      %v1232 = vunpack.c.l.b16 %v752
      %v1233 = vunpack.c.l.b16 %v753
      %v1234 = vunpack.c.l.b16 %v754
      %v1235 = vunpack.c.l.b16 %v755
      %v1236 = vunpack.c.l.b16 %v756
      %v1237 = vunpack.c.l.b16 %v757
      %v1238 = vunpack.c.l.b16 %v758
      %v1239 = vunpack.c.l.b16 %v759
      %v1240 = vunpack.c.l.b16 %v760
      %v1241 = vunpack.c.l.b16 %v761
      %v1242 = vunpack.c.l.b16 %v762
      %v1243 = vunpack.c.l.b16 %v763
      %v1244 = vunpack.c.l.b16 %v764
      %v1245 = vunpack.c.l.b16 %v765
      %v1246 = vunpack.c.l.b16 %v766
      %v1247 = vunpack.c.l.b16 %v767
      %v1248 = vunpack.c.l.b16 %v768
      %v1249 = vunpack.c.l.b16 %v769
      %v1250 = vunpack.c.l.b16 %v770
      %v1251 = vunpack.c.l.b16 %v771
      %v1252 = vunpack.c.l.b16 %v772
      %v1253 = vunpack.c.l.b16 %v773
      %v1254 = vunpack.c.l.b16 %v774
      %v1255 = vunpack.c.l.b16 %v775
      %v1256 = vunpack.c.l.b16 %v776
      %v1257 = vunpack.c.l.b16 %v777
      %v1258 = vunpack.c.l.b16 %v778
      %v1259 = vunpack.c.l.b16 %v779
      %v1260 = vunpack.c.l.b16 %v780
      %v1261 = vunpack.c.l.b16 %v781
      %v1262 = vunpack.c.l.b16 %v782
      %v1263 = vunpack.c.l.b16 %v783
      %v1264 = vunpack.c.l.b16 %v784
      %v1265 = vunpack.c.l.b16 %v785
      %v1266 = vunpack.c.l.b16 %v786
      %v1267 = vunpack.c.l.b16 %v787
      %v1268 = vunpack.c.l.b16 %v788
      %v1269 = vunpack.c.l.b16 %v789
      %v1270 = vunpack.c.l.b16 %v790
      %v1271 = vunpack.c.l.b16 %v791
      %v1272 = vunpack.c.l.b16 %v792
      %v1273 = vunpack.c.l.b16 %v793
      %v1274 = vpack.c.b16 %v1227, %v1226
      %v1275 = vpack.c.b16 %v1229, %v1228
      %v1276 = vpack.c.b16 %v1231, %v1230
      %v1277 = vpack.c.b16 %v1233, %v1232
      %v1278 = vpack.c.b16 %v1235, %v1234
      %v1279 = vpack.c.b16 %v1237, %v1236
      %v1280 = vpack.c.b16 %v1239, %v1238
      %v1281 = vpack.c.b16 %v1241, %v1240
      %v1282 = vpack.c.b16 %v1243, %v1242
      %v1283 = vpack.c.b16 %v1245, %v1244
      %v1284 = vpack.c.b16 %v1247, %v1246
      %v1285 = vpack.c.b16 %v1249, %v1248
      %v1286 = vpack.c.b16 %v1251, %v1250
      %v1287 = vpack.c.b16 %v1253, %v1252
      %v1288 = vpack.c.b16 %v1255, %v1254
      %v1289 = vpack.c.b16 %v1257, %v1256
      %v1290 = vpack.c.b16 %v1259, %v1258
      %v1291 = vpack.c.b16 %v1261, %v1260
      %v1292 = vpack.c.b16 %v1263, %v1262
      %v1293 = vpack.c.b16 %v1265, %v1264
      %v1294 = vpack.c.b16 %v1267, %v1266
      %v1295 = vpack.c.b16 %v1269, %v1268
      %v1296 = vpack.c.b16 %v1271, %v1270
      %v1297 = vpack.c.b16 %v1273, %v1272
      %1322 = vmatprep.subr.bf16.mxu0 0
      %1323 = vmatpush1.bf16.msra.mxu0 %v1281
      %1324 = vmatprep.subr.bf16.mxu0 0
      %1325 = vmatpush1.bf16.msra.mxu0 %v1280
      %1326 = vmatprep.subr.bf16.mxu0 0
      %1327 = vmatpush1.bf16.msra.mxu0 %v1279
      %1328 = vmatprep.subr.bf16.mxu0 0
      %1329 = vmatpush1.bf16.msra.mxu0 %v1278
      %1330 = vmatprep.subr.bf16.mxu0 0
      %1331 = vmatpush1.bf16.msra.mxu0 %v1277
      %1332 = vmatprep.subr.bf16.mxu0 0
      %1333 = vmatpush1.bf16.msra.mxu0 %v1276
      %1334 = vmatprep.subr.bf16.mxu0 0
      %1335 = vmatpush1.bf16.msra.mxu0 %v1275
      %1336 = vmatprep.subr.bf16.mxu0 0
      %1337 = vmatpush1.bf16.msra.mxu0 %v1274
      %1338 = vmatprep.subr.bf16.mxu0 0
      %1339 = vmatpush2.bf16.msra.mxu0 %v1289
      %1340 = vmatprep.subr.bf16.mxu0 0
      %1341 = vmatpush2.bf16.msra.mxu0 %v1288
      %1342 = vmatprep.subr.bf16.mxu0 0
      %1343 = vmatpush2.bf16.msra.mxu0 %v1287
      %1344 = vmatprep.subr.bf16.mxu0 0
      %1345 = vmatpush2.bf16.msra.mxu0 %v1286
      %1346 = vmatprep.subr.bf16.mxu0 0
      %1347 = vmatpush2.bf16.msra.mxu0 %v1285
      %1348 = vmatprep.subr.bf16.mxu0 0
      %1349 = vmatpush2.bf16.msra.mxu0 %v1284
      %1350 = vmatprep.subr.bf16.mxu0 0
      %1351 = vmatpush2.bf16.msra.mxu0 %v1283
      %1352 = vmatprep.subr.bf16.mxu0 0
      %1353 = vmatpush2.bf16.msra.mxu0 %v1282
      %1354 = vmatprep.mubr.bf16.mxu0 %v1035
      %1355 = vmatmul.mubr.bf16.gmra.mxu0 %v1034
      %v1356 = vpop.f32.mrf.mxu0
      %v1357 = vadd.f32 0.0, %v1356
      %v1358 = vpop.f32.mrf.mxu0
      %v1359 = vpop.f32.mrf.mxu0
      %v1360 = vadd.f32 0.0, %v1359
      %v1361 = vpop.f32.mrf.mxu0
      %1362 = vmatprep.mubr.bf16.mxu0 %v1038
      %1363 = vmatmul.mubr.bf16.gmra.mxu0 %v1037
      %v1364 = vpop.f32.mrf.mxu0
      %v1365 = vadd.f32 0.0, %v1364
      %v1366 = vpop.f32.mrf.mxu0
      %v1367 = vpop.f32.mrf.mxu0
      %v1368 = vadd.f32 0.0, %v1367
      %v1369 = vpop.f32.mrf.mxu0
      %1370 = vmatprep.mubr.bf16.mxu0 %v1041
      %1371 = vmatmul.mubr.bf16.gmra.mxu0 %v1040
      %v1372 = vpop.f32.mrf.mxu0
      %v1373 = vadd.f32 0.0, %v1372
      %v1374 = vpop.f32.mrf.mxu0
      %v1375 = vpop.f32.mrf.mxu0
      %v1376 = vadd.f32 0.0, %v1375
      %v1377 = vpop.f32.mrf.mxu0
      %1378 = vmatprep.mubr.bf16.mxu0 %v1044
      %1379 = vmatmul.mubr.bf16.gmra.mxu0 %v1043
      %v1380 = vpop.f32.mrf.mxu0
      %v1381 = vadd.f32 0.0, %v1380
      %v1382 = vpop.f32.mrf.mxu0
      %v1383 = vpop.f32.mrf.mxu0
      %v1384 = vadd.f32 0.0, %v1383
      %v1385 = vpop.f32.mrf.mxu0
      %1386 = vmatprep.mubr.bf16.mxu0 %v1047
      %1387 = vmatmul.mubr.bf16.gmra.mxu0 %v1046
      %v1388 = vpop.f32.mrf.mxu0
      %v1389 = vadd.f32 0.0, %v1388
      %v1390 = vpop.f32.mrf.mxu0
      %v1391 = vpop.f32.mrf.mxu0
      %v1392 = vadd.f32 0.0, %v1391
      %v1393 = vpop.f32.mrf.mxu0
      %1394 = vmatprep.mubr.bf16.mxu0 %v1050
      %1395 = vmatmul.mubr.bf16.gmra.mxu0 %v1049
      %v1396 = vpop.f32.mrf.mxu0
      %v1397 = vadd.f32 0.0, %v1396
      %v1398 = vpop.f32.mrf.mxu0
      %v1399 = vpop.f32.mrf.mxu0
      %v1400 = vadd.f32 0.0, %v1399
      %v1401 = vpop.f32.mrf.mxu0
      %1402 = vmatprep.mubr.bf16.mxu0 %v1053
      %1403 = vmatmul.mubr.bf16.gmra.mxu0 %v1052
      %v1404 = vpop.f32.mrf.mxu0
      %v1405 = vadd.f32 0.0, %v1404
      %v1406 = vpop.f32.mrf.mxu0
      %v1407 = vpop.f32.mrf.mxu0
      %v1408 = vadd.f32 0.0, %v1407
      %v1409 = vpop.f32.mrf.mxu0
      %1410 = vmatprep.mubr.bf16.mxu0 %v1056
      %1411 = vmatmul.mubr.bf16.gmra.mxu0 %v1055
      %v1412 = vpop.f32.mrf.mxu0
      %v1413 = vadd.f32 0.0, %v1412
      %v1414 = vpop.f32.mrf.mxu0
      %v1415 = vpop.f32.mrf.mxu0
      %v1416 = vadd.f32 0.0, %v1415
      %v1417 = vpop.f32.mrf.mxu0
      %1418 = vmatprep.mubr.bf16.mxu0 %v1059
      %1419 = vmatmul.mubr.bf16.gmra.mxu0 %v1058
      %v1420 = vpop.f32.mrf.mxu0
      %v1421 = vadd.f32 0.0, %v1420
      %v1422 = vpop.f32.mrf.mxu0
      %v1423 = vpop.f32.mrf.mxu0
      %v1424 = vadd.f32 0.0, %v1423
      %v1425 = vpop.f32.mrf.mxu0
      %1426 = vmatprep.mubr.bf16.mxu0 %v1062
      %1427 = vmatmul.mubr.bf16.gmra.mxu0 %v1061
      %v1428 = vpop.f32.mrf.mxu0
      %v1429 = vadd.f32 0.0, %v1428
      %v1430 = vpop.f32.mrf.mxu0
      %v1431 = vpop.f32.mrf.mxu0
      %v1432 = vadd.f32 0.0, %v1431
      %v1433 = vpop.f32.mrf.mxu0
      %1434 = vmatprep.mubr.bf16.mxu0 %v1065
      %1435 = vmatmul.mubr.bf16.gmra.mxu0 %v1064
      %v1436 = vpop.f32.mrf.mxu0
      %v1437 = vadd.f32 0.0, %v1436
      %v1438 = vpop.f32.mrf.mxu0
      %v1439 = vpop.f32.mrf.mxu0
      %v1440 = vadd.f32 0.0, %v1439
      %v1441 = vpop.f32.mrf.mxu0
      %1442 = vmatprep.mubr.bf16.mxu0 %v1068
      %1443 = vmatmul.mubr.bf16.gmra.mxu0 %v1067
      %v1444 = vpop.f32.mrf.mxu0
      %v1445 = vadd.f32 0.0, %v1444
      %v1446 = vpop.f32.mrf.mxu0
      %v1447 = vpop.f32.mrf.mxu0
      %v1448 = vadd.f32 0.0, %v1447
      %v1449 = vpop.f32.mrf.mxu0
      %1450 = vmatprep.mubr.bf16.mxu0 %v1071
      %1451 = vmatmul.mubr.bf16.gmra.mxu0 %v1070
      %v1452 = vpop.f32.mrf.mxu0
      %v1453 = vadd.f32 0.0, %v1452
      %v1454 = vpop.f32.mrf.mxu0
      %v1455 = vpop.f32.mrf.mxu0
      %v1456 = vadd.f32 0.0, %v1455
      %v1457 = vpop.f32.mrf.mxu0
      %1458 = vmatprep.mubr.bf16.mxu0 %v1074
      %1459 = vmatmul.mubr.bf16.gmra.mxu0 %v1073
      %v1460 = vpop.f32.mrf.mxu0
      %v1461 = vadd.f32 0.0, %v1460
      %v1462 = vpop.f32.mrf.mxu0
      %v1463 = vpop.f32.mrf.mxu0
      %v1464 = vadd.f32 0.0, %v1463
      %v1465 = vpop.f32.mrf.mxu0
      %1466 = vmatprep.mubr.bf16.mxu0 %v1077
      %1467 = vmatmul.mubr.bf16.gmra.mxu0 %v1076
      %v1468 = vpop.f32.mrf.mxu0
      %v1469 = vadd.f32 0.0, %v1468
      %v1470 = vpop.f32.mrf.mxu0
      %v1471 = vpop.f32.mrf.mxu0
      %v1472 = vadd.f32 0.0, %v1471
      %v1473 = vpop.f32.mrf.mxu0
      %1474 = vmatprep.mubr.bf16.mxu0 %v1080
      %1475 = vmatmul.mubr.bf16.gmra.mxu0 %v1079
      %v1476 = vpop.f32.mrf.mxu0
      %v1477 = vadd.f32 0.0, %v1476
      %v1478 = vpop.f32.mrf.mxu0
      %v1479 = vpop.f32.mrf.mxu0
      %v1480 = vadd.f32 0.0, %v1479
      %v1481 = vpop.f32.mrf.mxu0
      %1482 = vmatprep.mubr.bf16.mxu0 %v1083
      %1483 = vmatmul.mubr.bf16.gmra.mxu0 %v1082
      %v1484 = vpop.f32.mrf.mxu0
      %v1485 = vadd.f32 0.0, %v1484
      %v1486 = vpop.f32.mrf.mxu0
      %v1487 = vpop.f32.mrf.mxu0
      %v1488 = vadd.f32 0.0, %v1487
      %v1489 = vpop.f32.mrf.mxu0
      %1490 = vmatprep.mubr.bf16.mxu0 %v1086
      %1491 = vmatmul.mubr.bf16.gmra.mxu0 %v1085
      %v1492 = vpop.f32.mrf.mxu0
      %v1493 = vadd.f32 0.0, %v1492
      %v1494 = vpop.f32.mrf.mxu0
      %v1495 = vpop.f32.mrf.mxu0
      %v1496 = vadd.f32 0.0, %v1495
      %v1497 = vpop.f32.mrf.mxu0
      %1498 = vmatprep.mubr.bf16.mxu0 %v1089
      %1499 = vmatmul.mubr.bf16.gmra.mxu0 %v1088
      %v1500 = vpop.f32.mrf.mxu0
      %v1501 = vadd.f32 0.0, %v1500
      %v1502 = vpop.f32.mrf.mxu0
      %v1503 = vpop.f32.mrf.mxu0
      %v1504 = vadd.f32 0.0, %v1503
      %v1505 = vpop.f32.mrf.mxu0
      %1506 = vmatprep.mubr.bf16.mxu0 %v1092
      %1507 = vmatmul.mubr.bf16.gmra.mxu0 %v1091
      %v1508 = vpop.f32.mrf.mxu0
      %v1509 = vadd.f32 0.0, %v1508
      %v1510 = vpop.f32.mrf.mxu0
      %v1511 = vpop.f32.mrf.mxu0
      %v1512 = vadd.f32 0.0, %v1511
      %v1513 = vpop.f32.mrf.mxu0
      %1514 = vmatprep.mubr.bf16.mxu0 %v1095
      %1515 = vmatmul.mubr.bf16.gmra.mxu0 %v1094
      %v1516 = vpop.f32.mrf.mxu0
      %v1517 = vadd.f32 0.0, %v1516
      %v1518 = vpop.f32.mrf.mxu0
      %v1519 = vpop.f32.mrf.mxu0
      %v1520 = vadd.f32 0.0, %v1519
      %v1521 = vpop.f32.mrf.mxu0
      %1522 = vmatprep.mubr.bf16.mxu0 %v1098
      %1523 = vmatmul.mubr.bf16.gmra.mxu0 %v1097
      %v1524 = vpop.f32.mrf.mxu0
      %v1525 = vadd.f32 0.0, %v1524
      %v1526 = vpop.f32.mrf.mxu0
      %v1527 = vpop.f32.mrf.mxu0
      %v1528 = vadd.f32 0.0, %v1527
      %v1529 = vpop.f32.mrf.mxu0
      %1530 = vmatprep.mubr.bf16.mxu0 %v1101
      %1531 = vmatmul.mubr.bf16.gmra.mxu0 %v1100
      %v1532 = vpop.f32.mrf.mxu0
      %v1533 = vadd.f32 0.0, %v1532
      %v1534 = vpop.f32.mrf.mxu0
      %v1535 = vpop.f32.mrf.mxu0
      %v1536 = vadd.f32 0.0, %v1535
      %v1537 = vpop.f32.mrf.mxu0
      %1538 = vmatprep.mubr.bf16.mxu0 %v1104
      %1539 = vmatmul.mubr.bf16.gmra.mxu0 %v1103
      %v1540 = vpop.f32.mrf.mxu0
      %v1541 = vadd.f32 0.0, %v1540
      %v1542 = vpop.f32.mrf.mxu0
      %v1543 = vpop.f32.mrf.mxu0
      %v1544 = vadd.f32 0.0, %v1543
      %v1545 = vpop.f32.mrf.mxu0
      %1546 = vdwg.mxu0
      %1547 = vmatprep.subr.bf16.mxu0 0
      %1548 = vmatpush1.bf16.msra.mxu0 %v1297
      %1549 = vmatprep.subr.bf16.mxu0 0
      %1550 = vmatpush1.bf16.msra.mxu0 %v1296
      %1551 = vmatprep.subr.bf16.mxu0 0
      %1552 = vmatpush1.bf16.msra.mxu0 %v1295
      %1553 = vmatprep.subr.bf16.mxu0 0
      %1554 = vmatpush1.bf16.msra.mxu0 %v1294
      %1555 = vmatprep.subr.bf16.mxu0 0
      %1556 = vmatpush1.bf16.msra.mxu0 %v1293
      %1557 = vmatprep.subr.bf16.mxu0 0
      %1558 = vmatpush1.bf16.msra.mxu0 %v1292
      %1559 = vmatprep.subr.bf16.mxu0 0
      %1560 = vmatpush1.bf16.msra.mxu0 %v1291
      %1561 = vmatprep.subr.bf16.mxu0 0
      %1562 = vmatpush1.bf16.msra.mxu0 %v1290
      %1563 = vmatprep.subr.bf16.mxu0 0
      %1564 = vmatpush2.bf16.msra.mxu0 0
      %1565 = vmatprep.subr.bf16.mxu0 0
      %1566 = vmatpush2.bf16.msra.mxu0 0
      %1567 = vmatprep.subr.bf16.mxu0 0
      %1568 = vmatpush2.bf16.msra.mxu0 0
      %1569 = vmatprep.subr.bf16.mxu0 0
      %1570 = vmatpush2.bf16.msra.mxu0 0
      %1571 = vmatprep.subr.bf16.mxu0 0
      %1572 = vmatpush2.bf16.msra.mxu0 0
      %1573 = vmatprep.subr.bf16.mxu0 0
      %1574 = vmatpush2.bf16.msra.mxu0 0
      %1575 = vmatprep.subr.bf16.mxu0 0
      %1576 = vmatpush2.bf16.msra.mxu0 0
      %1577 = vmatprep.subr.bf16.mxu0 0
      %1578 = vmatpush2.bf16.msra.mxu0 0
      %1579 = vmatprep.mubr.bf16.mxu0 0
      %1580 = vmatmul.mubr.bf16.gmra.mxu0 %v1036
      %v1581 = vpop.f32.mrf.mxu0
      %v1582 = vadd.f32 %v1357, %v1581
      %v1583 = vpop.f32.mrf.mxu0
      %v1584 = vpop.f32.mrf.mxu0
      %v1585 = vadd.f32 %v1360, %v1584
      %v1586 = vpop.f32.mrf.mxu0
      %1587 = vmatprep.mubr.bf16.mxu0 0
      %1588 = vmatmul.mubr.bf16.gmra.mxu0 %v1039
      %v1589 = vpop.f32.mrf.mxu0
      %v1590 = vadd.f32 %v1365, %v1589
      %v1591 = vpop.f32.mrf.mxu0
      %v1592 = vpop.f32.mrf.mxu0
      %v1593 = vadd.f32 %v1368, %v1592
      %v1594 = vpop.f32.mrf.mxu0
      %1595 = vmatprep.mubr.bf16.mxu0 0
      %1596 = vmatmul.mubr.bf16.gmra.mxu0 %v1042
      %v1597 = vpop.f32.mrf.mxu0
      %v1598 = vadd.f32 %v1373, %v1597
      %v1599 = vpop.f32.mrf.mxu0
      %v1600 = vpop.f32.mrf.mxu0
      %v1601 = vadd.f32 %v1376, %v1600
      %v1602 = vpop.f32.mrf.mxu0
      %1603 = vmatprep.mubr.bf16.mxu0 0
      %1604 = vmatmul.mubr.bf16.gmra.mxu0 %v1045
      %v1605 = vpop.f32.mrf.mxu0
      %v1606 = vadd.f32 %v1381, %v1605
      %v1607 = vpop.f32.mrf.mxu0
      %v1608 = vpop.f32.mrf.mxu0
      %v1609 = vadd.f32 %v1384, %v1608
      %v1610 = vpop.f32.mrf.mxu0
      %1611 = vmatprep.mubr.bf16.mxu0 0
      %1612 = vmatmul.mubr.bf16.gmra.mxu0 %v1048
      %v1613 = vpop.f32.mrf.mxu0
      %v1614 = vadd.f32 %v1389, %v1613
      %v1615 = vpop.f32.mrf.mxu0
      %v1616 = vpop.f32.mrf.mxu0
      %v1617 = vadd.f32 %v1392, %v1616
      %v1618 = vpop.f32.mrf.mxu0
      %1619 = vmatprep.mubr.bf16.mxu0 0
      %1620 = vmatmul.mubr.bf16.gmra.mxu0 %v1051
      %v1621 = vpop.f32.mrf.mxu0
      %v1622 = vadd.f32 %v1397, %v1621
      %v1623 = vpop.f32.mrf.mxu0
      %v1624 = vpop.f32.mrf.mxu0
      %v1625 = vadd.f32 %v1400, %v1624
      %v1626 = vpop.f32.mrf.mxu0
      %1627 = vmatprep.mubr.bf16.mxu0 0
      %1628 = vmatmul.mubr.bf16.gmra.mxu0 %v1054
      %v1629 = vpop.f32.mrf.mxu0
      %v1630 = vadd.f32 %v1405, %v1629
      %v1631 = vpop.f32.mrf.mxu0
      %v1632 = vpop.f32.mrf.mxu0
      %v1633 = vadd.f32 %v1408, %v1632
      %v1634 = vpop.f32.mrf.mxu0
      %1635 = vmatprep.mubr.bf16.mxu0 0
      %1636 = vmatmul.mubr.bf16.gmra.mxu0 %v1057
      %v1637 = vpop.f32.mrf.mxu0
      %v1638 = vadd.f32 %v1413, %v1637
      %v1639 = vpop.f32.mrf.mxu0
      %v1640 = vpop.f32.mrf.mxu0
      %v1641 = vadd.f32 %v1416, %v1640
      %v1642 = vpop.f32.mrf.mxu0
      %1643 = vmatprep.mubr.bf16.mxu0 0
      %1644 = vmatmul.mubr.bf16.gmra.mxu0 %v1060
      %v1645 = vpop.f32.mrf.mxu0
      %v1646 = vadd.f32 %v1421, %v1645
      %v1647 = vpop.f32.mrf.mxu0
      %v1648 = vpop.f32.mrf.mxu0
      %v1649 = vadd.f32 %v1424, %v1648
      %v1650 = vpop.f32.mrf.mxu0
      %1651 = vmatprep.mubr.bf16.mxu0 0
      %1652 = vmatmul.mubr.bf16.gmra.mxu0 %v1063
      %v1653 = vpop.f32.mrf.mxu0
      %v1654 = vadd.f32 %v1429, %v1653
      %v1655 = vpop.f32.mrf.mxu0
      %v1656 = vpop.f32.mrf.mxu0
      %v1657 = vadd.f32 %v1432, %v1656
      %v1658 = vpop.f32.mrf.mxu0
      %1659 = vmatprep.mubr.bf16.mxu0 0
      %1660 = vmatmul.mubr.bf16.gmra.mxu0 %v1066
      %v1661 = vpop.f32.mrf.mxu0
      %v1662 = vadd.f32 %v1437, %v1661
      %v1663 = vpop.f32.mrf.mxu0
      %v1664 = vpop.f32.mrf.mxu0
      %v1665 = vadd.f32 %v1440, %v1664
      %v1666 = vpop.f32.mrf.mxu0
      %1667 = vmatprep.mubr.bf16.mxu0 0
      %1668 = vmatmul.mubr.bf16.gmra.mxu0 %v1069
      %v1669 = vpop.f32.mrf.mxu0
      %v1670 = vadd.f32 %v1445, %v1669
      %v1671 = vpop.f32.mrf.mxu0
      %v1672 = vpop.f32.mrf.mxu0
      %v1673 = vadd.f32 %v1448, %v1672
      %v1674 = vpop.f32.mrf.mxu0
      %1675 = vmatprep.mubr.bf16.mxu0 0
      %1676 = vmatmul.mubr.bf16.gmra.mxu0 %v1072
      %v1677 = vpop.f32.mrf.mxu0
      %v1678 = vadd.f32 %v1453, %v1677
      %v1679 = vpop.f32.mrf.mxu0
      %v1680 = vpop.f32.mrf.mxu0
      %v1681 = vadd.f32 %v1456, %v1680
      %v1682 = vpop.f32.mrf.mxu0
      %1683 = vmatprep.mubr.bf16.mxu0 0
      %1684 = vmatmul.mubr.bf16.gmra.mxu0 %v1075
      %v1685 = vpop.f32.mrf.mxu0
      %v1686 = vadd.f32 %v1461, %v1685
      %v1687 = vpop.f32.mrf.mxu0
      %v1688 = vpop.f32.mrf.mxu0
      %v1689 = vadd.f32 %v1464, %v1688
      %v1690 = vpop.f32.mrf.mxu0
      %1691 = vmatprep.mubr.bf16.mxu0 0
      %1692 = vmatmul.mubr.bf16.gmra.mxu0 %v1078
      %v1693 = vpop.f32.mrf.mxu0
      %v1694 = vadd.f32 %v1469, %v1693
      %v1695 = vpop.f32.mrf.mxu0
      %v1696 = vpop.f32.mrf.mxu0
      %v1697 = vadd.f32 %v1472, %v1696
      %v1698 = vpop.f32.mrf.mxu0
      %1699 = vmatprep.mubr.bf16.mxu0 0
      %1700 = vmatmul.mubr.bf16.gmra.mxu0 %v1081
      %v1701 = vpop.f32.mrf.mxu0
      %v1702 = vadd.f32 %v1477, %v1701
      %v1703 = vpop.f32.mrf.mxu0
      %v1704 = vpop.f32.mrf.mxu0
      %v1705 = vadd.f32 %v1480, %v1704
      %v1706 = vpop.f32.mrf.mxu0
      %1707 = vmatprep.mubr.bf16.mxu0 0
      %1708 = vmatmul.mubr.bf16.gmra.mxu0 %v1084
      %v1709 = vpop.f32.mrf.mxu0
      %v1710 = vadd.f32 %v1485, %v1709
      %v1711 = vpop.f32.mrf.mxu0
      %v1712 = vpop.f32.mrf.mxu0
      %v1713 = vadd.f32 %v1488, %v1712
      %v1714 = vpop.f32.mrf.mxu0
      %1715 = vmatprep.mubr.bf16.mxu0 0
      %1716 = vmatmul.mubr.bf16.gmra.mxu0 %v1087
      %v1717 = vpop.f32.mrf.mxu0
      %v1718 = vadd.f32 %v1493, %v1717
      %v1719 = vpop.f32.mrf.mxu0
      %v1720 = vpop.f32.mrf.mxu0
      %v1721 = vadd.f32 %v1496, %v1720
      %v1722 = vpop.f32.mrf.mxu0
      %1723 = vmatprep.mubr.bf16.mxu0 0
      %1724 = vmatmul.mubr.bf16.gmra.mxu0 %v1090
      %v1725 = vpop.f32.mrf.mxu0
      %v1726 = vadd.f32 %v1501, %v1725
      %v1727 = vpop.f32.mrf.mxu0
      %v1728 = vpop.f32.mrf.mxu0
      %v1729 = vadd.f32 %v1504, %v1728
      %v1730 = vpop.f32.mrf.mxu0
      %1731 = vmatprep.mubr.bf16.mxu0 0
      %1732 = vmatmul.mubr.bf16.gmra.mxu0 %v1093
      %v1733 = vpop.f32.mrf.mxu0
      %v1734 = vadd.f32 %v1509, %v1733
      %v1735 = vpop.f32.mrf.mxu0
      %v1736 = vpop.f32.mrf.mxu0
      %v1737 = vadd.f32 %v1512, %v1736
      %v1738 = vpop.f32.mrf.mxu0
      %1739 = vmatprep.mubr.bf16.mxu0 0
      %1740 = vmatmul.mubr.bf16.gmra.mxu0 %v1096
      %v1741 = vpop.f32.mrf.mxu0
      %v1742 = vadd.f32 %v1517, %v1741
      %v1743 = vpop.f32.mrf.mxu0
      %v1744 = vpop.f32.mrf.mxu0
      %v1745 = vadd.f32 %v1520, %v1744
      %v1746 = vpop.f32.mrf.mxu0
      %1747 = vmatprep.mubr.bf16.mxu0 0
      %1748 = vmatmul.mubr.bf16.gmra.mxu0 %v1099
      %v1749 = vpop.f32.mrf.mxu0
      %v1750 = vadd.f32 %v1525, %v1749
      %v1751 = vpop.f32.mrf.mxu0
      %v1752 = vpop.f32.mrf.mxu0
      %v1753 = vadd.f32 %v1528, %v1752
      %v1754 = vpop.f32.mrf.mxu0
      %1755 = vmatprep.mubr.bf16.mxu0 0
      %1756 = vmatmul.mubr.bf16.gmra.mxu0 %v1102
      %v1757 = vpop.f32.mrf.mxu0
      %v1758 = vadd.f32 %v1533, %v1757
      %v1759 = vpop.f32.mrf.mxu0
      %v1760 = vpop.f32.mrf.mxu0
      %v1761 = vadd.f32 %v1536, %v1760
      %v1762 = vpop.f32.mrf.mxu0
      %1763 = vmatprep.mubr.bf16.mxu0 0
      %1764 = vmatmul.mubr.bf16.gmra.mxu0 %v1105
      %v1765 = vpop.f32.mrf.mxu0
      %v1766 = vadd.f32 %v1541, %v1765
      %v1767 = vpop.f32.mrf.mxu0
      %v1768 = vpop.f32.mrf.mxu0
      %v1769 = vadd.f32 %v1544, %v1768
      %v1770 = vpop.f32.mrf.mxu0
      %1771 = vdwg.mxu0
      %v1772 = vld [vmem:[%s474] sm:$0xff]
      %v1773 = vld [vmem:[%s474 + $0x8] sm:$0xff]
      %v1774 = vld [vmem:[%s474 + $0x10] sm:$0xff]
      %v1775 = vld [vmem:[%s474 + $0x18] sm:$0xff]
      %v1776 = vld [vmem:[%s474 + $0x20] sm:$0xff]
      %v1777 = vld [vmem:[%s474 + $0x28] sm:$0xff]
      %v1778 = vld [vmem:[%s474 + $0x30] sm:$0xff]
      %v1779 = vld [vmem:[%s474 + $0x38] sm:$0xff]
      %v1780 = vld [vmem:[%s474 + $0x40] sm:$0xff]
      %v1781 = vld [vmem:[%s474 + $0x48] sm:$0xff]
      %v1782 = vld [vmem:[%s474 + $0x50] sm:$0xff]
      %v1783 = vld [vmem:[%s474 + $0x58] sm:$0xff]
      %v1784 = vld [vmem:[%s474 + $0x60] sm:$0xff]
      %v1785 = vld [vmem:[%s474 + $0x68] sm:$0xff]
      %v1786 = vld [vmem:[%s474 + $0x70] sm:$0xff]
      %v1787 = vld [vmem:[%s474 + $0x78] sm:$0xff]
      %v1788 = vld [vmem:[%s477] sm:$0x1]
      %v1790 = vlaneseq
      %v1791 = vshrl.u32 %v1790, 7
      %v1792 = vsub.s32 0, %v1791
      %v1793 = vrot.slane %v1788, %v1792
      %1795 = vmatprep.subr.mxu0 0.0
      %1796 = vmatpush1.msra.mxu0 %v1787
      %1797 = vmatprep.subr.mxu0 0.0
      %1798 = vmatpush1.msra.mxu0 %v1786
      %1799 = vmatprep.subr.mxu0 0.0
      %1800 = vmatpush1.msra.mxu0 %v1785
      %1801 = vmatprep.subr.mxu0 0.0
      %1802 = vmatpush1.msra.mxu0 %v1784
      %1803 = vmatprep.subr.mxu0 0.0
      %1804 = vmatpush1.msra.mxu0 %v1783
      %1805 = vmatprep.subr.mxu0 0.0
      %1806 = vmatpush1.msra.mxu0 %v1782
      %1807 = vmatprep.subr.mxu0 0.0
      %1808 = vmatpush1.msra.mxu0 %v1781
      %1809 = vmatprep.subr.mxu0 0.0
      %1810 = vmatpush1.msra.mxu0 %v1780
      %1811 = vmatprep.subr.mxu0 0.0
      %1812 = vmatpush1.msra.mxu0 %v1779
      %1813 = vmatprep.subr.mxu0 0.0
      %1814 = vmatpush1.msra.mxu0 %v1778
      %1815 = vmatprep.subr.mxu0 0.0
      %1816 = vmatpush1.msra.mxu0 %v1777
      %1817 = vmatprep.subr.mxu0 0.0
      %1818 = vmatpush1.msra.mxu0 %v1776
      %1819 = vmatprep.subr.mxu0 0.0
      %1820 = vmatpush1.msra.mxu0 %v1775
      %1821 = vmatprep.subr.mxu0 0.0
      %1822 = vmatpush1.msra.mxu0 %v1774
      %1823 = vmatprep.subr.mxu0 0.0
      %1824 = vmatpush1.msra.mxu0 %v1773
      %1825 = vmatprep.subr.mxu0 0.0
      %1826 = vmatpush1.msra.mxu0 %v1772
      %1827 = vmatprep.subr.mxu0 0.0
      %1828 = vmatpush2.msra.mxu0 0.0
      %1829 = vmatprep.subr.mxu0 0.0
      %1830 = vmatpush2.msra.mxu0 0.0
      %1831 = vmatprep.subr.mxu0 0.0
      %1832 = vmatpush2.msra.mxu0 0.0
      %1833 = vmatprep.subr.mxu0 0.0
      %1834 = vmatpush2.msra.mxu0 0.0
      %1835 = vmatprep.subr.mxu0 0.0
      %1836 = vmatpush2.msra.mxu0 0.0
      %1837 = vmatprep.subr.mxu0 0.0
      %1838 = vmatpush2.msra.mxu0 0.0
      %1839 = vmatprep.subr.mxu0 0.0
      %1840 = vmatpush2.msra.mxu0 0.0
      %1841 = vmatprep.subr.mxu0 0.0
      %1842 = vmatpush2.msra.mxu0 0.0
      %1843 = vmatprep.subr.mxu0 0.0
      %1844 = vmatpush2.msra.mxu0 0.0
      %1845 = vmatprep.subr.mxu0 0.0
      %1846 = vmatpush2.msra.mxu0 0.0
      %1847 = vmatprep.subr.mxu0 0.0
      %1848 = vmatpush2.msra.mxu0 0.0
      %1849 = vmatprep.subr.mxu0 0.0
      %1850 = vmatpush2.msra.mxu0 0.0
      %1851 = vmatprep.subr.mxu0 0.0
      %1852 = vmatpush2.msra.mxu0 0.0
      %1853 = vmatprep.subr.mxu0 0.0
      %1854 = vmatpush2.msra.mxu0 0.0
      %1855 = vmatprep.subr.mxu0 0.0
      %1856 = vmatpush2.msra.mxu0 0.0
      %1857 = vmatprep.subr.mxu0 0.0
      %1858 = vmatpush2.msra.mxu0 0.0
      %1859 = vmatprep.mubr.f32.mxu0 0.0
      %1860 = vmatmul.mubr.f32.gmra.mxu0 %v1582
      %v1861 = vpop.f32.mrf.mxu0
      %v1862 = vadd.f32 %v1793, %v1861
      %v1863 = vpop.f32.mrf.mxu0
      %1864 = vmatprep.mubr.f32.mxu0 0.0
      %1865 = vmatmul.mubr.f32.gmra.mxu0 %v1585
      %v1866 = vpop.f32.mrf.mxu0
      %v1867 = vadd.f32 %v1793, %v1866
      %v1868 = vpop.f32.mrf.mxu0
      %1869 = vmatprep.mubr.f32.mxu0 0.0
      %1870 = vmatmul.mubr.f32.gmra.mxu0 %v1590
      %v1871 = vpop.f32.mrf.mxu0
      %v1872 = vadd.f32 %v1793, %v1871
      %v1873 = vpop.f32.mrf.mxu0
      %1874 = vmatprep.mubr.f32.mxu0 0.0
      %1875 = vmatmul.mubr.f32.gmra.mxu0 %v1593
      %v1876 = vpop.f32.mrf.mxu0
      %v1877 = vadd.f32 %v1793, %v1876
      %v1878 = vpop.f32.mrf.mxu0
      %1879 = vmatprep.mubr.f32.mxu0 0.0
      %1880 = vmatmul.mubr.f32.gmra.mxu0 %v1598
      %v1881 = vpop.f32.mrf.mxu0
      %v1882 = vadd.f32 %v1793, %v1881
      %v1883 = vpop.f32.mrf.mxu0
      %1884 = vmatprep.mubr.f32.mxu0 0.0
      %1885 = vmatmul.mubr.f32.gmra.mxu0 %v1601
      %v1886 = vpop.f32.mrf.mxu0
      %v1887 = vadd.f32 %v1793, %v1886
      %v1888 = vpop.f32.mrf.mxu0
      %1889 = vmatprep.mubr.f32.mxu0 0.0
      %1890 = vmatmul.mubr.f32.gmra.mxu0 %v1606
      %v1891 = vpop.f32.mrf.mxu0
      %v1892 = vadd.f32 %v1793, %v1891
      %v1893 = vpop.f32.mrf.mxu0
      %1894 = vmatprep.mubr.f32.mxu0 0.0
      %1895 = vmatmul.mubr.f32.gmra.mxu0 %v1609
      %v1896 = vpop.f32.mrf.mxu0
      %v1897 = vadd.f32 %v1793, %v1896
      %v1898 = vpop.f32.mrf.mxu0
      %1899 = vmatprep.mubr.f32.mxu0 0.0
      %1900 = vmatmul.mubr.f32.gmra.mxu0 %v1614
      %v1901 = vpop.f32.mrf.mxu0
      %v1902 = vadd.f32 %v1793, %v1901
      %v1903 = vpop.f32.mrf.mxu0
      %1904 = vmatprep.mubr.f32.mxu0 0.0
      %1905 = vmatmul.mubr.f32.gmra.mxu0 %v1617
      %v1906 = vpop.f32.mrf.mxu0
      %v1907 = vadd.f32 %v1793, %v1906
      %v1908 = vpop.f32.mrf.mxu0
      %1909 = vmatprep.mubr.f32.mxu0 0.0
      %1910 = vmatmul.mubr.f32.gmra.mxu0 %v1622
      %v1911 = vpop.f32.mrf.mxu0
      %v1912 = vadd.f32 %v1793, %v1911
      %v1913 = vpop.f32.mrf.mxu0
      %1914 = vmatprep.mubr.f32.mxu0 0.0
      %1915 = vmatmul.mubr.f32.gmra.mxu0 %v1625
      %v1916 = vpop.f32.mrf.mxu0
      %v1917 = vadd.f32 %v1793, %v1916
      %v1918 = vpop.f32.mrf.mxu0
      %1919 = vmatprep.mubr.f32.mxu0 0.0
      %1920 = vmatmul.mubr.f32.gmra.mxu0 %v1630
      %v1921 = vpop.f32.mrf.mxu0
      %v1922 = vadd.f32 %v1793, %v1921
      %v1923 = vpop.f32.mrf.mxu0
      %1924 = vmatprep.mubr.f32.mxu0 0.0
      %1925 = vmatmul.mubr.f32.gmra.mxu0 %v1633
      %v1926 = vpop.f32.mrf.mxu0
      %v1927 = vadd.f32 %v1793, %v1926
      %v1928 = vpop.f32.mrf.mxu0
      %1929 = vmatprep.mubr.f32.mxu0 0.0
      %1930 = vmatmul.mubr.f32.gmra.mxu0 %v1638
      %v1931 = vpop.f32.mrf.mxu0
      %v1932 = vadd.f32 %v1793, %v1931
      %v1933 = vpop.f32.mrf.mxu0
      %1934 = vmatprep.mubr.f32.mxu0 0.0
      %1935 = vmatmul.mubr.f32.gmra.mxu0 %v1641
      %v1936 = vpop.f32.mrf.mxu0
      %v1937 = vadd.f32 %v1793, %v1936
      %v1938 = vpop.f32.mrf.mxu0
      %1939 = vmatprep.mubr.f32.mxu0 0.0
      %1940 = vmatmul.mubr.f32.gmra.mxu0 %v1646
      %v1941 = vpop.f32.mrf.mxu0
      %v1942 = vadd.f32 %v1793, %v1941
      %v1943 = vpop.f32.mrf.mxu0
      %1944 = vmatprep.mubr.f32.mxu0 0.0
      %1945 = vmatmul.mubr.f32.gmra.mxu0 %v1649
      %v1946 = vpop.f32.mrf.mxu0
      %v1947 = vadd.f32 %v1793, %v1946
      %v1948 = vpop.f32.mrf.mxu0
      %1949 = vmatprep.mubr.f32.mxu0 0.0
      %1950 = vmatmul.mubr.f32.gmra.mxu0 %v1654
      %v1951 = vpop.f32.mrf.mxu0
      %v1952 = vadd.f32 %v1793, %v1951
      %v1953 = vpop.f32.mrf.mxu0
      %1954 = vmatprep.mubr.f32.mxu0 0.0
      %1955 = vmatmul.mubr.f32.gmra.mxu0 %v1657
      %v1956 = vpop.f32.mrf.mxu0
      %v1957 = vadd.f32 %v1793, %v1956
      %v1958 = vpop.f32.mrf.mxu0
      %1959 = vmatprep.mubr.f32.mxu0 0.0
      %1960 = vmatmul.mubr.f32.gmra.mxu0 %v1662
      %v1961 = vpop.f32.mrf.mxu0
      %v1962 = vadd.f32 %v1793, %v1961
      %v1963 = vpop.f32.mrf.mxu0
      %1964 = vmatprep.mubr.f32.mxu0 0.0
      %1965 = vmatmul.mubr.f32.gmra.mxu0 %v1665
      %v1966 = vpop.f32.mrf.mxu0
      %v1967 = vadd.f32 %v1793, %v1966
      %v1968 = vpop.f32.mrf.mxu0
      %1969 = vmatprep.mubr.f32.mxu0 0.0
      %1970 = vmatmul.mubr.f32.gmra.mxu0 %v1670
      %v1971 = vpop.f32.mrf.mxu0
      %v1972 = vadd.f32 %v1793, %v1971
      %v1973 = vpop.f32.mrf.mxu0
      %1974 = vmatprep.mubr.f32.mxu0 0.0
      %1975 = vmatmul.mubr.f32.gmra.mxu0 %v1673
      %v1976 = vpop.f32.mrf.mxu0
      %v1977 = vadd.f32 %v1793, %v1976
      %v1978 = vpop.f32.mrf.mxu0
      %1979 = vmatprep.mubr.f32.mxu0 0.0
      %1980 = vmatmul.mubr.f32.gmra.mxu0 %v1678
      %v1981 = vpop.f32.mrf.mxu0
      %v1982 = vadd.f32 %v1793, %v1981
      %v1983 = vpop.f32.mrf.mxu0
      %1984 = vmatprep.mubr.f32.mxu0 0.0
      %1985 = vmatmul.mubr.f32.gmra.mxu0 %v1681
      %v1986 = vpop.f32.mrf.mxu0
      %v1987 = vadd.f32 %v1793, %v1986
      %v1988 = vpop.f32.mrf.mxu0
      %1989 = vmatprep.mubr.f32.mxu0 0.0
      %1990 = vmatmul.mubr.f32.gmra.mxu0 %v1686
      %v1991 = vpop.f32.mrf.mxu0
      %v1992 = vadd.f32 %v1793, %v1991
      %v1993 = vpop.f32.mrf.mxu0
      %1994 = vmatprep.mubr.f32.mxu0 0.0
      %1995 = vmatmul.mubr.f32.gmra.mxu0 %v1689
      %v1996 = vpop.f32.mrf.mxu0
      %v1997 = vadd.f32 %v1793, %v1996
      %v1998 = vpop.f32.mrf.mxu0
      %1999 = vmatprep.mubr.f32.mxu0 0.0
      %2000 = vmatmul.mubr.f32.gmra.mxu0 %v1694
      %v2001 = vpop.f32.mrf.mxu0
      %v2002 = vadd.f32 %v1793, %v2001
      %v2003 = vpop.f32.mrf.mxu0
      %2004 = vmatprep.mubr.f32.mxu0 0.0
      %2005 = vmatmul.mubr.f32.gmra.mxu0 %v1697
      %v2006 = vpop.f32.mrf.mxu0
      %v2007 = vadd.f32 %v1793, %v2006
      %v2008 = vpop.f32.mrf.mxu0
      %2009 = vmatprep.mubr.f32.mxu0 0.0
      %2010 = vmatmul.mubr.f32.gmra.mxu0 %v1702
      %v2011 = vpop.f32.mrf.mxu0
      %v2012 = vadd.f32 %v1793, %v2011
      %v2013 = vpop.f32.mrf.mxu0
      %2014 = vmatprep.mubr.f32.mxu0 0.0
      %2015 = vmatmul.mubr.f32.gmra.mxu0 %v1705
      %v2016 = vpop.f32.mrf.mxu0
      %v2017 = vadd.f32 %v1793, %v2016
      %v2018 = vpop.f32.mrf.mxu0
      %2019 = vmatprep.mubr.f32.mxu0 0.0
      %2020 = vmatmul.mubr.f32.gmra.mxu0 %v1710
      %v2021 = vpop.f32.mrf.mxu0
      %v2022 = vadd.f32 %v1793, %v2021
      %v2023 = vpop.f32.mrf.mxu0
      %2024 = vmatprep.mubr.f32.mxu0 0.0
      %2025 = vmatmul.mubr.f32.gmra.mxu0 %v1713
      %v2026 = vpop.f32.mrf.mxu0
      %v2027 = vadd.f32 %v1793, %v2026
      %v2028 = vpop.f32.mrf.mxu0
      %2029 = vmatprep.mubr.f32.mxu0 0.0
      %2030 = vmatmul.mubr.f32.gmra.mxu0 %v1718
      %v2031 = vpop.f32.mrf.mxu0
      %v2032 = vadd.f32 %v1793, %v2031
      %v2033 = vpop.f32.mrf.mxu0
      %2034 = vmatprep.mubr.f32.mxu0 0.0
      %2035 = vmatmul.mubr.f32.gmra.mxu0 %v1721
      %v2036 = vpop.f32.mrf.mxu0
      %v2037 = vadd.f32 %v1793, %v2036
      %v2038 = vpop.f32.mrf.mxu0
      %2039 = vmatprep.mubr.f32.mxu0 0.0
      %2040 = vmatmul.mubr.f32.gmra.mxu0 %v1726
      %v2041 = vpop.f32.mrf.mxu0
      %v2042 = vadd.f32 %v1793, %v2041
      %v2043 = vpop.f32.mrf.mxu0
      %2044 = vmatprep.mubr.f32.mxu0 0.0
      %2045 = vmatmul.mubr.f32.gmra.mxu0 %v1729
      %v2046 = vpop.f32.mrf.mxu0
      %v2047 = vadd.f32 %v1793, %v2046
      %v2048 = vpop.f32.mrf.mxu0
      %2049 = vmatprep.mubr.f32.mxu0 0.0
      %2050 = vmatmul.mubr.f32.gmra.mxu0 %v1734
      %v2051 = vpop.f32.mrf.mxu0
      %v2052 = vadd.f32 %v1793, %v2051
      %v2053 = vpop.f32.mrf.mxu0
      %2054 = vmatprep.mubr.f32.mxu0 0.0
      %2055 = vmatmul.mubr.f32.gmra.mxu0 %v1737
      %v2056 = vpop.f32.mrf.mxu0
      %v2057 = vadd.f32 %v1793, %v2056
      %v2058 = vpop.f32.mrf.mxu0
      %2059 = vmatprep.mubr.f32.mxu0 0.0
      %2060 = vmatmul.mubr.f32.gmra.mxu0 %v1742
      %v2061 = vpop.f32.mrf.mxu0
      %v2062 = vadd.f32 %v1793, %v2061
      %v2063 = vpop.f32.mrf.mxu0
      %2064 = vmatprep.mubr.f32.mxu0 0.0
      %2065 = vmatmul.mubr.f32.gmra.mxu0 %v1745
      %v2066 = vpop.f32.mrf.mxu0
      %v2067 = vadd.f32 %v1793, %v2066
      %v2068 = vpop.f32.mrf.mxu0
      %2069 = vmatprep.mubr.f32.mxu0 0.0
      %2070 = vmatmul.mubr.f32.gmra.mxu0 %v1750
      %v2071 = vpop.f32.mrf.mxu0
      %v2072 = vadd.f32 %v1793, %v2071
      %v2073 = vpop.f32.mrf.mxu0
      %2074 = vmatprep.mubr.f32.mxu0 0.0
      %2075 = vmatmul.mubr.f32.gmra.mxu0 %v1753
      %v2076 = vpop.f32.mrf.mxu0
      %v2077 = vadd.f32 %v1793, %v2076
      %v2078 = vpop.f32.mrf.mxu0
      %2079 = vmatprep.mubr.f32.mxu0 0.0
      %2080 = vmatmul.mubr.f32.gmra.mxu0 %v1758
      %v2081 = vpop.f32.mrf.mxu0
      %v2082 = vadd.f32 %v1793, %v2081
      %v2083 = vpop.f32.mrf.mxu0
      %2084 = vmatprep.mubr.f32.mxu0 0.0
      %2085 = vmatmul.mubr.f32.gmra.mxu0 %v1761
      %v2086 = vpop.f32.mrf.mxu0
      %v2087 = vadd.f32 %v1793, %v2086
      %v2088 = vpop.f32.mrf.mxu0
      %2089 = vmatprep.mubr.f32.mxu0 0.0
      %2090 = vmatmul.mubr.f32.gmra.mxu0 %v1766
      %v2091 = vpop.f32.mrf.mxu0
      %v2092 = vadd.f32 %v1793, %v2091
      %v2093 = vpop.f32.mrf.mxu0
      %2094 = vmatprep.mubr.f32.mxu0 0.0
      %2095 = vmatmul.mubr.f32.gmra.mxu0 %v1769
      %v2096 = vpop.f32.mrf.mxu0
      %v2097 = vadd.f32 %v1793, %v2096
      %v2098 = vpop.f32.mrf.mxu0
      %2099 = vdwg.mxu0
      %v2100 = vmax.f32 %v1862, 0.0
      %v2101 = vmax.f32 %v1867, 0.0
      %v2102 = vmax.f32 %v1872, 0.0
      %v2103 = vmax.f32 %v1877, 0.0
      %v2104 = vmax.f32 %v1882, 0.0
      %v2105 = vmax.f32 %v1887, 0.0
      %v2106 = vmax.f32 %v1892, 0.0
      %v2107 = vmax.f32 %v1897, 0.0
      %v2108 = vmax.f32 %v1902, 0.0
      %v2109 = vmax.f32 %v1907, 0.0
      %v2110 = vmax.f32 %v1912, 0.0
      %v2111 = vmax.f32 %v1917, 0.0
      %v2112 = vmax.f32 %v1922, 0.0
      %v2113 = vmax.f32 %v1927, 0.0
      %v2114 = vmax.f32 %v1932, 0.0
      %v2115 = vmax.f32 %v1937, 0.0
      %v2116 = vmax.f32 %v1942, 0.0
      %v2117 = vmax.f32 %v1947, 0.0
      %v2118 = vmax.f32 %v1952, 0.0
      %v2119 = vmax.f32 %v1957, 0.0
      %v2120 = vmax.f32 %v1962, 0.0
      %v2121 = vmax.f32 %v1967, 0.0
      %v2122 = vmax.f32 %v1972, 0.0
      %v2123 = vmax.f32 %v1977, 0.0
      %v2124 = vmax.f32 %v1982, 0.0
      %v2125 = vmax.f32 %v1987, 0.0
      %v2126 = vmax.f32 %v1992, 0.0
      %v2127 = vmax.f32 %v1997, 0.0
      %v2128 = vmax.f32 %v2002, 0.0
      %v2129 = vmax.f32 %v2007, 0.0
      %v2130 = vmax.f32 %v2012, 0.0
      %v2131 = vmax.f32 %v2017, 0.0
      %v2132 = vmax.f32 %v2022, 0.0
      %v2133 = vmax.f32 %v2027, 0.0
      %v2134 = vmax.f32 %v2032, 0.0
      %v2135 = vmax.f32 %v2037, 0.0
      %v2136 = vmax.f32 %v2042, 0.0
      %v2137 = vmax.f32 %v2047, 0.0
      %v2138 = vmax.f32 %v2052, 0.0
      %v2139 = vmax.f32 %v2057, 0.0
      %v2140 = vmax.f32 %v2062, 0.0
      %v2141 = vmax.f32 %v2067, 0.0
      %v2142 = vmax.f32 %v2072, 0.0
      %v2143 = vmax.f32 %v2077, 0.0
      %v2144 = vmax.f32 %v2082, 0.0
      %v2145 = vmax.f32 %v2087, 0.0
      %v2146 = vmax.f32 %v2092, 0.0
      %v2147 = vmax.f32 %v2097, 0.0
      %v2148 = vld [vmem:[%s482] sm:$0xff]
      %v2149 = vld [vmem:[%s482 + $0x8] sm:$0xff]
      %v2150 = vld [vmem:[%s482 + $0x10] sm:$0xff]
      %v2151 = vld [vmem:[%s482 + $0x18] sm:$0xff]
      %v2152 = vld [vmem:[%s482 + $0x20] sm:$0xff]
      %v2153 = vld [vmem:[%s482 + $0x28] sm:$0xff]
      %v2154 = vld [vmem:[%s482 + $0x30] sm:$0xff]
      %v2155 = vld [vmem:[%s482 + $0x38] sm:$0xff]
      %v2156 = vld [vmem:[%s482 + $0x40] sm:$0xff]
      %v2157 = vld [vmem:[%s482 + $0x48] sm:$0xff]
      %v2158 = vld [vmem:[%s482 + $0x50] sm:$0xff]
      %v2159 = vld [vmem:[%s482 + $0x58] sm:$0xff]
      %v2160 = vld [vmem:[%s482 + $0x60] sm:$0xff]
      %v2161 = vld [vmem:[%s482 + $0x68] sm:$0xff]
      %v2162 = vld [vmem:[%s482 + $0x70] sm:$0xff]
      %v2163 = vld [vmem:[%s482 + $0x78] sm:$0xff]
      %v2164 = vld [vmem:[%s485] sm:$0x1]
      %v2166 = vlaneseq
      %v2167 = vshrl.u32 %v2166, 7
      %v2168 = vsub.s32 0, %v2167
      %v2169 = vrot.slane %v2164, %v2168
      %2171 = vmatprep.subr.mxu0 0.0
      %2172 = vmatpush1.msra.mxu0 %v2163
      %2173 = vmatprep.subr.mxu0 0.0
      %2174 = vmatpush1.msra.mxu0 %v2162
      %2175 = vmatprep.subr.mxu0 0.0
      %2176 = vmatpush1.msra.mxu0 %v2161
      %2177 = vmatprep.subr.mxu0 0.0
      %2178 = vmatpush1.msra.mxu0 %v2160
      %2179 = vmatprep.subr.mxu0 0.0
      %2180 = vmatpush1.msra.mxu0 %v2159
      %2181 = vmatprep.subr.mxu0 0.0
      %2182 = vmatpush1.msra.mxu0 %v2158
      %2183 = vmatprep.subr.mxu0 0.0
      %2184 = vmatpush1.msra.mxu0 %v2157
      %2185 = vmatprep.subr.mxu0 0.0
      %2186 = vmatpush1.msra.mxu0 %v2156
      %2187 = vmatprep.subr.mxu0 0.0
      %2188 = vmatpush1.msra.mxu0 %v2155
      %2189 = vmatprep.subr.mxu0 0.0
      %2190 = vmatpush1.msra.mxu0 %v2154
      %2191 = vmatprep.subr.mxu0 0.0
      %2192 = vmatpush1.msra.mxu0 %v2153
      %2193 = vmatprep.subr.mxu0 0.0
      %2194 = vmatpush1.msra.mxu0 %v2152
      %2195 = vmatprep.subr.mxu0 0.0
      %2196 = vmatpush1.msra.mxu0 %v2151
      %2197 = vmatprep.subr.mxu0 0.0
      %2198 = vmatpush1.msra.mxu0 %v2150
      %2199 = vmatprep.subr.mxu0 0.0
      %2200 = vmatpush1.msra.mxu0 %v2149
      %2201 = vmatprep.subr.mxu0 0.0
      %2202 = vmatpush1.msra.mxu0 %v2148
      %2203 = vmatprep.subr.mxu0 0.0
      %2204 = vmatpush2.msra.mxu0 0.0
      %2205 = vmatprep.subr.mxu0 0.0
      %2206 = vmatpush2.msra.mxu0 0.0
      %2207 = vmatprep.subr.mxu0 0.0
      %2208 = vmatpush2.msra.mxu0 0.0
      %2209 = vmatprep.subr.mxu0 0.0
      %2210 = vmatpush2.msra.mxu0 0.0
      %2211 = vmatprep.subr.mxu0 0.0
      %2212 = vmatpush2.msra.mxu0 0.0
      %2213 = vmatprep.subr.mxu0 0.0
      %2214 = vmatpush2.msra.mxu0 0.0
      %2215 = vmatprep.subr.mxu0 0.0
      %2216 = vmatpush2.msra.mxu0 0.0
      %2217 = vmatprep.subr.mxu0 0.0
      %2218 = vmatpush2.msra.mxu0 0.0
      %2219 = vmatprep.subr.mxu0 0.0
      %2220 = vmatpush2.msra.mxu0 0.0
      %2221 = vmatprep.subr.mxu0 0.0
      %2222 = vmatpush2.msra.mxu0 0.0
      %2223 = vmatprep.subr.mxu0 0.0
      %2224 = vmatpush2.msra.mxu0 0.0
      %2225 = vmatprep.subr.mxu0 0.0
      %2226 = vmatpush2.msra.mxu0 0.0
      %2227 = vmatprep.subr.mxu0 0.0
      %2228 = vmatpush2.msra.mxu0 0.0
      %2229 = vmatprep.subr.mxu0 0.0
      %2230 = vmatpush2.msra.mxu0 0.0
      %2231 = vmatprep.subr.mxu0 0.0
      %2232 = vmatpush2.msra.mxu0 0.0
      %2233 = vmatprep.subr.mxu0 0.0
      %2234 = vmatpush2.msra.mxu0 0.0
      %2235 = vmatprep.mubr.f32.mxu0 0.0
      %2236 = vmatmul.mubr.f32.gmra.mxu0 %v2100
      %v2237 = vpop.f32.mrf.mxu0
      %v2238 = vadd.f32 %v2169, %v2237
      %v2239 = vpop.f32.mrf.mxu0
      %2240 = vmatprep.mubr.f32.mxu0 0.0
      %2241 = vmatmul.mubr.f32.gmra.mxu0 %v2101
      %v2242 = vpop.f32.mrf.mxu0
      %v2243 = vadd.f32 %v2169, %v2242
      %v2244 = vpop.f32.mrf.mxu0
      %2245 = vmatprep.mubr.f32.mxu0 0.0
      %2246 = vmatmul.mubr.f32.gmra.mxu0 %v2102
      %v2247 = vpop.f32.mrf.mxu0
      %v2248 = vadd.f32 %v2169, %v2247
      %v2249 = vpop.f32.mrf.mxu0
      %2250 = vmatprep.mubr.f32.mxu0 0.0
      %2251 = vmatmul.mubr.f32.gmra.mxu0 %v2103
      %v2252 = vpop.f32.mrf.mxu0
      %v2253 = vadd.f32 %v2169, %v2252
      %v2254 = vpop.f32.mrf.mxu0
      %2255 = vmatprep.mubr.f32.mxu0 0.0
      %2256 = vmatmul.mubr.f32.gmra.mxu0 %v2104
      %v2257 = vpop.f32.mrf.mxu0
      %v2258 = vadd.f32 %v2169, %v2257
      %v2259 = vpop.f32.mrf.mxu0
      %2260 = vmatprep.mubr.f32.mxu0 0.0
      %2261 = vmatmul.mubr.f32.gmra.mxu0 %v2105
      %v2262 = vpop.f32.mrf.mxu0
      %v2263 = vadd.f32 %v2169, %v2262
      %v2264 = vpop.f32.mrf.mxu0
      %2265 = vmatprep.mubr.f32.mxu0 0.0
      %2266 = vmatmul.mubr.f32.gmra.mxu0 %v2106
      %v2267 = vpop.f32.mrf.mxu0
      %v2268 = vadd.f32 %v2169, %v2267
      %v2269 = vpop.f32.mrf.mxu0
      %2270 = vmatprep.mubr.f32.mxu0 0.0
      %2271 = vmatmul.mubr.f32.gmra.mxu0 %v2107
      %v2272 = vpop.f32.mrf.mxu0
      %v2273 = vadd.f32 %v2169, %v2272
      %v2274 = vpop.f32.mrf.mxu0
      %2275 = vmatprep.mubr.f32.mxu0 0.0
      %2276 = vmatmul.mubr.f32.gmra.mxu0 %v2108
      %v2277 = vpop.f32.mrf.mxu0
      %v2278 = vadd.f32 %v2169, %v2277
      %v2279 = vpop.f32.mrf.mxu0
      %2280 = vmatprep.mubr.f32.mxu0 0.0
      %2281 = vmatmul.mubr.f32.gmra.mxu0 %v2109
      %v2282 = vpop.f32.mrf.mxu0
      %v2283 = vadd.f32 %v2169, %v2282
      %v2284 = vpop.f32.mrf.mxu0
      %2285 = vmatprep.mubr.f32.mxu0 0.0
      %2286 = vmatmul.mubr.f32.gmra.mxu0 %v2110
      %v2287 = vpop.f32.mrf.mxu0
      %v2288 = vadd.f32 %v2169, %v2287
      %v2289 = vpop.f32.mrf.mxu0
      %2290 = vmatprep.mubr.f32.mxu0 0.0
      %2291 = vmatmul.mubr.f32.gmra.mxu0 %v2111
      %v2292 = vpop.f32.mrf.mxu0
      %v2293 = vadd.f32 %v2169, %v2292
      %v2294 = vpop.f32.mrf.mxu0
      %2295 = vmatprep.mubr.f32.mxu0 0.0
      %2296 = vmatmul.mubr.f32.gmra.mxu0 %v2112
      %v2297 = vpop.f32.mrf.mxu0
      %v2298 = vadd.f32 %v2169, %v2297
      %v2299 = vpop.f32.mrf.mxu0
      %2300 = vmatprep.mubr.f32.mxu0 0.0
      %2301 = vmatmul.mubr.f32.gmra.mxu0 %v2113
      %v2302 = vpop.f32.mrf.mxu0
      %v2303 = vadd.f32 %v2169, %v2302
      %v2304 = vpop.f32.mrf.mxu0
      %2305 = vmatprep.mubr.f32.mxu0 0.0
      %2306 = vmatmul.mubr.f32.gmra.mxu0 %v2114
      %v2307 = vpop.f32.mrf.mxu0
      %v2308 = vadd.f32 %v2169, %v2307
      %v2309 = vpop.f32.mrf.mxu0
      %2310 = vmatprep.mubr.f32.mxu0 0.0
      %2311 = vmatmul.mubr.f32.gmra.mxu0 %v2115
      %v2312 = vpop.f32.mrf.mxu0
      %v2313 = vadd.f32 %v2169, %v2312
      %v2314 = vpop.f32.mrf.mxu0
      %2315 = vmatprep.mubr.f32.mxu0 0.0
      %2316 = vmatmul.mubr.f32.gmra.mxu0 %v2116
      %v2317 = vpop.f32.mrf.mxu0
      %v2318 = vadd.f32 %v2169, %v2317
      %v2319 = vpop.f32.mrf.mxu0
      %2320 = vmatprep.mubr.f32.mxu0 0.0
      %2321 = vmatmul.mubr.f32.gmra.mxu0 %v2117
      %v2322 = vpop.f32.mrf.mxu0
      %v2323 = vadd.f32 %v2169, %v2322
      %v2324 = vpop.f32.mrf.mxu0
      %2325 = vmatprep.mubr.f32.mxu0 0.0
      %2326 = vmatmul.mubr.f32.gmra.mxu0 %v2118
      %v2327 = vpop.f32.mrf.mxu0
      %v2328 = vadd.f32 %v2169, %v2327
      %v2329 = vpop.f32.mrf.mxu0
      %2330 = vmatprep.mubr.f32.mxu0 0.0
      %2331 = vmatmul.mubr.f32.gmra.mxu0 %v2119
      %v2332 = vpop.f32.mrf.mxu0
      %v2333 = vadd.f32 %v2169, %v2332
      %v2334 = vpop.f32.mrf.mxu0
      %2335 = vmatprep.mubr.f32.mxu0 0.0
      %2336 = vmatmul.mubr.f32.gmra.mxu0 %v2120
      %v2337 = vpop.f32.mrf.mxu0
      %v2338 = vadd.f32 %v2169, %v2337
      %v2339 = vpop.f32.mrf.mxu0
      %2340 = vmatprep.mubr.f32.mxu0 0.0
      %2341 = vmatmul.mubr.f32.gmra.mxu0 %v2121
      %v2342 = vpop.f32.mrf.mxu0
      %v2343 = vadd.f32 %v2169, %v2342
      %v2344 = vpop.f32.mrf.mxu0
      %2345 = vmatprep.mubr.f32.mxu0 0.0
      %2346 = vmatmul.mubr.f32.gmra.mxu0 %v2122
      %v2347 = vpop.f32.mrf.mxu0
      %v2348 = vadd.f32 %v2169, %v2347
      %v2349 = vpop.f32.mrf.mxu0
      %2350 = vmatprep.mubr.f32.mxu0 0.0
      %2351 = vmatmul.mubr.f32.gmra.mxu0 %v2123
      %v2352 = vpop.f32.mrf.mxu0
      %v2353 = vadd.f32 %v2169, %v2352
      %v2354 = vpop.f32.mrf.mxu0
      %2355 = vmatprep.mubr.f32.mxu0 0.0
      %2356 = vmatmul.mubr.f32.gmra.mxu0 %v2124
      %v2357 = vpop.f32.mrf.mxu0
      %v2358 = vadd.f32 %v2169, %v2357
      %v2359 = vpop.f32.mrf.mxu0
      %2360 = vmatprep.mubr.f32.mxu0 0.0
      %2361 = vmatmul.mubr.f32.gmra.mxu0 %v2125
      %v2362 = vpop.f32.mrf.mxu0
      %v2363 = vadd.f32 %v2169, %v2362
      %v2364 = vpop.f32.mrf.mxu0
      %2365 = vmatprep.mubr.f32.mxu0 0.0
      %2366 = vmatmul.mubr.f32.gmra.mxu0 %v2126
      %v2367 = vpop.f32.mrf.mxu0
      %v2368 = vadd.f32 %v2169, %v2367
      %v2369 = vpop.f32.mrf.mxu0
      %2370 = vmatprep.mubr.f32.mxu0 0.0
      %2371 = vmatmul.mubr.f32.gmra.mxu0 %v2127
      %v2372 = vpop.f32.mrf.mxu0
      %v2373 = vadd.f32 %v2169, %v2372
      %v2374 = vpop.f32.mrf.mxu0
      %2375 = vmatprep.mubr.f32.mxu0 0.0
      %2376 = vmatmul.mubr.f32.gmra.mxu0 %v2128
      %v2377 = vpop.f32.mrf.mxu0
      %v2378 = vadd.f32 %v2169, %v2377
      %v2379 = vpop.f32.mrf.mxu0
      %2380 = vmatprep.mubr.f32.mxu0 0.0
      %2381 = vmatmul.mubr.f32.gmra.mxu0 %v2129
      %v2382 = vpop.f32.mrf.mxu0
      %v2383 = vadd.f32 %v2169, %v2382
      %v2384 = vpop.f32.mrf.mxu0
      %2385 = vmatprep.mubr.f32.mxu0 0.0
      %2386 = vmatmul.mubr.f32.gmra.mxu0 %v2130
      %v2387 = vpop.f32.mrf.mxu0
      %v2388 = vadd.f32 %v2169, %v2387
      %v2389 = vpop.f32.mrf.mxu0
      %2390 = vmatprep.mubr.f32.mxu0 0.0
      %2391 = vmatmul.mubr.f32.gmra.mxu0 %v2131
      %v2392 = vpop.f32.mrf.mxu0
      %v2393 = vadd.f32 %v2169, %v2392
      %v2394 = vpop.f32.mrf.mxu0
      %2395 = vmatprep.mubr.f32.mxu0 0.0
      %2396 = vmatmul.mubr.f32.gmra.mxu0 %v2132
      %v2397 = vpop.f32.mrf.mxu0
      %v2398 = vadd.f32 %v2169, %v2397
      %v2399 = vpop.f32.mrf.mxu0
      %2400 = vmatprep.mubr.f32.mxu0 0.0
      %2401 = vmatmul.mubr.f32.gmra.mxu0 %v2133
      %v2402 = vpop.f32.mrf.mxu0
      %v2403 = vadd.f32 %v2169, %v2402
      %v2404 = vpop.f32.mrf.mxu0
      %2405 = vmatprep.mubr.f32.mxu0 0.0
      %2406 = vmatmul.mubr.f32.gmra.mxu0 %v2134
      %v2407 = vpop.f32.mrf.mxu0
      %v2408 = vadd.f32 %v2169, %v2407
      %v2409 = vpop.f32.mrf.mxu0
      %2410 = vmatprep.mubr.f32.mxu0 0.0
      %2411 = vmatmul.mubr.f32.gmra.mxu0 %v2135
      %v2412 = vpop.f32.mrf.mxu0
      %v2413 = vadd.f32 %v2169, %v2412
      %v2414 = vpop.f32.mrf.mxu0
      %2415 = vmatprep.mubr.f32.mxu0 0.0
      %2416 = vmatmul.mubr.f32.gmra.mxu0 %v2136
      %v2417 = vpop.f32.mrf.mxu0
      %v2418 = vadd.f32 %v2169, %v2417
      %v2419 = vpop.f32.mrf.mxu0
      %2420 = vmatprep.mubr.f32.mxu0 0.0
      %2421 = vmatmul.mubr.f32.gmra.mxu0 %v2137
      %v2422 = vpop.f32.mrf.mxu0
      %v2423 = vadd.f32 %v2169, %v2422
      %v2424 = vpop.f32.mrf.mxu0
      %2425 = vmatprep.mubr.f32.mxu0 0.0
      %2426 = vmatmul.mubr.f32.gmra.mxu0 %v2138
      %v2427 = vpop.f32.mrf.mxu0
      %v2428 = vadd.f32 %v2169, %v2427
      %v2429 = vpop.f32.mrf.mxu0
      %2430 = vmatprep.mubr.f32.mxu0 0.0
      %2431 = vmatmul.mubr.f32.gmra.mxu0 %v2139
      %v2432 = vpop.f32.mrf.mxu0
      %v2433 = vadd.f32 %v2169, %v2432
      %v2434 = vpop.f32.mrf.mxu0
      %2435 = vmatprep.mubr.f32.mxu0 0.0
      %2436 = vmatmul.mubr.f32.gmra.mxu0 %v2140
      %v2437 = vpop.f32.mrf.mxu0
      %v2438 = vadd.f32 %v2169, %v2437
      %v2439 = vpop.f32.mrf.mxu0
      %2440 = vmatprep.mubr.f32.mxu0 0.0
      %2441 = vmatmul.mubr.f32.gmra.mxu0 %v2141
      %v2442 = vpop.f32.mrf.mxu0
      %v2443 = vadd.f32 %v2169, %v2442
      %v2444 = vpop.f32.mrf.mxu0
      %2445 = vmatprep.mubr.f32.mxu0 0.0
      %2446 = vmatmul.mubr.f32.gmra.mxu0 %v2142
      %v2447 = vpop.f32.mrf.mxu0
      %v2448 = vadd.f32 %v2169, %v2447
      %v2449 = vpop.f32.mrf.mxu0
      %2450 = vmatprep.mubr.f32.mxu0 0.0
      %2451 = vmatmul.mubr.f32.gmra.mxu0 %v2143
      %v2452 = vpop.f32.mrf.mxu0
      %v2453 = vadd.f32 %v2169, %v2452
      %v2454 = vpop.f32.mrf.mxu0
      %2455 = vmatprep.mubr.f32.mxu0 0.0
      %2456 = vmatmul.mubr.f32.gmra.mxu0 %v2144
      %v2457 = vpop.f32.mrf.mxu0
      %v2458 = vadd.f32 %v2169, %v2457
      %v2459 = vpop.f32.mrf.mxu0
      %2460 = vmatprep.mubr.f32.mxu0 0.0
      %2461 = vmatmul.mubr.f32.gmra.mxu0 %v2145
      %v2462 = vpop.f32.mrf.mxu0
      %v2463 = vadd.f32 %v2169, %v2462
      %v2464 = vpop.f32.mrf.mxu0
      %2465 = vmatprep.mubr.f32.mxu0 0.0
      %2466 = vmatmul.mubr.f32.gmra.mxu0 %v2146
      %v2467 = vpop.f32.mrf.mxu0
      %v2468 = vadd.f32 %v2169, %v2467
      %v2469 = vpop.f32.mrf.mxu0
      %2470 = vmatprep.mubr.f32.mxu0 0.0
      %2471 = vmatmul.mubr.f32.gmra.mxu0 %v2147
      %v2472 = vpop.f32.mrf.mxu0
      %v2473 = vadd.f32 %v2169, %v2472
      %v2474 = vpop.f32.mrf.mxu0
      %2475 = vdwg.mxu0
      %v2476 = vmax.f32 %v2238, 0.0
      %v2477 = vmax.f32 %v2243, 0.0
      %v2478 = vmax.f32 %v2248, 0.0
      %v2479 = vmax.f32 %v2253, 0.0
      %v2480 = vmax.f32 %v2258, 0.0
      %v2481 = vmax.f32 %v2263, 0.0
      %v2482 = vmax.f32 %v2268, 0.0
      %v2483 = vmax.f32 %v2273, 0.0
      %v2484 = vmax.f32 %v2278, 0.0
      %v2485 = vmax.f32 %v2283, 0.0
      %v2486 = vmax.f32 %v2288, 0.0
      %v2487 = vmax.f32 %v2293, 0.0
      %v2488 = vmax.f32 %v2298, 0.0
      %v2489 = vmax.f32 %v2303, 0.0
      %v2490 = vmax.f32 %v2308, 0.0
      %v2491 = vmax.f32 %v2313, 0.0
      %v2492 = vmax.f32 %v2318, 0.0
      %v2493 = vmax.f32 %v2323, 0.0
      %v2494 = vmax.f32 %v2328, 0.0
      %v2495 = vmax.f32 %v2333, 0.0
      %v2496 = vmax.f32 %v2338, 0.0
      %v2497 = vmax.f32 %v2343, 0.0
      %v2498 = vmax.f32 %v2348, 0.0
      %v2499 = vmax.f32 %v2353, 0.0
      %v2500 = vmax.f32 %v2358, 0.0
      %v2501 = vmax.f32 %v2363, 0.0
      %v2502 = vmax.f32 %v2368, 0.0
      %v2503 = vmax.f32 %v2373, 0.0
      %v2504 = vmax.f32 %v2378, 0.0
      %v2505 = vmax.f32 %v2383, 0.0
      %v2506 = vmax.f32 %v2388, 0.0
      %v2507 = vmax.f32 %v2393, 0.0
      %v2508 = vmax.f32 %v2398, 0.0
      %v2509 = vmax.f32 %v2403, 0.0
      %v2510 = vmax.f32 %v2408, 0.0
      %v2511 = vmax.f32 %v2413, 0.0
      %v2512 = vmax.f32 %v2418, 0.0
      %v2513 = vmax.f32 %v2423, 0.0
      %v2514 = vmax.f32 %v2428, 0.0
      %v2515 = vmax.f32 %v2433, 0.0
      %v2516 = vmax.f32 %v2438, 0.0
      %v2517 = vmax.f32 %v2443, 0.0
      %v2518 = vmax.f32 %v2448, 0.0
      %v2519 = vmax.f32 %v2453, 0.0
      %v2520 = vmax.f32 %v2458, 0.0
      %v2521 = vmax.f32 %v2463, 0.0
      %v2522 = vmax.f32 %v2468, 0.0
      %v2523 = vmax.f32 %v2473, 0.0
      %2525 = vset.pattern.permute.xlu0 0
      %2526 = vperm.xlu0 %2525, %v602
      %v2527 = vpop.permute.xlu0 %2526
      %2530 = vset.pattern.permute.xlu0 0
      %2531 = vperm.xlu0 %2530, %v603
      %v2532 = vpop.permute.xlu0 %2531
      %2535 = vset.pattern.permute.xlu0 0
      %2536 = vperm.xlu0 %2535, %v604
      %v2537 = vpop.permute.xlu0 %2536
      %2540 = vset.pattern.permute.xlu0 0
      %2541 = vperm.xlu0 %2540, %v605
      %v2542 = vpop.permute.xlu0 %2541
      %2545 = vset.pattern.permute.xlu0 0
      %2546 = vperm.xlu0 %2545, %v606
      %v2547 = vpop.permute.xlu0 %2546
      %2550 = vset.pattern.permute.xlu0 0
      %2551 = vperm.xlu0 %2550, %v607
      %v2552 = vpop.permute.xlu0 %2551
      %2555 = vset.pattern.permute.xlu0 0
      %2556 = vperm.xlu0 %2555, %v608
      %v2557 = vpop.permute.xlu0 %2556
      %2560 = vset.pattern.permute.xlu0 0
      %2561 = vperm.xlu0 %2560, %v609
      %v2562 = vpop.permute.xlu0 %2561
      %2565 = vset.pattern.permute.xlu0 0
      %2566 = vperm.xlu0 %2565, %v610
      %v2567 = vpop.permute.xlu0 %2566
      %2570 = vset.pattern.permute.xlu0 0
      %2571 = vperm.xlu0 %2570, %v611
      %v2572 = vpop.permute.xlu0 %2571
      %2575 = vset.pattern.permute.xlu0 0
      %2576 = vperm.xlu0 %2575, %v612
      %v2577 = vpop.permute.xlu0 %2576
      %2580 = vset.pattern.permute.xlu0 0
      %2581 = vperm.xlu0 %2580, %v613
      %v2582 = vpop.permute.xlu0 %2581
      %2585 = vset.pattern.permute.xlu0 0
      %2586 = vperm.xlu0 %2585, %v614
      %v2587 = vpop.permute.xlu0 %2586
      %2590 = vset.pattern.permute.xlu0 0
      %2591 = vperm.xlu0 %2590, %v615
      %v2592 = vpop.permute.xlu0 %2591
      %2595 = vset.pattern.permute.xlu0 0
      %2596 = vperm.xlu0 %2595, %v616
      %v2597 = vpop.permute.xlu0 %2596
      %2600 = vset.pattern.permute.xlu0 0
      %2601 = vperm.xlu0 %2600, %v617
      %v2602 = vpop.permute.xlu0 %2601
      %2605 = vset.pattern.permute.xlu0 0
      %2606 = vperm.xlu0 %2605, %v618
      %v2607 = vpop.permute.xlu0 %2606
      %2610 = vset.pattern.permute.xlu0 0
      %2611 = vperm.xlu0 %2610, %v619
      %v2612 = vpop.permute.xlu0 %2611
      %2615 = vset.pattern.permute.xlu0 0
      %2616 = vperm.xlu0 %2615, %v620
      %v2617 = vpop.permute.xlu0 %2616
      %2620 = vset.pattern.permute.xlu0 0
      %2621 = vperm.xlu0 %2620, %v621
      %v2622 = vpop.permute.xlu0 %2621
      %2625 = vset.pattern.permute.xlu0 0
      %2626 = vperm.xlu0 %2625, %v622
      %v2627 = vpop.permute.xlu0 %2626
      %2630 = vset.pattern.permute.xlu0 0
      %2631 = vperm.xlu0 %2630, %v623
      %v2632 = vpop.permute.xlu0 %2631
      %2635 = vset.pattern.permute.xlu0 0
      %2636 = vperm.xlu0 %2635, %v624
      %v2637 = vpop.permute.xlu0 %2636
      %2640 = vset.pattern.permute.xlu0 0
      %2641 = vperm.xlu0 %2640, %v625
      %v2642 = vpop.permute.xlu0 %2641
      %2645 = vset.pattern.permute.xlu0 0
      %2646 = vperm.xlu0 %2645, %v626
      %v2647 = vpop.permute.xlu0 %2646
      %2650 = vset.pattern.permute.xlu0 0
      %2651 = vperm.xlu0 %2650, %v627
      %v2652 = vpop.permute.xlu0 %2651
      %2655 = vset.pattern.permute.xlu0 0
      %2656 = vperm.xlu0 %2655, %v628
      %v2657 = vpop.permute.xlu0 %2656
      %2660 = vset.pattern.permute.xlu0 0
      %2661 = vperm.xlu0 %2660, %v629
      %v2662 = vpop.permute.xlu0 %2661
      %2665 = vset.pattern.permute.xlu0 0
      %2666 = vperm.xlu0 %2665, %v630
      %v2667 = vpop.permute.xlu0 %2666
      %2670 = vset.pattern.permute.xlu0 0
      %2671 = vperm.xlu0 %2670, %v631
      %v2672 = vpop.permute.xlu0 %2671
      %2675 = vset.pattern.permute.xlu0 0
      %2676 = vperm.xlu0 %2675, %v632
      %v2677 = vpop.permute.xlu0 %2676
      %2680 = vset.pattern.permute.xlu0 0
      %2681 = vperm.xlu0 %2680, %v633
      %v2682 = vpop.permute.xlu0 %2681
      %2685 = vset.pattern.permute.xlu0 0
      %2686 = vperm.xlu0 %2685, %v634
      %v2687 = vpop.permute.xlu0 %2686
      %2690 = vset.pattern.permute.xlu0 0
      %2691 = vperm.xlu0 %2690, %v635
      %v2692 = vpop.permute.xlu0 %2691
      %2695 = vset.pattern.permute.xlu0 0
      %2696 = vperm.xlu0 %2695, %v636
      %v2697 = vpop.permute.xlu0 %2696
      %2700 = vset.pattern.permute.xlu0 0
      %2701 = vperm.xlu0 %2700, %v637
      %v2702 = vpop.permute.xlu0 %2701
      %2705 = vset.pattern.permute.xlu0 0
      %2706 = vperm.xlu0 %2705, %v638
      %v2707 = vpop.permute.xlu0 %2706
      %2710 = vset.pattern.permute.xlu0 0
      %2711 = vperm.xlu0 %2710, %v639
      %v2712 = vpop.permute.xlu0 %2711
      %2715 = vset.pattern.permute.xlu0 0
      %2716 = vperm.xlu0 %2715, %v640
      %v2717 = vpop.permute.xlu0 %2716
      %2720 = vset.pattern.permute.xlu0 0
      %2721 = vperm.xlu0 %2720, %v641
      %v2722 = vpop.permute.xlu0 %2721
      %2725 = vset.pattern.permute.xlu0 0
      %2726 = vperm.xlu0 %2725, %v642
      %v2727 = vpop.permute.xlu0 %2726
      %2730 = vset.pattern.permute.xlu0 0
      %2731 = vperm.xlu0 %2730, %v643
      %v2732 = vpop.permute.xlu0 %2731
      %2735 = vset.pattern.permute.xlu0 0
      %2736 = vperm.xlu0 %2735, %v644
      %v2737 = vpop.permute.xlu0 %2736
      %2740 = vset.pattern.permute.xlu0 0
      %2741 = vperm.xlu0 %2740, %v645
      %v2742 = vpop.permute.xlu0 %2741
      %2745 = vset.pattern.permute.xlu0 0
      %2746 = vperm.xlu0 %2745, %v646
      %v2747 = vpop.permute.xlu0 %2746
      %2750 = vset.pattern.permute.xlu0 0
      %2751 = vperm.xlu0 %2750, %v647
      %v2752 = vpop.permute.xlu0 %2751
      %2755 = vset.pattern.permute.xlu0 0
      %2756 = vperm.xlu0 %2755, %v648
      %v2757 = vpop.permute.xlu0 %2756
      %2760 = vset.pattern.permute.xlu0 0
      %2761 = vperm.xlu0 %2760, %v649
      %v2762 = vpop.permute.xlu0 %2761
      %v2764 = vmul.f32 %v2476, %v2527
      %v2765 = vmul.f32 %v2477, %v2532
      %v2766 = vmul.f32 %v2478, %v2537
      %v2767 = vmul.f32 %v2479, %v2542
      %v2768 = vmul.f32 %v2480, %v2547
      %v2769 = vmul.f32 %v2481, %v2552
      %v2770 = vmul.f32 %v2482, %v2557
      %v2771 = vmul.f32 %v2483, %v2562
      %v2772 = vmul.f32 %v2484, %v2567
      %v2773 = vmul.f32 %v2485, %v2572
      %v2774 = vmul.f32 %v2486, %v2577
      %v2775 = vmul.f32 %v2487, %v2582
      %v2776 = vmul.f32 %v2488, %v2587
      %v2777 = vmul.f32 %v2489, %v2592
      %v2778 = vmul.f32 %v2490, %v2597
      %v2779 = vmul.f32 %v2491, %v2602
      %v2780 = vmul.f32 %v2492, %v2607
      %v2781 = vmul.f32 %v2493, %v2612
      %v2782 = vmul.f32 %v2494, %v2617
      %v2783 = vmul.f32 %v2495, %v2622
      %v2784 = vmul.f32 %v2496, %v2627
      %v2785 = vmul.f32 %v2497, %v2632
      %v2786 = vmul.f32 %v2498, %v2637
      %v2787 = vmul.f32 %v2499, %v2642
      %v2788 = vmul.f32 %v2500, %v2647
      %v2789 = vmul.f32 %v2501, %v2652
      %v2790 = vmul.f32 %v2502, %v2657
      %v2791 = vmul.f32 %v2503, %v2662
      %v2792 = vmul.f32 %v2504, %v2667
      %v2793 = vmul.f32 %v2505, %v2672
      %v2794 = vmul.f32 %v2506, %v2677
      %v2795 = vmul.f32 %v2507, %v2682
      %v2796 = vmul.f32 %v2508, %v2687
      %v2797 = vmul.f32 %v2509, %v2692
      %v2798 = vmul.f32 %v2510, %v2697
      %v2799 = vmul.f32 %v2511, %v2702
      %v2800 = vmul.f32 %v2512, %v2707
      %v2801 = vmul.f32 %v2513, %v2712
      %v2802 = vmul.f32 %v2514, %v2717
      %v2803 = vmul.f32 %v2515, %v2722
      %v2804 = vmul.f32 %v2516, %v2727
      %v2805 = vmul.f32 %v2517, %v2732
      %v2806 = vmul.f32 %v2518, %v2737
      %v2807 = vmul.f32 %v2519, %v2742
      %v2808 = vmul.f32 %v2520, %v2747
      %v2809 = vmul.f32 %v2521, %v2752
      %v2810 = vmul.f32 %v2522, %v2757
      %v2811 = vmul.f32 %v2523, %v2762
      %v2812 = vadd.f32 %v2764, %v2765
      %v2813 = vadd.f32 %v2812, %v2766
      %v2814 = vadd.f32 %v2813, %v2767
      %v2815 = vadd.f32 %v2814, %v2768
      %v2816 = vadd.f32 %v2815, %v2769
      %v2817 = vadd.f32 %v2816, %v2770
      %v2818 = vadd.f32 %v2817, %v2771
      %v2819 = vadd.f32 %v2818, %v2772
      %v2820 = vadd.f32 %v2819, %v2773
      %v2821 = vadd.f32 %v2820, %v2774
      %v2822 = vadd.f32 %v2821, %v2775
      %v2823 = vadd.f32 %v2822, %v2776
      %v2824 = vadd.f32 %v2823, %v2777
      %v2825 = vadd.f32 %v2824, %v2778
      %v2826 = vadd.f32 %v2825, %v2779
      %v2827 = vadd.f32 %v2826, %v2780
      %v2828 = vadd.f32 %v2827, %v2781
      %v2829 = vadd.f32 %v2828, %v2782
      %v2830 = vadd.f32 %v2829, %v2783
      %v2831 = vadd.f32 %v2830, %v2784
      %v2832 = vadd.f32 %v2831, %v2785
      %v2833 = vadd.f32 %v2832, %v2786
      %v2834 = vadd.f32 %v2833, %v2787
      %v2835 = vadd.f32 %v2834, %v2788
      %v2836 = vadd.f32 %v2835, %v2789
      %v2837 = vadd.f32 %v2836, %v2790
      %v2838 = vadd.f32 %v2837, %v2791
      %v2839 = vadd.f32 %v2838, %v2792
      %v2840 = vadd.f32 %v2839, %v2793
      %v2841 = vadd.f32 %v2840, %v2794
      %v2842 = vadd.f32 %v2841, %v2795
      %v2843 = vadd.f32 %v2842, %v2796
      %v2844 = vadd.f32 %v2843, %v2797
      %v2845 = vadd.f32 %v2844, %v2798
      %v2846 = vadd.f32 %v2845, %v2799
      %v2847 = vadd.f32 %v2846, %v2800
      %v2848 = vadd.f32 %v2847, %v2801
      %v2849 = vadd.f32 %v2848, %v2802
      %v2850 = vadd.f32 %v2849, %v2803
      %v2851 = vadd.f32 %v2850, %v2804
      %v2852 = vadd.f32 %v2851, %v2805
      %v2853 = vadd.f32 %v2852, %v2806
      %v2854 = vadd.f32 %v2853, %v2807
      %v2855 = vadd.f32 %v2854, %v2808
      %v2856 = vadd.f32 %v2855, %v2809
      %v2857 = vadd.f32 %v2856, %v2810
      %v2858 = vadd.f32 %v2857, %v2811
      %v2859 = vrot.slane %v2858, 4
      %v2860 = vadd.f32 %v2858, %v2859
      %v2861 = vrot.slane %v2860, 2
      %v2862 = vadd.f32 %v2860, %v2861
      %v2863 = vrot.slane %v2862, 1
      %v2864 = vadd.f32 %v2862, %v2863
      %v2865 = vmul.f32 %v2864, 0.0033333334
      %v2866 = vsub.f32 %v2764, %v2865
      %v2867 = vsub.f32 %v2765, %v2865
      %v2868 = vsub.f32 %v2766, %v2865
      %v2869 = vsub.f32 %v2767, %v2865
      %v2870 = vsub.f32 %v2768, %v2865
      %v2871 = vsub.f32 %v2769, %v2865
      %v2872 = vsub.f32 %v2770, %v2865
      %v2873 = vsub.f32 %v2771, %v2865
      %v2874 = vsub.f32 %v2772, %v2865
      %v2875 = vsub.f32 %v2773, %v2865
      %v2876 = vsub.f32 %v2774, %v2865
      %v2877 = vsub.f32 %v2775, %v2865
      %v2878 = vsub.f32 %v2776, %v2865
      %v2879 = vsub.f32 %v2777, %v2865
      %v2880 = vsub.f32 %v2778, %v2865
      %v2881 = vsub.f32 %v2779, %v2865
      %v2882 = vsub.f32 %v2780, %v2865
      %v2883 = vsub.f32 %v2781, %v2865
      %v2884 = vsub.f32 %v2782, %v2865
      %v2885 = vsub.f32 %v2783, %v2865
      %v2886 = vsub.f32 %v2784, %v2865
      %v2887 = vsub.f32 %v2785, %v2865
      %v2888 = vsub.f32 %v2786, %v2865
      %v2889 = vsub.f32 %v2787, %v2865
      %v2890 = vsub.f32 %v2788, %v2865
      %v2891 = vsub.f32 %v2789, %v2865
      %v2892 = vsub.f32 %v2790, %v2865
      %v2893 = vsub.f32 %v2791, %v2865
      %v2894 = vsub.f32 %v2792, %v2865
      %v2895 = vsub.f32 %v2793, %v2865
      %v2896 = vsub.f32 %v2794, %v2865
      %v2897 = vsub.f32 %v2795, %v2865
      %v2898 = vsub.f32 %v2796, %v2865
      %v2899 = vsub.f32 %v2797, %v2865
      %v2900 = vsub.f32 %v2798, %v2865
      %v2901 = vsub.f32 %v2799, %v2865
      %v2902 = vsub.f32 %v2800, %v2865
      %v2903 = vsub.f32 %v2801, %v2865
      %v2904 = vsub.f32 %v2802, %v2865
      %v2905 = vsub.f32 %v2803, %v2865
      %v2906 = vsub.f32 %v2804, %v2865
      %v2907 = vsub.f32 %v2805, %v2865
      %v2908 = vsub.f32 %v2806, %v2865
      %v2909 = vsub.f32 %v2807, %v2865
      %v2910 = vsub.f32 %v2808, %v2865
      %v2911 = vsub.f32 %v2809, %v2865
      %v2912 = vsub.f32 %v2810, %v2865
      %v2913 = vsub.f32 %v2811, %v2865
      %v2914 = vmul.f32 %v2866, %v2527
      %v2915 = vmul.f32 %v2867, %v2532
      %v2916 = vmul.f32 %v2868, %v2537
      %v2917 = vmul.f32 %v2869, %v2542
      %v2918 = vmul.f32 %v2870, %v2547
      %v2919 = vmul.f32 %v2871, %v2552
      %v2920 = vmul.f32 %v2872, %v2557
      %v2921 = vmul.f32 %v2873, %v2562
      %v2922 = vmul.f32 %v2874, %v2567
      %v2923 = vmul.f32 %v2875, %v2572
      %v2924 = vmul.f32 %v2876, %v2577
      %v2925 = vmul.f32 %v2877, %v2582
      %v2926 = vmul.f32 %v2878, %v2587
      %v2927 = vmul.f32 %v2879, %v2592
      %v2928 = vmul.f32 %v2880, %v2597
      %v2929 = vmul.f32 %v2881, %v2602
      %v2930 = vmul.f32 %v2882, %v2607
      %v2931 = vmul.f32 %v2883, %v2612
      %v2932 = vmul.f32 %v2884, %v2617
      %v2933 = vmul.f32 %v2885, %v2622
      %v2934 = vmul.f32 %v2886, %v2627
      %v2935 = vmul.f32 %v2887, %v2632
      %v2936 = vmul.f32 %v2888, %v2637
      %v2937 = vmul.f32 %v2889, %v2642
      %v2938 = vmul.f32 %v2890, %v2647
      %v2939 = vmul.f32 %v2891, %v2652
      %v2940 = vmul.f32 %v2892, %v2657
      %v2941 = vmul.f32 %v2893, %v2662
      %v2942 = vmul.f32 %v2894, %v2667
      %v2943 = vmul.f32 %v2895, %v2672
      %v2944 = vmul.f32 %v2896, %v2677
      %v2945 = vmul.f32 %v2897, %v2682
      %v2946 = vmul.f32 %v2898, %v2687
      %v2947 = vmul.f32 %v2899, %v2692
      %v2948 = vmul.f32 %v2900, %v2697
      %v2949 = vmul.f32 %v2901, %v2702
      %v2950 = vmul.f32 %v2902, %v2707
      %v2951 = vmul.f32 %v2903, %v2712
      %v2952 = vmul.f32 %v2904, %v2717
      %v2953 = vmul.f32 %v2905, %v2722
      %v2954 = vmul.f32 %v2906, %v2727
      %v2955 = vmul.f32 %v2907, %v2732
      %v2956 = vmul.f32 %v2908, %v2737
      %v2957 = vmul.f32 %v2909, %v2742
      %v2958 = vmul.f32 %v2910, %v2747
      %v2959 = vmul.f32 %v2911, %v2752
      %v2960 = vmul.f32 %v2912, %v2757
      %v2961 = vmul.f32 %v2913, %v2762
      %v2962 = vmul.f32 %v2914, %v2914
      %v2963 = vmul.f32 %v2915, %v2915
      %v2964 = vmul.f32 %v2916, %v2916
      %v2965 = vmul.f32 %v2917, %v2917
      %v2966 = vmul.f32 %v2918, %v2918
      %v2967 = vmul.f32 %v2919, %v2919
      %v2968 = vmul.f32 %v2920, %v2920
      %v2969 = vmul.f32 %v2921, %v2921
      %v2970 = vmul.f32 %v2922, %v2922
      %v2971 = vmul.f32 %v2923, %v2923
      %v2972 = vmul.f32 %v2924, %v2924
      %v2973 = vmul.f32 %v2925, %v2925
      %v2974 = vmul.f32 %v2926, %v2926
      %v2975 = vmul.f32 %v2927, %v2927
      %v2976 = vmul.f32 %v2928, %v2928
      %v2977 = vmul.f32 %v2929, %v2929
      %v2978 = vmul.f32 %v2930, %v2930
      %v2979 = vmul.f32 %v2931, %v2931
      %v2980 = vmul.f32 %v2932, %v2932
      %v2981 = vmul.f32 %v2933, %v2933
      %v2982 = vmul.f32 %v2934, %v2934
      %v2983 = vmul.f32 %v2935, %v2935
      %v2984 = vmul.f32 %v2936, %v2936
      %v2985 = vmul.f32 %v2937, %v2937
      %v2986 = vmul.f32 %v2938, %v2938
      %v2987 = vmul.f32 %v2939, %v2939
      %v2988 = vmul.f32 %v2940, %v2940
      %v2989 = vmul.f32 %v2941, %v2941
      %v2990 = vmul.f32 %v2942, %v2942
      %v2991 = vmul.f32 %v2943, %v2943
      %v2992 = vmul.f32 %v2944, %v2944
      %v2993 = vmul.f32 %v2945, %v2945
      %v2994 = vmul.f32 %v2946, %v2946
      %v2995 = vmul.f32 %v2947, %v2947
      %v2996 = vmul.f32 %v2948, %v2948
      %v2997 = vmul.f32 %v2949, %v2949
      %v2998 = vmul.f32 %v2950, %v2950
      %v2999 = vmul.f32 %v2951, %v2951
      %v3000 = vmul.f32 %v2952, %v2952
      %v3001 = vmul.f32 %v2953, %v2953
      %v3002 = vmul.f32 %v2954, %v2954
      %v3003 = vmul.f32 %v2955, %v2955
      %v3004 = vmul.f32 %v2956, %v2956
      %v3005 = vmul.f32 %v2957, %v2957
      %v3006 = vmul.f32 %v2958, %v2958
      %v3007 = vmul.f32 %v2959, %v2959
      %v3008 = vmul.f32 %v2960, %v2960
      %v3009 = vmul.f32 %v2961, %v2961
      %v3010 = vadd.f32 %v2962, %v2963
      %v3011 = vadd.f32 %v3010, %v2964
      %v3012 = vadd.f32 %v3011, %v2965
      %v3013 = vadd.f32 %v3012, %v2966
      %v3014 = vadd.f32 %v3013, %v2967
      %v3015 = vadd.f32 %v3014, %v2968
      %v3016 = vadd.f32 %v3015, %v2969
      %v3017 = vadd.f32 %v3016, %v2970
      %v3018 = vadd.f32 %v3017, %v2971
      %v3019 = vadd.f32 %v3018, %v2972
      %v3020 = vadd.f32 %v3019, %v2973
      %v3021 = vadd.f32 %v3020, %v2974
      %v3022 = vadd.f32 %v3021, %v2975
      %v3023 = vadd.f32 %v3022, %v2976
      %v3024 = vadd.f32 %v3023, %v2977
      %v3025 = vadd.f32 %v3024, %v2978
      %v3026 = vadd.f32 %v3025, %v2979
      %v3027 = vadd.f32 %v3026, %v2980
      %v3028 = vadd.f32 %v3027, %v2981
      %v3029 = vadd.f32 %v3028, %v2982
      %v3030 = vadd.f32 %v3029, %v2983
      %v3031 = vadd.f32 %v3030, %v2984
      %v3032 = vadd.f32 %v3031, %v2985
      %v3033 = vadd.f32 %v3032, %v2986
      %v3034 = vadd.f32 %v3033, %v2987
      %v3035 = vadd.f32 %v3034, %v2988
      %v3036 = vadd.f32 %v3035, %v2989
      %v3037 = vadd.f32 %v3036, %v2990
      %v3038 = vadd.f32 %v3037, %v2991
      %v3039 = vadd.f32 %v3038, %v2992
      %v3040 = vadd.f32 %v3039, %v2993
      %v3041 = vadd.f32 %v3040, %v2994
      %v3042 = vadd.f32 %v3041, %v2995
      %v3043 = vadd.f32 %v3042, %v2996
      %v3044 = vadd.f32 %v3043, %v2997
      %v3045 = vadd.f32 %v3044, %v2998
      %v3046 = vadd.f32 %v3045, %v2999
      %v3047 = vadd.f32 %v3046, %v3000
      %v3048 = vadd.f32 %v3047, %v3001
      %v3049 = vadd.f32 %v3048, %v3002
      %v3050 = vadd.f32 %v3049, %v3003
      %v3051 = vadd.f32 %v3050, %v3004
      %v3052 = vadd.f32 %v3051, %v3005
      %v3053 = vadd.f32 %v3052, %v3006
      %v3054 = vadd.f32 %v3053, %v3007
      %v3055 = vadd.f32 %v3054, %v3008
      %v3056 = vadd.f32 %v3055, %v3009
      %v3057 = vrot.slane %v3056, 4
      %v3058 = vadd.f32 %v3056, %v3057
      %v3059 = vrot.slane %v3058, 2
      %v3060 = vadd.f32 %v3058, %v3059
      %v3061 = vrot.slane %v3060, 1
      %v3062 = vadd.f32 %v3060, %v3061
      %v3063 = vmul.f32 %v3062, 0.0033333334
      %v3064 = vld [vmem:[%s488] sm:$0x1]
      %v3065 = vadd.f32 %v3063, 1e-05
      %v3066 = vrsqrt.pop %v3065
      %v3067 = vmul.f32 %v3064, %v3066
      %v3069 = vlaneseq
      %v3070 = vshrl.u32 %v3069, 7
      %v3071 = vsub.s32 0, %v3070
      %v3072 = vrot.slane %v3067, %v3071
      %v3074 = vmul.f32 %v2914, %v3072
      %v3075 = vmul.f32 %v2915, %v3072
      %v3076 = vmul.f32 %v2916, %v3072
      %v3077 = vmul.f32 %v2917, %v3072
      %v3078 = vmul.f32 %v2918, %v3072
      %v3079 = vmul.f32 %v2919, %v3072
      %v3080 = vmul.f32 %v2920, %v3072
      %v3081 = vmul.f32 %v2921, %v3072
      %v3082 = vmul.f32 %v2922, %v3072
      %v3083 = vmul.f32 %v2923, %v3072
      %v3084 = vmul.f32 %v2924, %v3072
      %v3085 = vmul.f32 %v2925, %v3072
      %v3086 = vmul.f32 %v2926, %v3072
      %v3087 = vmul.f32 %v2927, %v3072
      %v3088 = vmul.f32 %v2928, %v3072
      %v3089 = vmul.f32 %v2929, %v3072
      %v3090 = vmul.f32 %v2930, %v3072
      %v3091 = vmul.f32 %v2931, %v3072
      %v3092 = vmul.f32 %v2932, %v3072
      %v3093 = vmul.f32 %v2933, %v3072
      %v3094 = vmul.f32 %v2934, %v3072
      %v3095 = vmul.f32 %v2935, %v3072
      %v3096 = vmul.f32 %v2936, %v3072
      %v3097 = vmul.f32 %v2937, %v3072
      %v3098 = vmul.f32 %v2938, %v3072
      %v3099 = vmul.f32 %v2939, %v3072
      %v3100 = vmul.f32 %v2940, %v3072
      %v3101 = vmul.f32 %v2941, %v3072
      %v3102 = vmul.f32 %v2942, %v3072
      %v3103 = vmul.f32 %v2943, %v3072
      %v3104 = vmul.f32 %v2944, %v3072
      %v3105 = vmul.f32 %v2945, %v3072
      %v3106 = vmul.f32 %v2946, %v3072
      %v3107 = vmul.f32 %v2947, %v3072
      %v3108 = vmul.f32 %v2948, %v3072
      %v3109 = vmul.f32 %v2949, %v3072
      %v3110 = vmul.f32 %v2950, %v3072
      %v3111 = vmul.f32 %v2951, %v3072
      %v3112 = vmul.f32 %v2952, %v3072
      %v3113 = vmul.f32 %v2953, %v3072
      %v3114 = vmul.f32 %v2954, %v3072
      %v3115 = vmul.f32 %v2955, %v3072
      %v3116 = vmul.f32 %v2956, %v3072
      %v3117 = vmul.f32 %v2957, %v3072
      %v3118 = vmul.f32 %v2958, %v3072
      %v3119 = vmul.f32 %v2959, %v3072
      %v3120 = vmul.f32 %v2960, %v3072
      %v3121 = vmul.f32 %v2961, %v3072
      %v3122 = vld [vmem:[%s491] sm:$0x1]
      %v3124 = vlaneseq
      %v3125 = vshrl.u32 %v3124, 7
      %v3126 = vsub.s32 0, %v3125
      %v3127 = vrot.slane %v3122, %v3126
      %v3129 = vadd.f32 %v3074, %v3127
      %v3130 = vadd.f32 %v3075, %v3127
      %v3131 = vadd.f32 %v3076, %v3127
      %v3132 = vadd.f32 %v3077, %v3127
      %v3133 = vadd.f32 %v3078, %v3127
      %v3134 = vadd.f32 %v3079, %v3127
      %v3135 = vadd.f32 %v3080, %v3127
      %v3136 = vadd.f32 %v3081, %v3127
      %v3137 = vadd.f32 %v3082, %v3127
      %v3138 = vadd.f32 %v3083, %v3127
      %v3139 = vadd.f32 %v3084, %v3127
      %v3140 = vadd.f32 %v3085, %v3127
      %v3141 = vadd.f32 %v3086, %v3127
      %v3142 = vadd.f32 %v3087, %v3127
      %v3143 = vadd.f32 %v3088, %v3127
      %v3144 = vadd.f32 %v3089, %v3127
      %v3145 = vadd.f32 %v3090, %v3127
      %v3146 = vadd.f32 %v3091, %v3127
      %v3147 = vadd.f32 %v3092, %v3127
      %v3148 = vadd.f32 %v3093, %v3127
      %v3149 = vadd.f32 %v3094, %v3127
      %v3150 = vadd.f32 %v3095, %v3127
      %v3151 = vadd.f32 %v3096, %v3127
      %v3152 = vadd.f32 %v3097, %v3127
      %v3153 = vadd.f32 %v3098, %v3127
      %v3154 = vadd.f32 %v3099, %v3127
      %v3155 = vadd.f32 %v3100, %v3127
      %v3156 = vadd.f32 %v3101, %v3127
      %v3157 = vadd.f32 %v3102, %v3127
      %v3158 = vadd.f32 %v3103, %v3127
      %v3159 = vadd.f32 %v3104, %v3127
      %v3160 = vadd.f32 %v3105, %v3127
      %v3161 = vadd.f32 %v3106, %v3127
      %v3162 = vadd.f32 %v3107, %v3127
      %v3163 = vadd.f32 %v3108, %v3127
      %v3164 = vadd.f32 %v3109, %v3127
      %v3165 = vadd.f32 %v3110, %v3127
      %v3166 = vadd.f32 %v3111, %v3127
      %v3167 = vadd.f32 %v3112, %v3127
      %v3168 = vadd.f32 %v3113, %v3127
      %v3169 = vadd.f32 %v3114, %v3127
      %v3170 = vadd.f32 %v3115, %v3127
      %v3171 = vadd.f32 %v3116, %v3127
      %v3172 = vadd.f32 %v3117, %v3127
      %v3173 = vadd.f32 %v3118, %v3127
      %v3174 = vadd.f32 %v3119, %v3127
      %v3175 = vadd.f32 %v3120, %v3127
      %v3176 = vadd.f32 %v3121, %v3127
      %v3177 = vmul.f32 %v3129, %v2527
      %v3178 = vmul.f32 %v3130, %v2532
      %v3179 = vmul.f32 %v3131, %v2537
      %v3180 = vmul.f32 %v3132, %v2542
      %v3181 = vmul.f32 %v3133, %v2547
      %v3182 = vmul.f32 %v3134, %v2552
      %v3183 = vmul.f32 %v3135, %v2557
      %v3184 = vmul.f32 %v3136, %v2562
      %v3185 = vmul.f32 %v3137, %v2567
      %v3186 = vmul.f32 %v3138, %v2572
      %v3187 = vmul.f32 %v3139, %v2577
      %v3188 = vmul.f32 %v3140, %v2582
      %v3189 = vmul.f32 %v3141, %v2587
      %v3190 = vmul.f32 %v3142, %v2592
      %v3191 = vmul.f32 %v3143, %v2597
      %v3192 = vmul.f32 %v3144, %v2602
      %v3193 = vmul.f32 %v3145, %v2607
      %v3194 = vmul.f32 %v3146, %v2612
      %v3195 = vmul.f32 %v3147, %v2617
      %v3196 = vmul.f32 %v3148, %v2622
      %v3197 = vmul.f32 %v3149, %v2627
      %v3198 = vmul.f32 %v3150, %v2632
      %v3199 = vmul.f32 %v3151, %v2637
      %v3200 = vmul.f32 %v3152, %v2642
      %v3201 = vmul.f32 %v3153, %v2647
      %v3202 = vmul.f32 %v3154, %v2652
      %v3203 = vmul.f32 %v3155, %v2657
      %v3204 = vmul.f32 %v3156, %v2662
      %v3205 = vmul.f32 %v3157, %v2667
      %v3206 = vmul.f32 %v3158, %v2672
      %v3207 = vmul.f32 %v3159, %v2677
      %v3208 = vmul.f32 %v3160, %v2682
      %v3209 = vmul.f32 %v3161, %v2687
      %v3210 = vmul.f32 %v3162, %v2692
      %v3211 = vmul.f32 %v3163, %v2697
      %v3212 = vmul.f32 %v3164, %v2702
      %v3213 = vmul.f32 %v3165, %v2707
      %v3214 = vmul.f32 %v3166, %v2712
      %v3215 = vmul.f32 %v3167, %v2717
      %v3216 = vmul.f32 %v3168, %v2722
      %v3217 = vmul.f32 %v3169, %v2727
      %v3218 = vmul.f32 %v3170, %v2732
      %v3219 = vmul.f32 %v3171, %v2737
      %v3220 = vmul.f32 %v3172, %v2742
      %v3221 = vmul.f32 %v3173, %v2747
      %v3222 = vmul.f32 %v3174, %v2752
      %v3223 = vmul.f32 %v3175, %v2757
      %v3224 = vmul.f32 %v3176, %v2762
      %v3225 = vld [vmem:[%s3] sm:$0xff]
      %v3226 = vld [vmem:[%s3 + $0x8] sm:$0xff]
      %v3227 = vld [vmem:[%s3 + $0x10] sm:$0xff]
      %v3228 = vld [vmem:[%s3 + $0x18] sm:$0xff]
      %v3229 = vld [vmem:[%s3 + $0x20] sm:$0xff]
      %v3230 = vld [vmem:[%s3 + $0x28] sm:$0xff]
      %v3231 = vld [vmem:[%s3 + $0x30] sm:$0xff]
      %v3232 = vld [vmem:[%s3 + $0x38] sm:$0xff]
      %v3233 = vld [vmem:[%s3 + $0x40] sm:$0xff]
      %v3234 = vld [vmem:[%s3 + $0x48] sm:$0xff]
      %v3235 = vld [vmem:[%s3 + $0x50] sm:$0xff]
      %v3236 = vld [vmem:[%s3 + $0x58] sm:$0xff]
      %v3237 = vld [vmem:[%s3 + $0x60] sm:$0xff]
      %v3238 = vld [vmem:[%s3 + $0x68] sm:$0xff]
      %v3239 = vld [vmem:[%s3 + $0x70] sm:$0xff]
      %v3240 = vld [vmem:[%s3 + $0x78] sm:$0xff]
      %v3241 = vld [vmem:[%s3 + $0x80] sm:$0xff]
      %v3242 = vld [vmem:[%s3 + $0x88] sm:$0xff]
      %v3243 = vld [vmem:[%s3 + $0x90] sm:$0xff]
      %v3244 = vld [vmem:[%s3 + $0x98] sm:$0xff]
      %v3245 = vld [vmem:[%s3 + $0xa0] sm:$0xff]
      %v3246 = vld [vmem:[%s3 + $0xa8] sm:$0xff]
      %v3247 = vld [vmem:[%s3 + $0xb0] sm:$0xff]
      %v3248 = vld [vmem:[%s3 + $0xb8] sm:$0xff]
      %v3249 = vld [vmem:[%s3 + $0xc0] sm:$0xff]
      %v3250 = vld [vmem:[%s3 + $0xc8] sm:$0xff]
      %v3251 = vld [vmem:[%s3 + $0xd0] sm:$0xff]
      %v3252 = vld [vmem:[%s3 + $0xd8] sm:$0xff]
      %v3253 = vld [vmem:[%s3 + $0xe0] sm:$0xff]
      %v3254 = vld [vmem:[%s3 + $0xe8] sm:$0xff]
      %v3255 = vld [vmem:[%s3 + $0xf0] sm:$0xff]
      %v3256 = vld [vmem:[%s3 + $0xf8] sm:$0xff]
      %v3257 = vld [vmem:[%s3 + $0x100] sm:$0xff]
      %v3258 = vld [vmem:[%s3 + $0x108] sm:$0xff]
      %v3259 = vld [vmem:[%s3 + $0x110] sm:$0xff]
      %v3260 = vld [vmem:[%s3 + $0x118] sm:$0xff]
      %v3261 = vld [vmem:[%s3 + $0x120] sm:$0xff]
      %v3262 = vld [vmem:[%s3 + $0x128] sm:$0xff]
      %v3263 = vld [vmem:[%s3 + $0x130] sm:$0xff]
      %v3264 = vld [vmem:[%s3 + $0x138] sm:$0xff]
      %v3265 = vld [vmem:[%s3 + $0x140] sm:$0xff]
      %v3266 = vld [vmem:[%s3 + $0x148] sm:$0xff]
      %v3267 = vld [vmem:[%s3 + $0x150] sm:$0xff]
      %v3268 = vld [vmem:[%s3 + $0x158] sm:$0xff]
      %v3269 = vld [vmem:[%s3 + $0x160] sm:$0xff]
      %v3270 = vld [vmem:[%s3 + $0x168] sm:$0xff]
      %v3271 = vld [vmem:[%s3 + $0x170] sm:$0xff]
      %v3272 = vld [vmem:[%s3 + $0x178] sm:$0xff]
      %3274 = vset.pattern.permute.xlu0 0
      %3275 = vperm.xlu0 %3274, %v3225
      %v3276 = vpop.permute.xlu0 %3275
      %3279 = vset.pattern.permute.xlu0 0
      %3280 = vperm.xlu0 %3279, %v3226
      %v3281 = vpop.permute.xlu0 %3280
      %3284 = vset.pattern.permute.xlu0 0
      %3285 = vperm.xlu0 %3284, %v3227
      %v3286 = vpop.permute.xlu0 %3285
      %3289 = vset.pattern.permute.xlu0 0
      %3290 = vperm.xlu0 %3289, %v3228
      %v3291 = vpop.permute.xlu0 %3290
      %3294 = vset.pattern.permute.xlu0 0
      %3295 = vperm.xlu0 %3294, %v3229
      %v3296 = vpop.permute.xlu0 %3295
      %3299 = vset.pattern.permute.xlu0 0
      %3300 = vperm.xlu0 %3299, %v3230
      %v3301 = vpop.permute.xlu0 %3300
      %3304 = vset.pattern.permute.xlu0 0
      %3305 = vperm.xlu0 %3304, %v3231
      %v3306 = vpop.permute.xlu0 %3305
      %3309 = vset.pattern.permute.xlu0 0
      %3310 = vperm.xlu0 %3309, %v3232
      %v3311 = vpop.permute.xlu0 %3310
      %3314 = vset.pattern.permute.xlu0 0
      %3315 = vperm.xlu0 %3314, %v3233
      %v3316 = vpop.permute.xlu0 %3315
      %3319 = vset.pattern.permute.xlu0 0
      %3320 = vperm.xlu0 %3319, %v3234
      %v3321 = vpop.permute.xlu0 %3320
      %3324 = vset.pattern.permute.xlu0 0
      %3325 = vperm.xlu0 %3324, %v3235
      %v3326 = vpop.permute.xlu0 %3325
      %3329 = vset.pattern.permute.xlu0 0
      %3330 = vperm.xlu0 %3329, %v3236
      %v3331 = vpop.permute.xlu0 %3330
      %3334 = vset.pattern.permute.xlu0 0
      %3335 = vperm.xlu0 %3334, %v3237
      %v3336 = vpop.permute.xlu0 %3335
      %3339 = vset.pattern.permute.xlu0 0
      %3340 = vperm.xlu0 %3339, %v3238
      %v3341 = vpop.permute.xlu0 %3340
      %3344 = vset.pattern.permute.xlu0 0
      %3345 = vperm.xlu0 %3344, %v3239
      %v3346 = vpop.permute.xlu0 %3345
      %3349 = vset.pattern.permute.xlu0 0
      %3350 = vperm.xlu0 %3349, %v3240
      %v3351 = vpop.permute.xlu0 %3350
      %3354 = vset.pattern.permute.xlu0 0
      %3355 = vperm.xlu0 %3354, %v3241
      %v3356 = vpop.permute.xlu0 %3355
      %3359 = vset.pattern.permute.xlu0 0
      %3360 = vperm.xlu0 %3359, %v3242
      %v3361 = vpop.permute.xlu0 %3360
      %3364 = vset.pattern.permute.xlu0 0
      %3365 = vperm.xlu0 %3364, %v3243
      %v3366 = vpop.permute.xlu0 %3365
      %3369 = vset.pattern.permute.xlu0 0
      %3370 = vperm.xlu0 %3369, %v3244
      %v3371 = vpop.permute.xlu0 %3370
      %3374 = vset.pattern.permute.xlu0 0
      %3375 = vperm.xlu0 %3374, %v3245
      %v3376 = vpop.permute.xlu0 %3375
      %3379 = vset.pattern.permute.xlu0 0
      %3380 = vperm.xlu0 %3379, %v3246
      %v3381 = vpop.permute.xlu0 %3380
      %3384 = vset.pattern.permute.xlu0 0
      %3385 = vperm.xlu0 %3384, %v3247
      %v3386 = vpop.permute.xlu0 %3385
      %3389 = vset.pattern.permute.xlu0 0
      %3390 = vperm.xlu0 %3389, %v3248
      %v3391 = vpop.permute.xlu0 %3390
      %3394 = vset.pattern.permute.xlu0 0
      %3395 = vperm.xlu0 %3394, %v3249
      %v3396 = vpop.permute.xlu0 %3395
      %3399 = vset.pattern.permute.xlu0 0
      %3400 = vperm.xlu0 %3399, %v3250
      %v3401 = vpop.permute.xlu0 %3400
      %3404 = vset.pattern.permute.xlu0 0
      %3405 = vperm.xlu0 %3404, %v3251
      %v3406 = vpop.permute.xlu0 %3405
      %3409 = vset.pattern.permute.xlu0 0
      %3410 = vperm.xlu0 %3409, %v3252
      %v3411 = vpop.permute.xlu0 %3410
      %3414 = vset.pattern.permute.xlu0 0
      %3415 = vperm.xlu0 %3414, %v3253
      %v3416 = vpop.permute.xlu0 %3415
      %3419 = vset.pattern.permute.xlu0 0
      %3420 = vperm.xlu0 %3419, %v3254
      %v3421 = vpop.permute.xlu0 %3420
      %3424 = vset.pattern.permute.xlu0 0
      %3425 = vperm.xlu0 %3424, %v3255
      %v3426 = vpop.permute.xlu0 %3425
      %3429 = vset.pattern.permute.xlu0 0
      %3430 = vperm.xlu0 %3429, %v3256
      %v3431 = vpop.permute.xlu0 %3430
      %3434 = vset.pattern.permute.xlu0 0
      %3435 = vperm.xlu0 %3434, %v3257
      %v3436 = vpop.permute.xlu0 %3435
      %3439 = vset.pattern.permute.xlu0 0
      %3440 = vperm.xlu0 %3439, %v3258
      %v3441 = vpop.permute.xlu0 %3440
      %3444 = vset.pattern.permute.xlu0 0
      %3445 = vperm.xlu0 %3444, %v3259
      %v3446 = vpop.permute.xlu0 %3445
      %3449 = vset.pattern.permute.xlu0 0
      %3450 = vperm.xlu0 %3449, %v3260
      %v3451 = vpop.permute.xlu0 %3450
      %3454 = vset.pattern.permute.xlu0 0
      %3455 = vperm.xlu0 %3454, %v3261
      %v3456 = vpop.permute.xlu0 %3455
      %3459 = vset.pattern.permute.xlu0 0
      %3460 = vperm.xlu0 %3459, %v3262
      %v3461 = vpop.permute.xlu0 %3460
      %3464 = vset.pattern.permute.xlu0 0
      %3465 = vperm.xlu0 %3464, %v3263
      %v3466 = vpop.permute.xlu0 %3465
      %3469 = vset.pattern.permute.xlu0 0
      %3470 = vperm.xlu0 %3469, %v3264
      %v3471 = vpop.permute.xlu0 %3470
      %3474 = vset.pattern.permute.xlu0 0
      %3475 = vperm.xlu0 %3474, %v3265
      %v3476 = vpop.permute.xlu0 %3475
      %3479 = vset.pattern.permute.xlu0 0
      %3480 = vperm.xlu0 %3479, %v3266
      %v3481 = vpop.permute.xlu0 %3480
      %3484 = vset.pattern.permute.xlu0 0
      %3485 = vperm.xlu0 %3484, %v3267
      %v3486 = vpop.permute.xlu0 %3485
      %3489 = vset.pattern.permute.xlu0 0
      %3490 = vperm.xlu0 %3489, %v3268
      %v3491 = vpop.permute.xlu0 %3490
      %3494 = vset.pattern.permute.xlu0 0
      %3495 = vperm.xlu0 %3494, %v3269
      %v3496 = vpop.permute.xlu0 %3495
      %3499 = vset.pattern.permute.xlu0 0
      %3500 = vperm.xlu0 %3499, %v3270
      %v3501 = vpop.permute.xlu0 %3500
      %3504 = vset.pattern.permute.xlu0 0
      %3505 = vperm.xlu0 %3504, %v3271
      %v3506 = vpop.permute.xlu0 %3505
      %3509 = vset.pattern.permute.xlu0 0
      %3510 = vperm.xlu0 %3509, %v3272
      %v3511 = vpop.permute.xlu0 %3510
      %v3513 = vmul.f32 %v3177, %v3276
      %v3514 = vmul.f32 %v3178, %v3281
      %v3515 = vmul.f32 %v3179, %v3286
      %v3516 = vmul.f32 %v3180, %v3291
      %v3517 = vmul.f32 %v3181, %v3296
      %v3518 = vmul.f32 %v3182, %v3301
      %v3519 = vmul.f32 %v3183, %v3306
      %v3520 = vmul.f32 %v3184, %v3311
      %v3521 = vmul.f32 %v3185, %v3316
      %v3522 = vmul.f32 %v3186, %v3321
      %v3523 = vmul.f32 %v3187, %v3326
      %v3524 = vmul.f32 %v3188, %v3331
      %v3525 = vmul.f32 %v3189, %v3336
      %v3526 = vmul.f32 %v3190, %v3341
      %v3527 = vmul.f32 %v3191, %v3346
      %v3528 = vmul.f32 %v3192, %v3351
      %v3529 = vmul.f32 %v3193, %v3356
      %v3530 = vmul.f32 %v3194, %v3361
      %v3531 = vmul.f32 %v3195, %v3366
      %v3532 = vmul.f32 %v3196, %v3371
      %v3533 = vmul.f32 %v3197, %v3376
      %v3534 = vmul.f32 %v3198, %v3381
      %v3535 = vmul.f32 %v3199, %v3386
      %v3536 = vmul.f32 %v3200, %v3391
      %v3537 = vmul.f32 %v3201, %v3396
      %v3538 = vmul.f32 %v3202, %v3401
      %v3539 = vmul.f32 %v3203, %v3406
      %v3540 = vmul.f32 %v3204, %v3411
      %v3541 = vmul.f32 %v3205, %v3416
      %v3542 = vmul.f32 %v3206, %v3421
      %v3543 = vmul.f32 %v3207, %v3426
      %v3544 = vmul.f32 %v3208, %v3431
      %v3545 = vmul.f32 %v3209, %v3436
      %v3546 = vmul.f32 %v3210, %v3441
      %v3547 = vmul.f32 %v3211, %v3446
      %v3548 = vmul.f32 %v3212, %v3451
      %v3549 = vmul.f32 %v3213, %v3456
      %v3550 = vmul.f32 %v3214, %v3461
      %v3551 = vmul.f32 %v3215, %v3466
      %v3552 = vmul.f32 %v3216, %v3471
      %v3553 = vmul.f32 %v3217, %v3476
      %v3554 = vmul.f32 %v3218, %v3481
      %v3555 = vmul.f32 %v3219, %v3486
      %v3556 = vmul.f32 %v3220, %v3491
      %v3557 = vmul.f32 %v3221, %v3496
      %v3558 = vmul.f32 %v3222, %v3501
      %v3559 = vmul.f32 %v3223, %v3506
      %v3560 = vmul.f32 %v3224, %v3511
      %3561 = vst [vmem:[%s496] sm:$0xff] %v3513
      %3562 = vst [vmem:[%s496 + $0x8] sm:$0xff] %v3514
      %3563 = vst [vmem:[%s496 + $0x10] sm:$0xff] %v3515
      %3564 = vst [vmem:[%s496 + $0x18] sm:$0xff] %v3516
      %3565 = vst [vmem:[%s496 + $0x20] sm:$0xff] %v3517
      %3566 = vst [vmem:[%s496 + $0x28] sm:$0xff] %v3518
      %3567 = vst [vmem:[%s496 + $0x30] sm:$0xff] %v3519
      %3568 = vst [vmem:[%s496 + $0x38] sm:$0xff] %v3520
      %3569 = vst [vmem:[%s496 + $0x40] sm:$0xff] %v3521
      %3570 = vst [vmem:[%s496 + $0x48] sm:$0xff] %v3522
      %3571 = vst [vmem:[%s496 + $0x50] sm:$0xff] %v3523
      %3572 = vst [vmem:[%s496 + $0x58] sm:$0xff] %v3524
      %3573 = vst [vmem:[%s496 + $0x60] sm:$0xff] %v3525
      %3574 = vst [vmem:[%s496 + $0x68] sm:$0xff] %v3526
      %3575 = vst [vmem:[%s496 + $0x70] sm:$0xff] %v3527
      %3576 = vst [vmem:[%s496 + $0x78] sm:$0xff] %v3528
      %3577 = vst [vmem:[%s496 + $0x80] sm:$0xff] %v3529
      %3578 = vst [vmem:[%s496 + $0x88] sm:$0xff] %v3530
      %3579 = vst [vmem:[%s496 + $0x90] sm:$0xff] %v3531
      %3580 = vst [vmem:[%s496 + $0x98] sm:$0xff] %v3532
      %3581 = vst [vmem:[%s496 + $0xa0] sm:$0xff] %v3533
      %3582 = vst [vmem:[%s496 + $0xa8] sm:$0xff] %v3534
      %3583 = vst [vmem:[%s496 + $0xb0] sm:$0xff] %v3535
      %3584 = vst [vmem:[%s496 + $0xb8] sm:$0xff] %v3536
      %3585 = vst [vmem:[%s496 + $0xc0] sm:$0xff] %v3537
      %3586 = vst [vmem:[%s496 + $0xc8] sm:$0xff] %v3538
      %3587 = vst [vmem:[%s496 + $0xd0] sm:$0xff] %v3539
      %3588 = vst [vmem:[%s496 + $0xd8] sm:$0xff] %v3540
      %3589 = vst [vmem:[%s496 + $0xe0] sm:$0xff] %v3541
      %3590 = vst [vmem:[%s496 + $0xe8] sm:$0xff] %v3542
      %3591 = vst [vmem:[%s496 + $0xf0] sm:$0xff] %v3543
      %3592 = vst [vmem:[%s496 + $0xf8] sm:$0xff] %v3544
      %3593 = vst [vmem:[%s496 + $0x100] sm:$0xff] %v3545
      %3594 = vst [vmem:[%s496 + $0x108] sm:$0xff] %v3546
      %3595 = vst [vmem:[%s496 + $0x110] sm:$0xff] %v3547
      %3596 = vst [vmem:[%s496 + $0x118] sm:$0xff] %v3548
      %3597 = vst [vmem:[%s496 + $0x120] sm:$0xff] %v3549
      %3598 = vst [vmem:[%s496 + $0x128] sm:$0xff] %v3550
      %3599 = vst [vmem:[%s496 + $0x130] sm:$0xff] %v3551
      %3600 = vst [vmem:[%s496 + $0x138] sm:$0xff] %v3552
      %3601 = vst [vmem:[%s496 + $0x140] sm:$0xff] %v3553
      %3602 = vst [vmem:[%s496 + $0x148] sm:$0xff] %v3554
      %3603 = vst [vmem:[%s496 + $0x150] sm:$0xff] %v3555
      %3604 = vst [vmem:[%s496 + $0x158] sm:$0xff] %v3556
      %3605 = vst [vmem:[%s496 + $0x160] sm:$0xff] %v3557
      %3606 = vst [vmem:[%s496 + $0x168] sm:$0xff] %v3558
      %3607 = vst [vmem:[%s496 + $0x170] sm:$0xff] %v3559
      %3608 = vst [vmem:[%s496 + $0x178] sm:$0xff] %v3560
      %v3609 = vld [vmem:[%s4] sm:$0xff]
      %v3610 = vld [vmem:[%s4 + $0x8] sm:$0xff]
      %v3611 = vld [vmem:[%s4 + $0x10] sm:$0xff]
      %3612 = vmatprep.subr.mxu0 0.0
      %3613 = vmatpush1.msra.mxu0 %v3528
      %3614 = vmatprep.subr.mxu0 0.0
      %3615 = vmatpush1.msra.mxu0 %v3527
      %3616 = vmatprep.subr.mxu0 0.0
      %3617 = vmatpush1.msra.mxu0 %v3526
      %3618 = vmatprep.subr.mxu0 0.0
      %3619 = vmatpush1.msra.mxu0 %v3525
      %3620 = vmatprep.subr.mxu0 0.0
      %3621 = vmatpush1.msra.mxu0 %v3524
      %3622 = vmatprep.subr.mxu0 0.0
      %3623 = vmatpush1.msra.mxu0 %v3523
      %3624 = vmatprep.subr.mxu0 0.0
      %3625 = vmatpush1.msra.mxu0 %v3522
      %3626 = vmatprep.subr.mxu0 0.0
      %3627 = vmatpush1.msra.mxu0 %v3521
      %3628 = vmatprep.subr.mxu0 0.0
      %3629 = vmatpush1.msra.mxu0 %v3520
      %3630 = vmatprep.subr.mxu0 0.0
      %3631 = vmatpush1.msra.mxu0 %v3519
      %3632 = vmatprep.subr.mxu0 0.0
      %3633 = vmatpush1.msra.mxu0 %v3518
      %3634 = vmatprep.subr.mxu0 0.0
      %3635 = vmatpush1.msra.mxu0 %v3517
      %3636 = vmatprep.subr.mxu0 0.0
      %3637 = vmatpush1.msra.mxu0 %v3516
      %3638 = vmatprep.subr.mxu0 0.0
      %3639 = vmatpush1.msra.mxu0 %v3515
      %3640 = vmatprep.subr.mxu0 0.0
      %3641 = vmatpush1.msra.mxu0 %v3514
      %3642 = vmatprep.subr.mxu0 0.0
      %3643 = vmatpush1.msra.mxu0 %v3513
      %3644 = vmatprep.subr.mxu0 0.0
      %3645 = vmatpush2.msra.mxu0 %v3544
      %3646 = vmatprep.subr.mxu0 0.0
      %3647 = vmatpush2.msra.mxu0 %v3543
      %3648 = vmatprep.subr.mxu0 0.0
      %3649 = vmatpush2.msra.mxu0 %v3542
      %3650 = vmatprep.subr.mxu0 0.0
      %3651 = vmatpush2.msra.mxu0 %v3541
      %3652 = vmatprep.subr.mxu0 0.0
      %3653 = vmatpush2.msra.mxu0 %v3540
      %3654 = vmatprep.subr.mxu0 0.0
      %3655 = vmatpush2.msra.mxu0 %v3539
      %3656 = vmatprep.subr.mxu0 0.0
      %3657 = vmatpush2.msra.mxu0 %v3538
      %3658 = vmatprep.subr.mxu0 0.0
      %3659 = vmatpush2.msra.mxu0 %v3537
      %3660 = vmatprep.subr.mxu0 0.0
      %3661 = vmatpush2.msra.mxu0 %v3536
      %3662 = vmatprep.subr.mxu0 0.0
      %3663 = vmatpush2.msra.mxu0 %v3535
      %3664 = vmatprep.subr.mxu0 0.0
      %3665 = vmatpush2.msra.mxu0 %v3534
      %3666 = vmatprep.subr.mxu0 0.0
      %3667 = vmatpush2.msra.mxu0 %v3533
      %3668 = vmatprep.subr.mxu0 0.0
      %3669 = vmatpush2.msra.mxu0 %v3532
      %3670 = vmatprep.subr.mxu0 0.0
      %3671 = vmatpush2.msra.mxu0 %v3531
      %3672 = vmatprep.subr.mxu0 0.0
      %3673 = vmatpush2.msra.mxu0 %v3530
      %3674 = vmatprep.subr.mxu0 0.0
      %3675 = vmatpush2.msra.mxu0 %v3529
      %3676 = vmatprep.mubr.f32.mxu0 %v3610
      %3677 = vmatmul.mubr.f32.gmra.mxu0 %v3609
      %v3678 = vpop.f32.mrf.mxu0
      %v3679 = vadd.f32 0.0, %v3678
      %v3680 = vpop.f32.mrf.mxu0
      %3681 = vdwg.mxu0
      %3682 = vmatprep.subr.mxu0 0.0
      %3683 = vmatpush1.msra.mxu0 %v3560
      %3684 = vmatprep.subr.mxu0 0.0
      %3685 = vmatpush1.msra.mxu0 %v3559
      %3686 = vmatprep.subr.mxu0 0.0
      %3687 = vmatpush1.msra.mxu0 %v3558
      %3688 = vmatprep.subr.mxu0 0.0
      %3689 = vmatpush1.msra.mxu0 %v3557
      %3690 = vmatprep.subr.mxu0 0.0
      %3691 = vmatpush1.msra.mxu0 %v3556
      %3692 = vmatprep.subr.mxu0 0.0
      %3693 = vmatpush1.msra.mxu0 %v3555
      %3694 = vmatprep.subr.mxu0 0.0
      %3695 = vmatpush1.msra.mxu0 %v3554
      %3696 = vmatprep.subr.mxu0 0.0
      %3697 = vmatpush1.msra.mxu0 %v3553
      %3698 = vmatprep.subr.mxu0 0.0
      %3699 = vmatpush1.msra.mxu0 %v3552
      %3700 = vmatprep.subr.mxu0 0.0
      %3701 = vmatpush1.msra.mxu0 %v3551
      %3702 = vmatprep.subr.mxu0 0.0
      %3703 = vmatpush1.msra.mxu0 %v3550
      %3704 = vmatprep.subr.mxu0 0.0
      %3705 = vmatpush1.msra.mxu0 %v3549
      %3706 = vmatprep.subr.mxu0 0.0
      %3707 = vmatpush1.msra.mxu0 %v3548
      %3708 = vmatprep.subr.mxu0 0.0
      %3709 = vmatpush1.msra.mxu0 %v3547
      %3710 = vmatprep.subr.mxu0 0.0
      %3711 = vmatpush1.msra.mxu0 %v3546
      %3712 = vmatprep.subr.mxu0 0.0
      %3713 = vmatpush1.msra.mxu0 %v3545
      %3714 = vmatprep.subr.mxu0 0.0
      %3715 = vmatpush2.msra.mxu0 0.0
      %3716 = vmatprep.subr.mxu0 0.0
      %3717 = vmatpush2.msra.mxu0 0.0
      %3718 = vmatprep.subr.mxu0 0.0
      %3719 = vmatpush2.msra.mxu0 0.0
      %3720 = vmatprep.subr.mxu0 0.0
      %3721 = vmatpush2.msra.mxu0 0.0
      %3722 = vmatprep.subr.mxu0 0.0
      %3723 = vmatpush2.msra.mxu0 0.0
      %3724 = vmatprep.subr.mxu0 0.0
      %3725 = vmatpush2.msra.mxu0 0.0
      %3726 = vmatprep.subr.mxu0 0.0
      %3727 = vmatpush2.msra.mxu0 0.0
      %3728 = vmatprep.subr.mxu0 0.0
      %3729 = vmatpush2.msra.mxu0 0.0
      %3730 = vmatprep.subr.mxu0 0.0
      %3731 = vmatpush2.msra.mxu0 0.0
      %3732 = vmatprep.subr.mxu0 0.0
      %3733 = vmatpush2.msra.mxu0 0.0
      %3734 = vmatprep.subr.mxu0 0.0
      %3735 = vmatpush2.msra.mxu0 0.0
      %3736 = vmatprep.subr.mxu0 0.0
      %3737 = vmatpush2.msra.mxu0 0.0
      %3738 = vmatprep.subr.mxu0 0.0
      %3739 = vmatpush2.msra.mxu0 0.0
      %3740 = vmatprep.subr.mxu0 0.0
      %3741 = vmatpush2.msra.mxu0 0.0
      %3742 = vmatprep.subr.mxu0 0.0
      %3743 = vmatpush2.msra.mxu0 0.0
      %3744 = vmatprep.subr.mxu0 0.0
      %3745 = vmatpush2.msra.mxu0 0.0
      %3746 = vmatprep.mubr.f32.mxu0 0.0
      %3747 = vmatmul.mubr.f32.gmra.mxu0 %v3611
      %v3748 = vpop.f32.mrf.mxu0
      %v3749 = vadd.f32 %v3679, %v3748
      %v3750 = vpop.f32.mrf.mxu0
      %3751 = vdwg.mxu0
      %3752 = vst [vmem:[%s500] sm:$0xff] %v3749
      %v3753 = vpack.c.bf16 %v3178, %v3177
      %v3754 = vpack.c.bf16 %v3180, %v3179
      %v3755 = vpack.c.bf16 %v3182, %v3181
      %v3756 = vpack.c.bf16 %v3184, %v3183
      %v3757 = vpack.c.bf16 %v3186, %v3185
      %v3758 = vpack.c.bf16 %v3188, %v3187
      %v3759 = vpack.c.bf16 %v3190, %v3189
      %v3760 = vpack.c.bf16 %v3192, %v3191
      %v3761 = vpack.c.bf16 %v3194, %v3193
      %v3762 = vpack.c.bf16 %v3196, %v3195
      %v3763 = vpack.c.bf16 %v3198, %v3197
      %v3764 = vpack.c.bf16 %v3200, %v3199
      %v3765 = vpack.c.bf16 %v3202, %v3201
      %v3766 = vpack.c.bf16 %v3204, %v3203
      %v3767 = vpack.c.bf16 %v3206, %v3205
      %v3768 = vpack.c.bf16 %v3208, %v3207
      %v3769 = vpack.c.bf16 %v3210, %v3209
      %v3770 = vpack.c.bf16 %v3212, %v3211
      %v3771 = vpack.c.bf16 %v3214, %v3213
      %v3772 = vpack.c.bf16 %v3216, %v3215
      %v3773 = vpack.c.bf16 %v3218, %v3217
      %v3774 = vpack.c.bf16 %v3220, %v3219
      %v3775 = vpack.c.bf16 %v3222, %v3221
      %v3776 = vpack.c.bf16 %v3224, %v3223
      %v3801 = vunpack.c.l.b16 %v3753
      %v3802 = vunpack.c.h.b16 %v3753
      %v3803 = vunpack.c.l.b16 %v3754
      %v3804 = vunpack.c.h.b16 %v3754
      %v3805 = vunpack.c.l.b16 %v3755
      %v3806 = vunpack.c.h.b16 %v3755
      %v3807 = vunpack.c.l.b16 %v3756
      %v3808 = vunpack.c.h.b16 %v3756
      %v3809 = vunpack.c.l.b16 %v3757
      %v3810 = vunpack.c.h.b16 %v3757
      %v3811 = vunpack.c.l.b16 %v3758
      %v3812 = vunpack.c.h.b16 %v3758
      %v3813 = vunpack.c.l.b16 %v3759
      %v3814 = vunpack.c.h.b16 %v3759
      %v3815 = vunpack.c.l.b16 %v3760
      %v3816 = vunpack.c.h.b16 %v3760
      %v3817 = vunpack.c.l.b16 %v3761
      %v3818 = vunpack.c.h.b16 %v3761
      %v3819 = vunpack.c.l.b16 %v3762
      %v3820 = vunpack.c.h.b16 %v3762
      %v3821 = vunpack.c.l.b16 %v3763
      %v3822 = vunpack.c.h.b16 %v3763
      %v3823 = vunpack.c.l.b16 %v3764
      %v3824 = vunpack.c.h.b16 %v3764
      %v3825 = vunpack.c.l.b16 %v3765
      %v3826 = vunpack.c.h.b16 %v3765
      %v3827 = vunpack.c.l.b16 %v3766
      %v3828 = vunpack.c.h.b16 %v3766
      %v3829 = vunpack.c.l.b16 %v3767
      %v3830 = vunpack.c.h.b16 %v3767
      %v3831 = vunpack.c.l.b16 %v3768
      %v3832 = vunpack.c.h.b16 %v3768
      %v3833 = vunpack.c.l.b16 %v3769
      %v3834 = vunpack.c.h.b16 %v3769
      %v3835 = vunpack.c.l.b16 %v3770
      %v3836 = vunpack.c.h.b16 %v3770
      %v3837 = vunpack.c.l.b16 %v3771
      %v3838 = vunpack.c.h.b16 %v3771
      %v3839 = vunpack.c.l.b16 %v3772
      %v3840 = vunpack.c.h.b16 %v3772
      %v3841 = vunpack.c.l.b16 %v3773
      %v3842 = vunpack.c.h.b16 %v3773
      %v3843 = vunpack.c.l.b16 %v3774
      %v3844 = vunpack.c.h.b16 %v3774
      %v3845 = vunpack.c.l.b16 %v3775
      %v3846 = vunpack.c.h.b16 %v3775
      %v3847 = vunpack.c.l.b16 %v3776
      %v3848 = vunpack.c.h.b16 %v3776
      %v3849 = vpack.c.b16 %v3801, %v3801
      %v3850 = vpack.c.b16 %v3802, %v3802
      %v3851 = vpack.c.b16 %v3803, %v3803
      %v3852 = vpack.c.b16 %v3804, %v3804
      %v3853 = vpack.c.b16 %v3805, %v3805
      %v3854 = vpack.c.b16 %v3806, %v3806
      %v3855 = vpack.c.b16 %v3807, %v3807
      %v3856 = vpack.c.b16 %v3808, %v3808
      %v3857 = vpack.c.b16 %v3809, %v3809
      %v3858 = vpack.c.b16 %v3810, %v3810
      %v3859 = vpack.c.b16 %v3811, %v3811
      %v3860 = vpack.c.b16 %v3812, %v3812
      %v3861 = vpack.c.b16 %v3813, %v3813
      %v3862 = vpack.c.b16 %v3814, %v3814
      %v3863 = vpack.c.b16 %v3815, %v3815
      %v3864 = vpack.c.b16 %v3816, %v3816
      %v3865 = vpack.c.b16 %v3817, %v3817
      %v3866 = vpack.c.b16 %v3818, %v3818
      %v3867 = vpack.c.b16 %v3819, %v3819
      %v3868 = vpack.c.b16 %v3820, %v3820
      %v3869 = vpack.c.b16 %v3821, %v3821
      %v3870 = vpack.c.b16 %v3822, %v3822
      %v3871 = vpack.c.b16 %v3823, %v3823
      %v3872 = vpack.c.b16 %v3824, %v3824
      %v3873 = vpack.c.b16 %v3825, %v3825
      %v3874 = vpack.c.b16 %v3826, %v3826
      %v3875 = vpack.c.b16 %v3827, %v3827
      %v3876 = vpack.c.b16 %v3828, %v3828
      %v3877 = vpack.c.b16 %v3829, %v3829
      %v3878 = vpack.c.b16 %v3830, %v3830
      %v3879 = vpack.c.b16 %v3831, %v3831
      %v3880 = vpack.c.b16 %v3832, %v3832
      %v3881 = vpack.c.b16 %v3833, %v3833
      %v3882 = vpack.c.b16 %v3834, %v3834
      %v3883 = vpack.c.b16 %v3835, %v3835
      %v3884 = vpack.c.b16 %v3836, %v3836
      %v3885 = vpack.c.b16 %v3837, %v3837
      %v3886 = vpack.c.b16 %v3838, %v3838
      %v3887 = vpack.c.b16 %v3839, %v3839
      %v3888 = vpack.c.b16 %v3840, %v3840
      %v3889 = vpack.c.b16 %v3841, %v3841
      %v3890 = vpack.c.b16 %v3842, %v3842
      %v3891 = vpack.c.b16 %v3843, %v3843
      %v3892 = vpack.c.b16 %v3844, %v3844
      %v3893 = vpack.c.b16 %v3845, %v3845
      %v3894 = vpack.c.b16 %v3846, %v3846
      %v3895 = vpack.c.b16 %v3847, %v3847
      %v3896 = vpack.c.b16 %v3848, %v3848
      %3945 = vst [vmem:[#allocation2] sm:$0xf] %v3849
      %3946 = vst [vmem:[#allocation2 + $0x4] sm:$0xf] %v3850
      %3947 = vst [vmem:[#allocation2 + $0x8] sm:$0xf] %v3851
      %3948 = vst [vmem:[#allocation2 + $0xc] sm:$0xf] %v3852
      %3949 = vst [vmem:[#allocation2 + $0x10] sm:$0xf] %v3853
      %3950 = vst [vmem:[#allocation2 + $0x14] sm:$0xf] %v3854
      %3951 = vst [vmem:[#allocation2 + $0x18] sm:$0xf] %v3855
      %3952 = vst [vmem:[#allocation2 + $0x1c] sm:$0xf] %v3856
      %3953 = vst [vmem:[#allocation2 + $0x20] sm:$0xf] %v3857
      %3954 = vst [vmem:[#allocation2 + $0x24] sm:$0xf] %v3858
      %3955 = vst [vmem:[#allocation2 + $0x28] sm:$0xf] %v3859
      %3956 = vst [vmem:[#allocation2 + $0x2c] sm:$0xf] %v3860
      %3957 = vst [vmem:[#allocation2 + $0x30] sm:$0xf] %v3861
      %3958 = vst [vmem:[#allocation2 + $0x34] sm:$0xf] %v3862
      %3959 = vst [vmem:[#allocation2 + $0x38] sm:$0xf] %v3863
      %3960 = vst [vmem:[#allocation2 + $0x3c] sm:$0xf] %v3864
      %3961 = vst [vmem:[#allocation2 + $0x40] sm:$0xf] %v3865
      %3962 = vst [vmem:[#allocation2 + $0x44] sm:$0xf] %v3866
      %3963 = vst [vmem:[#allocation2 + $0x48] sm:$0xf] %v3867
      %3964 = vst [vmem:[#allocation2 + $0x4c] sm:$0xf] %v3868
      %3965 = vst [vmem:[#allocation2 + $0x50] sm:$0xf] %v3869
      %3966 = vst [vmem:[#allocation2 + $0x54] sm:$0xf] %v3870
      %3967 = vst [vmem:[#allocation2 + $0x58] sm:$0xf] %v3871
      %3968 = vst [vmem:[#allocation2 + $0x5c] sm:$0xf] %v3872
      %3969 = vst [vmem:[#allocation2 + $0x60] sm:$0xf] %v3873
      %3970 = vst [vmem:[#allocation2 + $0x64] sm:$0xf] %v3874
      %3971 = vst [vmem:[#allocation2 + $0x68] sm:$0xf] %v3875
      %3972 = vst [vmem:[#allocation2 + $0x6c] sm:$0xf] %v3876
      %3973 = vst [vmem:[#allocation2 + $0x70] sm:$0xf] %v3877
      %3974 = vst [vmem:[#allocation2 + $0x74] sm:$0xf] %v3878
      %3975 = vst [vmem:[#allocation2 + $0x78] sm:$0xf] %v3879
      %3976 = vst [vmem:[#allocation2 + $0x7c] sm:$0xf] %v3880
      %3977 = vst [vmem:[#allocation2 + $0x80] sm:$0xf] %v3881
      %3978 = vst [vmem:[#allocation2 + $0x84] sm:$0xf] %v3882
      %3979 = vst [vmem:[#allocation2 + $0x88] sm:$0xf] %v3883
      %3980 = vst [vmem:[#allocation2 + $0x8c] sm:$0xf] %v3884
      %3981 = vst [vmem:[#allocation2 + $0x90] sm:$0xf] %v3885
      %3982 = vst [vmem:[#allocation2 + $0x94] sm:$0xf] %v3886
      %3983 = vst [vmem:[#allocation2 + $0x98] sm:$0xf] %v3887
      %3984 = vst [vmem:[#allocation2 + $0x9c] sm:$0xf] %v3888
      %3985 = vst [vmem:[#allocation2 + $0xa0] sm:$0xf] %v3889
      %3986 = vst [vmem:[#allocation2 + $0xa4] sm:$0xf] %v3890
      %3987 = vst [vmem:[#allocation2 + $0xa8] sm:$0xf] %v3891
      %3988 = vst [vmem:[#allocation2 + $0xac] sm:$0xf] %v3892
      %3989 = vst [vmem:[#allocation2 + $0xb0] sm:$0xf] %v3893
      %3990 = vst [vmem:[#allocation2 + $0xb4] sm:$0xf] %v3894
      %3991 = vst [vmem:[#allocation2 + $0xb8] sm:$0xf] %v3895
      %3992 = vst [vmem:[#allocation2 + $0xbc] sm:$0xf] %v3896
      %p3993 = scmp.lt.s32.totalorder %s24, 2
      %s3994 = scalar_select %p3993, %s24, 2
      %s3995 = smul.addr %s3994, 48
      %s3996 = smul.addr %s3995, 8
      %s3997 = scalar_lea.vmem %s11, %s3996
      %p3998 = scmp.lt.s32.totalorder %s24, 2
      %s3999 = scalar_select %p3998, %s24, 2
      %s4000 = smul.addr %s3999, 8
      %s4001 = scalar_lea.vmem %s12, %s4000
      // Predicated region
      $region69: #{hencoder_forward.1} parent=63 // pred_check
        %p4002 = pneg %p303
      $region70: #{hencoder_forward.1} parent=63 // pred_check_branch
        %4004 = sbr.rel (%p4002) target = $region72
      $region71: #{hencoder_forward.1} parent=63 // pred_region
        _
      $region72: #{hencoder_forward.1} parent=63 // pred_fallthru
        _
      // Predicated region
      $region73: #{hencoder_forward.1} parent=63 // pred_check
        %p4005 = pneg %p329
      $region74: #{hencoder_forward.1} parent=63 // pred_check_branch
        %4007 = sbr.rel (%p4005) target = $region76
      $region75: #{hencoder_forward.1} parent=63 // pred_region
        _
      $region76: #{hencoder_forward.1} parent=63 // pred_fallthru
        _
    $region64: #{hencoder_forward.1} parent=5 // pred_fallthru
      _
    %p4008 = scmp.le.s32.totalorder 2, %s19
    // Predicated region
    $region77: #{hencoder_forward.1} parent=5 // pred_check
      %p4009 = pneg %p4008
    $region78: #{hencoder_forward.1} parent=5 // pred_check_branch
      %4011 = sbr.rel (%p4009) target = $region80
    $region79: #{hencoder_forward.1} parent=5 // pred_region
      %s4012 = ssub.s32 %s19, 2
      // Predicated region
      $region81: #{hencoder_forward.1} parent=79 // pred_check
        %p4013 = pneg %p309
      $region82: #{hencoder_forward.1} parent=79 // pred_check_branch
        %4015 = sbr.rel (%p4013) target = $region84
      $region83: #{hencoder_forward.1} parent=79 // pred_region
        %p4016 = scmp.lt.s32.totalorder %s25, 2
        %s4017 = scalar_select %p4016, %s25, 2
        %s4018 = smul.addr %s4017, 48
        %s4019 = smul.addr %s4018, 8
        %s4020 = scalar_lea.vmem %s11, %s4019
      $region84: #{hencoder_forward.1} parent=79 // pred_fallthru
        _
      // Predicated region
      $region85: #{hencoder_forward.1} parent=79 // pred_check
        %p4021 = pneg %p335
      $region86: #{hencoder_forward.1} parent=79 // pred_check_branch
        %4023 = sbr.rel (%p4021) target = $region88
      $region87: #{hencoder_forward.1} parent=79 // pred_region
        %p4024 = scmp.lt.s32.totalorder %s25, 2
        %s4025 = scalar_select %p4024, %s25, 2
        %s4026 = smul.addr %s4025, 8
        %s4027 = scalar_lea.vmem %s12, %s4026
      $region88: #{hencoder_forward.1} parent=79 // pred_fallthru
        _
    $region80: #{hencoder_forward.1} parent=5 // pred_fallthru
      _
  $region6: #{hencoder_forward.1} parent=0 // loop_footer
    %s23 = sadd.s32 1, %s19
  $region7: #{hencoder_forward.1} parent=0 // loop_footer_branch
    %18 = sbr.rel target = $region3
  $region8: #{hencoder_forward.1} parent=0 // loop_exit
    _

</llo_original>
